<compile_context>
chip_gen: v7x
topology: tpu7x:2x2x1
jax: 0.10.0
libtpu: 0.0.40
codegen_flags: <defaults>
</compile_context>

<pallas_src>
import functools
import numpy as np
import jax
import jax.numpy as jnp
from jax.experimental import pallas as pl
from jax.experimental.pallas import tpu as pltpu


# ----------------------------- fused Pallas kernel --------------------------

def _lenet_kernel(x_ref, w1_ref, b1_ref, ph2_ref, pw2_ref, s2s_ref, s2b_ref,
                  w3_ref, b3_ref, ph4_ref, pw4_ref, s4s_ref, s4b_ref,
                  w5_ref, b5_ref, w6_ref, b6_ref, rbft_ref, rbfsq_ref,
                  o_ref, *, bb):
    dot = lambda a, b: jnp.dot(a, b, preferred_element_type=jnp.float32)
    act = lambda v: 1.7159 * jnp.tanh((2.0 / 3.0) * v)

    # Hoist weight loads once per block; reused by every sample below.
    w1 = [w1_ref[k] for k in range(5)]
    w3 = [w3_ref[k] for k in range(5)]
    w5 = [w5_ref[k] for k in range(5)]
    b1 = b1_ref[...]; b3 = b3_ref[...]; b5 = b5_ref[...]
    ph2 = ph2_ref[...]; pw2 = pw2_ref[...]
    ph4 = ph4_ref[...]; pw4 = pw4_ref[...]
    s2s = s2s_ref[...]; s2b = s2b_ref[...]
    s4s = s4s_ref[...]; s4b = s4b_ref[...]
    w6 = w6_ref[...]; b6 = b6_ref[...]
    rbft = rbft_ref[...]; rbfsq = rbfsq_ref[...]

    rows = []
    for b in range(bb):                                # independent chains -> ILP
        x = x_ref[b]                                   # (32, 32) one sample

        # C1: 5x5 valid conv 1->6ch as 5 Toeplitz matmuls -> (28, 6*28)
        o1 = dot(x[0:28, :], w1[0])
        for ki in range(1, 5):
            o1 = o1 + dot(x[ki:ki + 28, :], w1[ki])
        o1 = o1 + b1                                   # (28, 168)

        # S2: 2x2 window-sum (== 4*avgpool) on MXU, per-channel affine, tanh
        p2 = dot(dot(ph2, o1), pw2)                    # (14, 6*14)
        s2a = act(p2 * s2s + s2b)                      # (14, 84)

        # C3: grouped 5x5 conv 6->16ch (channel groups folded into weights)
        o3 = dot(s2a[0:10, :], w3[0])
        for ki in range(1, 5):
            o3 = o3 + dot(s2a[ki:ki + 10, :], w3[ki])
        o3 = o3 + b3                                   # (10, 160)

        # S4
        p4 = dot(dot(ph4, o3), pw4)                    # (5, 16*5)
        s4a = act(p4 * s4s + s4b)                      # (5, 80)

        # C5: 5x5 conv down to 1x1 == flatten + linear -> (1, 120)
        o5 = dot(s4a[0:1, :], w5[0])
        for ki in range(1, 5):
            o5 = o5 + dot(s4a[ki:ki + 1, :], w5[ki])
        o5 = o5 + b5                                   # (1, 120)

        # F6 linear (no activation in the reference forward)
        o6 = dot(o5, w6) + b6                          # (1, 84)

        # RBF: ||x - w_p||^2 = ||x||^2 + ||w_p||^2 - 2 x.w_p   -> (1, 10)
        xx = jnp.sum(o6 * o6, axis=-1, keepdims=True)  # (1, 1)
        rows.append(xx + rbfsq - 2.0 * dot(o6, rbft))

    o_ref[...] = jnp.concatenate(rows, axis=0)         # (bb, 10)


def _const_index_map(ndim):
    return lambda b: (0,) * ndim


def lenet_forward(packed, x, block_b=8):
    # x: (B, 1, 32, 32) float32, NCHW
    B = x.shape[0]
    x2 = x.reshape(B, 32, 32).astype(jnp.float32)      # C_in == 1

    # Batch blocking: small batches run in a single block; large batches are
    # split into blocks of 8 (multiple of 8 keeps the output BlockSpec legal).
    bb = B if B <= block_b else block_b
    n_blocks = -(-B // bb)
    B_pad = n_blocks * bb
    if B_pad != B:
        x2 = jnp.concatenate(
            [x2, jnp.zeros((B_pad - B, 32, 32), jnp.float32)], axis=0)

    order = ['w1k', 'b1', 'ph2', 'pw2', 's2s', 's2bv', 'w3k', 'b3',
             'ph4', 'pw4', 's4s', 's4bv', 'w5k', 'b5', 'w6t', 'b6',
             'rbft', 'rbfsq']
    weights = [packed[k] for k in order]

    in_specs = [pl.BlockSpec((bb, 32, 32), lambda i: (i, 0, 0))]
    in_specs += [pl.BlockSpec(tuple(w.shape), _const_index_map(w.ndim))
                 for w in weights]

    out = pl.pallas_call(
        functools.partial(_lenet_kernel, bb=bb),
        grid=(n_blocks,),
        out_shape=jax.ShapeDtypeStruct((B_pad, 10), jnp.float32),
        in_specs=in_specs,
        out_specs=pl.BlockSpec((bb, 10), lambda i: (i, 0)),
        compiler_params=pltpu.CompilerParams(
            dimension_semantics=("parallel",)),
    )(x2, *weights)
    return out[:B]


# --------------------------- parameter packing -------------------------------

def _toeplitz_slabs(w, w_in, w_out):
    """Pack (C_out, C_in, 5, 5) conv weights into 5 Toeplitz matmul slabs.

    slab[ki, ci*w_in + (j + kj), co*w_out + j] = w[co, ci, ki, kj]
    so that  out[i, co*w_out + j] = sum_ki (x_slab[i+ki, :] @ slab[ki])[co*w_out+j]
    reproduces the 'valid' cross-correlation computed by torch.nn.Conv2d.
    """
    c_out, c_in, k, _ = w.shape
    slabs = np.zeros((k, c_in * w_in, c_out * w_out), np.float32)
    for ki in range(k):
        for co in range(c_out):
            for ci in range(c_in):
                for j in range(w_out):
                    for kj in range(k):
                        slabs[ki, ci * w_in + j + kj, co * w_out + j] = \
                            w[co, ci, ki, kj]
    return slabs


def _pool_rows(h):
    """(h//2, h): left-multiply sums row pairs (2k, 2k+1)."""
    m = np.zeros((h // 2, h), np.float32)
    for kk in range(h // 2):
        m[kk, 2 * kk] = 1.0
        m[kk, 2 * kk + 1] = 1.0
    return m


def _pool_cols_block(c, w):
    """(c*w, c*(w//2)): block-diagonal right-multiply, sums col pairs per channel."""
    m = np.zeros((c * w, c * (w // 2)), np.float32)
    for ch in range(c):
        for j in range(w // 2):
            m[ch * w + 2 * j, ch * (w // 2) + j] = 1.0
            m[ch * w + 2 * j + 1, ch * (w // 2) + j] = 1.0
    return m


def pack_params(p):
    """One-time conversion of raw LeNet parameters into kernel-ready slabs."""
    f32 = np.float32
    w1 = np.asarray(p['C1_w'], f32); b1 = np.asarray(p['C1_b'], f32)
    w3 = np.asarray(p['C3_w'], f32); b3 = np.asarray(p['C3_b'], f32)
    w5 = np.asarray(p['C5_w'], f32); b5 = np.asarray(p['C5_b'], f32)
    w6 = np.asarray(p['F6_w'], f32); b6 = np.asarray(p['F6_b'], f32)
    s2w = np.asarray(p['S2_w'], f32); s2b = np.asarray(p['S2_b'], f32)
    s4w = np.asarray(p['S4_w'], f32); s4b = np.asarray(p['S4_b'], f32)
    rbf = np.asarray(p['RBF_w'], f32)                      # (10, 84)

    packed = {
        'w1k': _toeplitz_slabs(w1, 32, 28),                # (5, 32, 168)
        'b1': np.repeat(b1, 28)[None, :],                  # (1, 168)
        'ph2': _pool_rows(28),                             # (14, 28)
        'pw2': _pool_cols_block(6, 28),                    # (168, 84)
        's2s': np.repeat(s2w, 14)[None, :],                # (1, 84)
        's2bv': np.repeat(s2b, 14)[None, :],               # (1, 84)
        'w3k': _toeplitz_slabs(w3, 14, 10),                # (5, 84, 160)
        'b3': np.repeat(b3, 10)[None, :],                  # (1, 160)
        'ph4': _pool_rows(10),                             # (5, 10)
        'pw4': _pool_cols_block(16, 10),                   # (160, 80)
        's4s': np.repeat(s4w, 5)[None, :],                 # (1, 80)
        's4bv': np.repeat(s4b, 5)[None, :],                # (1, 80)
        'w5k': _toeplitz_slabs(w5, 5, 1),                  # (5, 80, 120)
        'b5': b5[None, :],                                 # (1, 120)
        'w6t': np.ascontiguousarray(w6.T),                 # (120, 84)
        'b6': b6[None, :],                                 # (1, 84)
        'rbft': np.ascontiguousarray(rbf.T),               # (84, 10)
        'rbfsq': np.sum(rbf * rbf, axis=1)[None, :],       # (1, 10)
    }
    return {k: jnp.asarray(v, jnp.float32) for k, v in packed.items()}


# --------------------------- raw parameter init ------------------------------

C3_INPUTS = [[0, 1, 2], [1, 2, 3], [2, 3, 4], [3, 4, 5], [4, 5, 0], [5, 0, 1],
             [0, 1, 2, 3], [1, 2, 3, 4], [2, 3, 4, 5], [3, 4, 5, 0],
             [4, 5, 0, 1], [5, 0, 1, 2], [0, 1, 3, 4], [1, 2, 4, 5],
             [2, 3, 5, 0], [0, 1, 2, 3, 4, 5]]

# 10 digit prototypes, 12 rows x 7 cols, '1' -> +1, '0' -> -1 (RBFUnit table)
_DIGIT_BITMAPS = [
 ["0111110","0000000","0011100","0110110","1100011","1100011","1100011","1100011","0110110","0011100","0000000","0000000"],
 ["0001100","0011100","0111100","0001100","0001100","0001100","0001100","0001100","0001100","0111111","0000000","0000000"],
 ["0111110","0000000","0111110","1100011","1000011","0000110","0011100","0110000","1100000","1111111","0000000","0000000"],
 ["1111111","0000011","0000110","0001100","0011110","0000011","0000011","0000011","1100011","0111110","0000000","0000000"],
 ["0111110","0000000","0000000","0110011","0110011","1110011","1100011","1100011","1100111","0111111","0000011","0000011"],
 ["0111110","0000000","1111111","1100000","1100000","0111100","0011110","0000011","1100011","0111110","0000000","0000000"],
 ["0011110","0110000","1100000","1100000","1111110","1110011","1100011","1100011","1110011","0111110","0000000","0000000"],
 ["1111111","0000011","0000011","0000110","0001100","0001100","0011000","0011000","0011000","0011000","0000000","0000000"],
 ["0111110","1100011","1100011","1100011","0111110","1100011","1100011","1100011","1100011","0111110","0000000","0000000"],
 ["0111110","1100111","1100011","1100111","1100111","0111111","0000011","0000011","0000110","0111100","0000000","0000000"],
]


def rbf_prototypes():
    rows = []
    for digit in _DIGIT_BITMAPS:
        rows.append([1.0 if c == "1" else -1.0 for row in digit for c in row])
    return jnp.asarray(rows, dtype=jnp.float32)      # (10, 84)


def _uniform(key, shape, scale=0.192, shift=-0.096):
    return jax.random.uniform(key, shape, jnp.float32) * scale + shift


def init_params(key):
    keys = iter(jax.random.split(key, 48))
    nxt = lambda: next(keys)
    p = {}
    p['C1_w'] = _uniform(nxt(), (6, 1, 5, 5))
    p['C1_b'] = _uniform(nxt(), (6,))
    p['S2_w'] = jax.random.uniform(nxt(), (6,), jnp.float32) * 1.2 - 0.6
    p['S2_b'] = jnp.zeros((6,), jnp.float32)
    # properC3: 16 convs over channel subsets -> zero-padded dense (16,6,5,5)
    c3_w = jnp.zeros((16, 6, 5, 5), jnp.float32)
    c3_b = jnp.zeros((16,), jnp.float32)
    for i, lst in enumerate(C3_INPUTS):
        wi = _uniform(nxt(), (len(lst), 5, 5))
        bi = _uniform(nxt(), (1,))
        c3_b = c3_b.at[i].set(bi[0])
        for pos, f in enumerate(lst):
            c3_w = c3_w.at[i, f].set(wi[pos])
    p['C3_w'] = c3_w
    p['C3_b'] = c3_b
    p['S4_w'] = jax.random.uniform(nxt(), (16,), jnp.float32) * 1.2 - 0.6
    p['S4_b'] = jnp.zeros((16,), jnp.float32)
    p['C5_w'] = _uniform(nxt(), (120, 16, 5, 5))
    p['C5_b'] = _uniform(nxt(), (120,))
    p['F6_w'] = _uniform(nxt(), (84, 120))
    p['F6_b'] = _uniform(nxt(), (84,))
    p['RBF_w'] = rbf_prototypes()
    return p


# --------------------------- plain-JAX reference -----------------------------

def reference_forward(raw, x):
    """Direct transcription of the PyTorch leNet forward (XLA ops only)."""
    hi = jax.lax.Precision.HIGHEST
    act = lambda v: 1.7159 * jnp.tanh((2.0 / 3.0) * v)

    def conv(v, w, b):
        o = jax.lax.conv_general_dilated(
            v, w, window_strides=(1, 1), padding='VALID',
            dimension_numbers=('NCHW', 'OIHW', 'NCHW'), precision=hi)
        return o + b.reshape(1, -1, 1, 1)

    def subsample(v, w, b):
        B, C, H, W = v.shape
        s = v.reshape(B, C, H // 2, 2, W // 2, 2).sum(axis=(3, 5))  # 4*avgpool
        return s * w.reshape(1, C, 1, 1) + b.reshape(1, C, 1, 1)

    v = conv(x, raw['C1_w'], raw['C1_b'])
    v = act(subsample(v, raw['S2_w'], raw['S2_b']))
    v = conv(v, raw['C3_w'], raw['C3_b'])
    v = act(subsample(v, raw['S4_w'], raw['S4_b']))
    v = conv(v, raw['C5_w'], raw['C5_b'])
    v = v.reshape(v.shape[0], 120)
    v = jnp.dot(v, raw['F6_w'].T, precision=hi) + raw['F6_b']
    d = v[:, None, :] - raw['RBF_w'][None, :, :]
    return jnp.sum(d * d, axis=-1)


# ------------------------------------ main -----------------------------------

if __name__ == "__main__":
    key = jax.random.PRNGKey(0)
    pkey, xkey = jax.random.split(key)
    raw = init_params(pkey)
    packed = pack_params(raw)                                  # one-time pack
    x = jax.random.uniform(xkey, (2, 1, 32, 32), jnp.float32)  # NCHW

    out = jax.jit(lenet_forward)(packed, x)
    out = jax.block_until_ready(out)
    assert out.shape == (2, 10) and out.dtype == jnp.float32

    # numerical sanity check against the plain-JAX transcription of the model
    ref = jax.jit(reference_forward)(raw, x)
    ref = jax.block_until_ready(ref)
    np.testing.assert_allclose(np.asarray(out), np.asarray(ref),
                               rtol=2e-2, atol=1e-1)

    print("KERNEL_OK")
</pallas_src>

<mosaic_0001>
module attributes {stable_mosaic.version = 11 : i64} {
  func.func @_lenet_kernel(%arg0: i32, %arg1: memref<2x32x32xf32, #tpu.memory_space<vmem>>, %arg2: memref<5x32x168xf32, #tpu.memory_space<vmem>>, %arg3: memref<1x168xf32, #tpu.memory_space<vmem>>, %arg4: memref<14x28xf32, #tpu.memory_space<vmem>>, %arg5: memref<168x84xf32, #tpu.memory_space<vmem>>, %arg6: memref<1x84xf32, #tpu.memory_space<vmem>>, %arg7: memref<1x84xf32, #tpu.memory_space<vmem>>, %arg8: memref<5x84x160xf32, #tpu.memory_space<vmem>>, %arg9: memref<1x160xf32, #tpu.memory_space<vmem>>, %arg10: memref<5x10xf32, #tpu.memory_space<vmem>>, %arg11: memref<160x80xf32, #tpu.memory_space<vmem>>, %arg12: memref<1x80xf32, #tpu.memory_space<vmem>>, %arg13: memref<1x80xf32, #tpu.memory_space<vmem>>, %arg14: memref<5x80x120xf32, #tpu.memory_space<vmem>>, %arg15: memref<1x120xf32, #tpu.memory_space<vmem>>, %arg16: memref<120x84xf32, #tpu.memory_space<vmem>>, %arg17: memref<1x84xf32, #tpu.memory_space<vmem>>, %arg18: memref<84x10xf32, #tpu.memory_space<vmem>>, %arg19: memref<1x10xf32, #tpu.memory_space<vmem>>, %arg20: memref<2x10xf32, #tpu.memory_space<vmem>>) attributes {dimension_semantics = [#tpu.dimension_semantics<parallel>], iteration_bounds = array<i64: 1>, scalar_prefetch = 0 : i64, scratch_operands = 0 : i64, tpu.core_type = #tpu.core_type<tc>, window_params = [{transform_indices = @transform_0, window_bounds = array<i64: 2, 32, 32>}, {pipeline_mode = #tpu.pipeline_mode<synchronous>, transform_indices = @transform_1, window_bounds = array<i64: 5, 32, 168>}, {pipeline_mode = #tpu.pipeline_mode<synchronous>, transform_indices = @transform_2, window_bounds = array<i64: 1, 168>}, {pipeline_mode = #tpu.pipeline_mode<synchronous>, transform_indices = @transform_3, window_bounds = array<i64: 14, 28>}, {pipeline_mode = #tpu.pipeline_mode<synchronous>, transform_indices = @transform_4, window_bounds = array<i64: 168, 84>}, {pipeline_mode = #tpu.pipeline_mode<synchronous>, transform_indices = @transform_5, window_bounds = array<i64: 1, 84>}, {pipeline_mode = #tpu.pipeline_mode<synchronous>, transform_indices = @transform_6, window_bounds = array<i64: 1, 84>}, {pipeline_mode = #tpu.pipeline_mode<synchronous>, transform_indices = @transform_7, window_bounds = array<i64: 5, 84, 160>}, {pipeline_mode = #tpu.pipeline_mode<synchronous>, transform_indices = @transform_8, window_bounds = array<i64: 1, 160>}, {pipeline_mode = #tpu.pipeline_mode<synchronous>, transform_indices = @transform_9, window_bounds = array<i64: 5, 10>}, {pipeline_mode = #tpu.pipeline_mode<synchronous>, transform_indices = @transform_10, window_bounds = array<i64: 160, 80>}, {pipeline_mode = #tpu.pipeline_mode<synchronous>, transform_indices = @transform_11, window_bounds = array<i64: 1, 80>}, {pipeline_mode = #tpu.pipeline_mode<synchronous>, transform_indices = @transform_12, window_bounds = array<i64: 1, 80>}, {pipeline_mode = #tpu.pipeline_mode<synchronous>, transform_indices = @transform_13, window_bounds = array<i64: 5, 80, 120>}, {pipeline_mode = #tpu.pipeline_mode<synchronous>, transform_indices = @transform_14, window_bounds = array<i64: 1, 120>}, {pipeline_mode = #tpu.pipeline_mode<synchronous>, transform_indices = @transform_15, window_bounds = array<i64: 120, 84>}, {pipeline_mode = #tpu.pipeline_mode<synchronous>, transform_indices = @transform_16, window_bounds = array<i64: 1, 84>}, {pipeline_mode = #tpu.pipeline_mode<synchronous>, transform_indices = @transform_17, window_bounds = array<i64: 84, 10>}, {pipeline_mode = #tpu.pipeline_mode<synchronous>, transform_indices = @transform_18, window_bounds = array<i64: 1, 10>}, {transform_indices = @transform_19, window_bounds = array<i64: 2, 10>}]} {
    %c0 = arith.constant 0 : index
    %c0_0 = arith.constant 0 : index
    %c0_1 = arith.constant 0 : index
    %0 = vector.load %arg2[%c0, %c0_0, %c0_1] : memref<5x32x168xf32, #tpu.memory_space<vmem>>, vector<1x32x168xf32>
    %1 = vector.shape_cast %0 : vector<1x32x168xf32> to vector<32x168xf32>
    %c1 = arith.constant 1 : index
    %c0_2 = arith.constant 0 : index
    %c0_3 = arith.constant 0 : index
    %2 = vector.load %arg2[%c1, %c0_2, %c0_3] : memref<5x32x168xf32, #tpu.memory_space<vmem>>, vector<1x32x168xf32>
    %3 = vector.shape_cast %2 : vector<1x32x168xf32> to vector<32x168xf32>
    %c2 = arith.constant 2 : index
    %c0_4 = arith.constant 0 : index
    %c0_5 = arith.constant 0 : index
    %4 = vector.load %arg2[%c2, %c0_4, %c0_5] : memref<5x32x168xf32, #tpu.memory_space<vmem>>, vector<1x32x168xf32>
    %5 = vector.shape_cast %4 : vector<1x32x168xf32> to vector<32x168xf32>
    %c3 = arith.constant 3 : index
    %c0_6 = arith.constant 0 : index
    %c0_7 = arith.constant 0 : index
    %6 = vector.load %arg2[%c3, %c0_6, %c0_7] : memref<5x32x168xf32, #tpu.memory_space<vmem>>, vector<1x32x168xf32>
    %7 = vector.shape_cast %6 : vector<1x32x168xf32> to vector<32x168xf32>
    %c4 = arith.constant 4 : index
    %c0_8 = arith.constant 0 : index
    %c0_9 = arith.constant 0 : index
    %8 = vector.load %arg2[%c4, %c0_8, %c0_9] : memref<5x32x168xf32, #tpu.memory_space<vmem>>, vector<1x32x168xf32>
    %9 = vector.shape_cast %8 : vector<1x32x168xf32> to vector<32x168xf32>
    %c0_10 = arith.constant 0 : index
    %c0_11 = arith.constant 0 : index
    %c0_12 = arith.constant 0 : index
    %10 = vector.load %arg8[%c0_10, %c0_11, %c0_12] : memref<5x84x160xf32, #tpu.memory_space<vmem>>, vector<1x84x160xf32>
    %11 = vector.shape_cast %10 : vector<1x84x160xf32> to vector<84x160xf32>
    %c1_13 = arith.constant 1 : index
    %c0_14 = arith.constant 0 : index
    %c0_15 = arith.constant 0 : index
    %12 = vector.load %arg8[%c1_13, %c0_14, %c0_15] : memref<5x84x160xf32, #tpu.memory_space<vmem>>, vector<1x84x160xf32>
    %13 = vector.shape_cast %12 : vector<1x84x160xf32> to vector<84x160xf32>
    %c2_16 = arith.constant 2 : index
    %c0_17 = arith.constant 0 : index
    %c0_18 = arith.constant 0 : index
    %14 = vector.load %arg8[%c2_16, %c0_17, %c0_18] : memref<5x84x160xf32, #tpu.memory_space<vmem>>, vector<1x84x160xf32>
    %15 = vector.shape_cast %14 : vector<1x84x160xf32> to vector<84x160xf32>
    %c3_19 = arith.constant 3 : index
    %c0_20 = arith.constant 0 : index
    %c0_21 = arith.constant 0 : index
    %16 = vector.load %arg8[%c3_19, %c0_20, %c0_21] : memref<5x84x160xf32, #tpu.memory_space<vmem>>, vector<1x84x160xf32>
    %17 = vector.shape_cast %16 : vector<1x84x160xf32> to vector<84x160xf32>
    %c4_22 = arith.constant 4 : index
    %c0_23 = arith.constant 0 : index
    %c0_24 = arith.constant 0 : index
    %18 = vector.load %arg8[%c4_22, %c0_23, %c0_24] : memref<5x84x160xf32, #tpu.memory_space<vmem>>, vector<1x84x160xf32>
    %19 = vector.shape_cast %18 : vector<1x84x160xf32> to vector<84x160xf32>
    %c0_25 = arith.constant 0 : index
    %c0_26 = arith.constant 0 : index
    %c0_27 = arith.constant 0 : index
    %20 = vector.load %arg14[%c0_25, %c0_26, %c0_27] : memref<5x80x120xf32, #tpu.memory_space<vmem>>, vector<1x80x120xf32>
    %21 = vector.shape_cast %20 : vector<1x80x120xf32> to vector<80x120xf32>
    %c1_28 = arith.constant 1 : index
    %c0_29 = arith.constant 0 : index
    %c0_30 = arith.constant 0 : index
    %22 = vector.load %arg14[%c1_28, %c0_29, %c0_30] : memref<5x80x120xf32, #tpu.memory_space<vmem>>, vector<1x80x120xf32>
    %23 = vector.shape_cast %22 : vector<1x80x120xf32> to vector<80x120xf32>
    %c2_31 = arith.constant 2 : index
    %c0_32 = arith.constant 0 : index
    %c0_33 = arith.constant 0 : index
    %24 = vector.load %arg14[%c2_31, %c0_32, %c0_33] : memref<5x80x120xf32, #tpu.memory_space<vmem>>, vector<1x80x120xf32>
    %25 = vector.shape_cast %24 : vector<1x80x120xf32> to vector<80x120xf32>
    %c3_34 = arith.constant 3 : index
    %c0_35 = arith.constant 0 : index
    %c0_36 = arith.constant 0 : index
    %26 = vector.load %arg14[%c3_34, %c0_35, %c0_36] : memref<5x80x120xf32, #tpu.memory_space<vmem>>, vector<1x80x120xf32>
    %27 = vector.shape_cast %26 : vector<1x80x120xf32> to vector<80x120xf32>
    %c4_37 = arith.constant 4 : index
    %c0_38 = arith.constant 0 : index
    %c0_39 = arith.constant 0 : index
    %28 = vector.load %arg14[%c4_37, %c0_38, %c0_39] : memref<5x80x120xf32, #tpu.memory_space<vmem>>, vector<1x80x120xf32>
    %29 = vector.shape_cast %28 : vector<1x80x120xf32> to vector<80x120xf32>
    %c0_40 = arith.constant 0 : index
    %c0_41 = arith.constant 0 : index
    %30 = vector.load %arg3[%c0_40, %c0_41] : memref<1x168xf32, #tpu.memory_space<vmem>>, vector<1x168xf32>
    %c0_42 = arith.constant 0 : index
    %c0_43 = arith.constant 0 : index
    %31 = vector.load %arg9[%c0_42, %c0_43] : memref<1x160xf32, #tpu.memory_space<vmem>>, vector<1x160xf32>
    %c0_44 = arith.constant 0 : index
    %c0_45 = arith.constant 0 : index
    %32 = vector.load %arg15[%c0_44, %c0_45] : memref<1x120xf32, #tpu.memory_space<vmem>>, vector<1x120xf32>
    %c0_46 = arith.constant 0 : index
    %c0_47 = arith.constant 0 : index
    %33 = vector.load %arg4[%c0_46, %c0_47] : memref<14x28xf32, #tpu.memory_space<vmem>>, vector<14x28xf32>
    %c0_48 = arith.constant 0 : index
    %c0_49 = arith.constant 0 : index
    %34 = vector.load %arg5[%c0_48, %c0_49] : memref<168x84xf32, #tpu.memory_space<vmem>>, vector<168x84xf32>
    %c0_50 = arith.constant 0 : index
    %c0_51 = arith.constant 0 : index
    %35 = vector.load %arg10[%c0_50, %c0_51] : memref<5x10xf32, #tpu.memory_space<vmem>>, vector<5x10xf32>
    %c0_52 = arith.constant 0 : index
    %c0_53 = arith.constant 0 : index
    %36 = vector.load %arg11[%c0_52, %c0_53] : memref<160x80xf32, #tpu.memory_space<vmem>>, vector<160x80xf32>
    %c0_54 = arith.constant 0 : index
    %c0_55 = arith.constant 0 : index
    %37 = vector.load %arg6[%c0_54, %c0_55] : memref<1x84xf32, #tpu.memory_space<vmem>>, vector<1x84xf32>
    %c0_56 = arith.constant 0 : index
    %c0_57 = arith.constant 0 : index
    %38 = vector.load %arg7[%c0_56, %c0_57] : memref<1x84xf32, #tpu.memory_space<vmem>>, vector<1x84xf32>
    %c0_58 = arith.constant 0 : index
    %c0_59 = arith.constant 0 : index
    %39 = vector.load %arg12[%c0_58, %c0_59] : memref<1x80xf32, #tpu.memory_space<vmem>>, vector<1x80xf32>
    %c0_60 = arith.constant 0 : index
    %c0_61 = arith.constant 0 : index
    %40 = vector.load %arg13[%c0_60, %c0_61] : memref<1x80xf32, #tpu.memory_space<vmem>>, vector<1x80xf32>
    %c0_62 = arith.constant 0 : index
    %c0_63 = arith.constant 0 : index
    %41 = vector.load %arg16[%c0_62, %c0_63] : memref<120x84xf32, #tpu.memory_space<vmem>>, vector<120x84xf32>
    %c0_64 = arith.constant 0 : index
    %c0_65 = arith.constant 0 : index
    %42 = vector.load %arg17[%c0_64, %c0_65] : memref<1x84xf32, #tpu.memory_space<vmem>>, vector<1x84xf32>
    %c0_66 = arith.constant 0 : index
    %c0_67 = arith.constant 0 : index
    %43 = vector.load %arg18[%c0_66, %c0_67] : memref<84x10xf32, #tpu.memory_space<vmem>>, vector<84x10xf32>
    %c0_68 = arith.constant 0 : index
    %c0_69 = arith.constant 0 : index
    %44 = vector.load %arg19[%c0_68, %c0_69] : memref<1x10xf32, #tpu.memory_space<vmem>>, vector<1x10xf32>
    %c0_70 = arith.constant 0 : index
    %c0_71 = arith.constant 0 : index
    %c0_72 = arith.constant 0 : index
    %45 = vector.load %arg1[%c0_70, %c0_71, %c0_72] : memref<2x32x32xf32, #tpu.memory_space<vmem>>, vector<1x32x32xf32>
    %46 = vector.shape_cast %45 : vector<1x32x32xf32> to vector<32x32xf32>
    %47 = vector.extract_strided_slice %46 {offsets = [0, 0], sizes = [28, 32], strides = [1, 1]} : vector<32x32xf32> to vector<28x32xf32>
    %cst = arith.constant dense<0.000000e+00> : vector<28x168xf32>
    %48 = tpu.matmul %47, %1, %cst {dimension_numbers = #tpu.dot_dimension_numbers<[1], [0], [0], [1], [0, 0, 1, 1], [], []>} : vector<28x32xf32>, vector<32x168xf32>, vector<28x168xf32> -> vector<28x168xf32>
    %49 = vector.extract_strided_slice %46 {offsets = [1, 0], sizes = [28, 32], strides = [1, 1]} : vector<32x32xf32> to vector<28x32xf32>
    %cst_73 = arith.constant dense<0.000000e+00> : vector<28x168xf32>
    %50 = tpu.matmul %49, %3, %cst_73 {dimension_numbers = #tpu.dot_dimension_numbers<[1], [0], [0], [1], [0, 0, 1, 1], [], []>} : vector<28x32xf32>, vector<32x168xf32>, vector<28x168xf32> -> vector<28x168xf32>
    %51 = arith.addf %48, %50 : vector<28x168xf32>
    %52 = vector.extract_strided_slice %46 {offsets = [2, 0], sizes = [28, 32], strides = [1, 1]} : vector<32x32xf32> to vector<28x32xf32>
    %cst_74 = arith.constant dense<0.000000e+00> : vector<28x168xf32>
    %53 = tpu.matmul %52, %5, %cst_74 {dimension_numbers = #tpu.dot_dimension_numbers<[1], [0], [0], [1], [0, 0, 1, 1], [], []>} : vector<28x32xf32>, vector<32x168xf32>, vector<28x168xf32> -> vector<28x168xf32>
    %54 = arith.addf %51, %53 : vector<28x168xf32>
    %55 = vector.extract_strided_slice %46 {offsets = [3, 0], sizes = [28, 32], strides = [1, 1]} : vector<32x32xf32> to vector<28x32xf32>
    %cst_75 = arith.constant dense<0.000000e+00> : vector<28x168xf32>
    %56 = tpu.matmul %55, %7, %cst_75 {dimension_numbers = #tpu.dot_dimension_numbers<[1], [0], [0], [1], [0, 0, 1, 1], [], []>} : vector<28x32xf32>, vector<32x168xf32>, vector<28x168xf32> -> vector<28x168xf32>
    %57 = arith.addf %54, %56 : vector<28x168xf32>
    %58 = vector.extract_strided_slice %46 {offsets = [4, 0], sizes = [28, 32], strides = [1, 1]} : vector<32x32xf32> to vector<28x32xf32>
    %cst_76 = arith.constant dense<0.000000e+00> : vector<28x168xf32>
    %59 = tpu.matmul %58, %9, %cst_76 {dimension_numbers = #tpu.dot_dimension_numbers<[1], [0], [0], [1], [0, 0, 1, 1], [], []>} : vector<28x32xf32>, vector<32x168xf32>, vector<28x168xf32> -> vector<28x168xf32>
    %60 = arith.addf %57, %59 : vector<28x168xf32>
    %61 = vector.broadcast %30 : vector<1x168xf32> to vector<28x168xf32>
    %62 = arith.addf %60, %61 : vector<28x168xf32>
    %cst_77 = arith.constant dense<0.000000e+00> : vector<14x168xf32>
    %63 = tpu.matmul %33, %62, %cst_77 {dimension_numbers = #tpu.dot_dimension_numbers<[1], [0], [0], [1], [0, 0, 1, 1], [], []>} : vector<14x28xf32>, vector<28x168xf32>, vector<14x168xf32> -> vector<14x168xf32>
    %cst_78 = arith.constant dense<0.000000e+00> : vector<14x84xf32>
    %64 = tpu.matmul %63, %34, %cst_78 {dimension_numbers = #tpu.dot_dimension_numbers<[1], [0], [0], [1], [0, 0, 1, 1], [], []>} : vector<14x168xf32>, vector<168x84xf32>, vector<14x84xf32> -> vector<14x84xf32>
    %65 = vector.broadcast %37 : vector<1x84xf32> to vector<14x84xf32>
    %66 = arith.mulf %64, %65 : vector<14x84xf32>
    %67 = vector.broadcast %38 : vector<1x84xf32> to vector<14x84xf32>
    %68 = arith.addf %66, %67 : vector<14x84xf32>
    %cst_79 = arith.constant 0.666666686 : f32
    %69 = vector.broadcast %cst_79 : f32 to vector<14x84xf32>
    %70 = arith.mulf %69, %68 : vector<14x84xf32>
    %71 = math.tanh %70 : vector<14x84xf32>
    %cst_80 = arith.constant 1.715900e+00 : f32
    %72 = vector.broadcast %cst_80 : f32 to vector<14x84xf32>
    %73 = arith.mulf %72, %71 : vector<14x84xf32>
    %74 = vector.extract_strided_slice %73 {offsets = [0, 0], sizes = [10, 84], strides = [1, 1]} : vector<14x84xf32> to vector<10x84xf32>
    %cst_81 = arith.constant dense<0.000000e+00> : vector<10x160xf32>
    %75 = tpu.matmul %74, %11, %cst_81 {dimension_numbers = #tpu.dot_dimension_numbers<[1], [0], [0], [1], [0, 0, 1, 1], [], []>} : vector<10x84xf32>, vector<84x160xf32>, vector<10x160xf32> -> vector<10x160xf32>
    %76 = vector.extract_strided_slice %73 {offsets = [1, 0], sizes = [10, 84], strides = [1, 1]} : vector<14x84xf32> to vector<10x84xf32>
    %cst_82 = arith.constant dense<0.000000e+00> : vector<10x160xf32>
    %77 = tpu.matmul %76, %13, %cst_82 {dimension_numbers = #tpu.dot_dimension_numbers<[1], [0], [0], [1], [0, 0, 1, 1], [], []>} : vector<10x84xf32>, vector<84x160xf32>, vector<10x160xf32> -> vector<10x160xf32>
    %78 = arith.addf %75, %77 : vector<10x160xf32>
    %79 = vector.extract_strided_slice %73 {offsets = [2, 0], sizes = [10, 84], strides = [1, 1]} : vector<14x84xf32> to vector<10x84xf32>
    %cst_83 = arith.constant dense<0.000000e+00> : vector<10x160xf32>
    %80 = tpu.matmul %79, %15, %cst_83 {dimension_numbers = #tpu.dot_dimension_numbers<[1], [0], [0], [1], [0, 0, 1, 1], [], []>} : vector<10x84xf32>, vector<84x160xf32>, vector<10x160xf32> -> vector<10x160xf32>
    %81 = arith.addf %78, %80 : vector<10x160xf32>
    %82 = vector.extract_strided_slice %73 {offsets = [3, 0], sizes = [10, 84], strides = [1, 1]} : vector<14x84xf32> to vector<10x84xf32>
    %cst_84 = arith.constant dense<0.000000e+00> : vector<10x160xf32>
    %83 = tpu.matmul %82, %17, %cst_84 {dimension_numbers = #tpu.dot_dimension_numbers<[1], [0], [0], [1], [0, 0, 1, 1], [], []>} : vector<10x84xf32>, vector<84x160xf32>, vector<10x160xf32> -> vector<10x160xf32>
    %84 = arith.addf %81, %83 : vector<10x160xf32>
    %85 = vector.extract_strided_slice %73 {offsets = [4, 0], sizes = [10, 84], strides = [1, 1]} : vector<14x84xf32> to vector<10x84xf32>
    %cst_85 = arith.constant dense<0.000000e+00> : vector<10x160xf32>
    %86 = tpu.matmul %85, %19, %cst_85 {dimension_numbers = #tpu.dot_dimension_numbers<[1], [0], [0], [1], [0, 0, 1, 1], [], []>} : vector<10x84xf32>, vector<84x160xf32>, vector<10x160xf32> -> vector<10x160xf32>
    %87 = arith.addf %84, %86 : vector<10x160xf32>
    %88 = vector.broadcast %31 : vector<1x160xf32> to vector<10x160xf32>
    %89 = arith.addf %87, %88 : vector<10x160xf32>
    %cst_86 = arith.constant dense<0.000000e+00> : vector<5x160xf32>
    %90 = tpu.matmul %35, %89, %cst_86 {dimension_numbers = #tpu.dot_dimension_numbers<[1], [0], [0], [1], [0, 0, 1, 1], [], []>} : vector<5x10xf32>, vector<10x160xf32>, vector<5x160xf32> -> vector<5x160xf32>
    %cst_87 = arith.constant dense<0.000000e+00> : vector<5x80xf32>
    %91 = tpu.matmul %90, %36, %cst_87 {dimension_numbers = #tpu.dot_dimension_numbers<[1], [0], [0], [1], [0, 0, 1, 1], [], []>} : vector<5x160xf32>, vector<160x80xf32>, vector<5x80xf32> -> vector<5x80xf32>
    %92 = vector.broadcast %39 : vector<1x80xf32> to vector<5x80xf32>
    %93 = arith.mulf %91, %92 : vector<5x80xf32>
    %94 = vector.broadcast %40 : vector<1x80xf32> to vector<5x80xf32>
    %95 = arith.addf %93, %94 : vector<5x80xf32>
    %cst_88 = arith.constant 0.666666686 : f32
    %96 = vector.broadcast %cst_88 : f32 to vector<5x80xf32>
    %97 = arith.mulf %96, %95 : vector<5x80xf32>
    %98 = math.tanh %97 : vector<5x80xf32>
    %cst_89 = arith.constant 1.715900e+00 : f32
    %99 = vector.broadcast %cst_89 : f32 to vector<5x80xf32>
    %100 = arith.mulf %99, %98 : vector<5x80xf32>
    %101 = vector.extract_strided_slice %100 {offsets = [0, 0], sizes = [1, 80], strides = [1, 1]} : vector<5x80xf32> to vector<1x80xf32>
    %cst_90 = arith.constant dense<0.000000e+00> : vector<1x120xf32>
    %102 = tpu.matmul %101, %21, %cst_90 {dimension_numbers = #tpu.dot_dimension_numbers<[1], [0], [0], [1], [0, 0, 1, 1], [], []>} : vector<1x80xf32>, vector<80x120xf32>, vector<1x120xf32> -> vector<1x120xf32>
    %103 = vector.extract_strided_slice %100 {offsets = [1, 0], sizes = [1, 80], strides = [1, 1]} : vector<5x80xf32> to vector<1x80xf32>
    %cst_91 = arith.constant dense<0.000000e+00> : vector<1x120xf32>
    %104 = tpu.matmul %103, %23, %cst_91 {dimension_numbers = #tpu.dot_dimension_numbers<[1], [0], [0], [1], [0, 0, 1, 1], [], []>} : vector<1x80xf32>, vector<80x120xf32>, vector<1x120xf32> -> vector<1x120xf32>
    %105 = arith.addf %102, %104 : vector<1x120xf32>
    %106 = vector.extract_strided_slice %100 {offsets = [2, 0], sizes = [1, 80], strides = [1, 1]} : vector<5x80xf32> to vector<1x80xf32>
    %cst_92 = arith.constant dense<0.000000e+00> : vector<1x120xf32>
    %107 = tpu.matmul %106, %25, %cst_92 {dimension_numbers = #tpu.dot_dimension_numbers<[1], [0], [0], [1], [0, 0, 1, 1], [], []>} : vector<1x80xf32>, vector<80x120xf32>, vector<1x120xf32> -> vector<1x120xf32>
    %108 = arith.addf %105, %107 : vector<1x120xf32>
    %109 = vector.extract_strided_slice %100 {offsets = [3, 0], sizes = [1, 80], strides = [1, 1]} : vector<5x80xf32> to vector<1x80xf32>
    %cst_93 = arith.constant dense<0.000000e+00> : vector<1x120xf32>
    %110 = tpu.matmul %109, %27, %cst_93 {dimension_numbers = #tpu.dot_dimension_numbers<[1], [0], [0], [1], [0, 0, 1, 1], [], []>} : vector<1x80xf32>, vector<80x120xf32>, vector<1x120xf32> -> vector<1x120xf32>
    %111 = arith.addf %108, %110 : vector<1x120xf32>
    %112 = vector.extract_strided_slice %100 {offsets = [4, 0], sizes = [1, 80], strides = [1, 1]} : vector<5x80xf32> to vector<1x80xf32>
    %cst_94 = arith.constant dense<0.000000e+00> : vector<1x120xf32>
    %113 = tpu.matmul %112, %29, %cst_94 {dimension_numbers = #tpu.dot_dimension_numbers<[1], [0], [0], [1], [0, 0, 1, 1], [], []>} : vector<1x80xf32>, vector<80x120xf32>, vector<1x120xf32> -> vector<1x120xf32>
    %114 = arith.addf %111, %113 : vector<1x120xf32>
    %115 = arith.addf %114, %32 : vector<1x120xf32>
    %cst_95 = arith.constant dense<0.000000e+00> : vector<1x84xf32>
    %116 = tpu.matmul %115, %41, %cst_95 {dimension_numbers = #tpu.dot_dimension_numbers<[1], [0], [0], [1], [0, 0, 1, 1], [], []>} : vector<1x120xf32>, vector<120x84xf32>, vector<1x84xf32> -> vector<1x84xf32>
    %117 = arith.addf %116, %42 : vector<1x84xf32>
    %118 = arith.mulf %117, %117 : vector<1x84xf32>
    %cst_96 = arith.constant dense<0.000000e+00> : vector<1xf32>
    %119 = vector.multi_reduction <add>, %118, %cst_96 [1] : vector<1x84xf32> to vector<1xf32>
    %120 = vector.shape_cast %119 : vector<1xf32> to vector<1x1xf32>
    %121 = vector.broadcast %120 : vector<1x1xf32> to vector<1x10xf32>
    %122 = arith.addf %121, %44 : vector<1x10xf32>
    %cst_97 = arith.constant dense<0.000000e+00> : vector<1x10xf32>
    %123 = tpu.matmul %117, %43, %cst_97 {dimension_numbers = #tpu.dot_dimension_numbers<[1], [0], [0], [1], [0, 0, 1, 1], [], []>} : vector<1x84xf32>, vector<84x10xf32>, vector<1x10xf32> -> vector<1x10xf32>
    %cst_98 = arith.constant 2.000000e+00 : f32
    %124 = vector.broadcast %cst_98 : f32 to vector<1x10xf32>
    %125 = arith.mulf %124, %123 : vector<1x10xf32>
    %126 = arith.subf %122, %125 : vector<1x10xf32>
    %c1_99 = arith.constant 1 : index
    %c0_100 = arith.constant 0 : index
    %c0_101 = arith.constant 0 : index
    %127 = vector.load %arg1[%c1_99, %c0_100, %c0_101] : memref<2x32x32xf32, #tpu.memory_space<vmem>>, vector<1x32x32xf32>
    %128 = vector.shape_cast %127 : vector<1x32x32xf32> to vector<32x32xf32>
    %129 = vector.extract_strided_slice %128 {offsets = [0, 0], sizes = [28, 32], strides = [1, 1]} : vector<32x32xf32> to vector<28x32xf32>
    %cst_102 = arith.constant dense<0.000000e+00> : vector<28x168xf32>
    %130 = tpu.matmul %129, %1, %cst_102 {dimension_numbers = #tpu.dot_dimension_numbers<[1], [0], [0], [1], [0, 0, 1, 1], [], []>} : vector<28x32xf32>, vector<32x168xf32>, vector<28x168xf32> -> vector<28x168xf32>
    %131 = vector.extract_strided_slice %128 {offsets = [1, 0], sizes = [28, 32], strides = [1, 1]} : vector<32x32xf32> to vector<28x32xf32>
    %cst_103 = arith.constant dense<0.000000e+00> : vector<28x168xf32>
    %132 = tpu.matmul %131, %3, %cst_103 {dimension_numbers = #tpu.dot_dimension_numbers<[1], [0], [0], [1], [0, 0, 1, 1], [], []>} : vector<28x32xf32>, vector<32x168xf32>, vector<28x168xf32> -> vector<28x168xf32>
    %133 = arith.addf %130, %132 : vector<28x168xf32>
    %134 = vector.extract_strided_slice %128 {offsets = [2, 0], sizes = [28, 32], strides = [1, 1]} : vector<32x32xf32> to vector<28x32xf32>
    %cst_104 = arith.constant dense<0.000000e+00> : vector<28x168xf32>
    %135 = tpu.matmul %134, %5, %cst_104 {dimension_numbers = #tpu.dot_dimension_numbers<[1], [0], [0], [1], [0, 0, 1, 1], [], []>} : vector<28x32xf32>, vector<32x168xf32>, vector<28x168xf32> -> vector<28x168xf32>
    %136 = arith.addf %133, %135 : vector<28x168xf32>
    %137 = vector.extract_strided_slice %128 {offsets = [3, 0], sizes = [28, 32], strides = [1, 1]} : vector<32x32xf32> to vector<28x32xf32>
    %cst_105 = arith.constant dense<0.000000e+00> : vector<28x168xf32>
    %138 = tpu.matmul %137, %7, %cst_105 {dimension_numbers = #tpu.dot_dimension_numbers<[1], [0], [0], [1], [0, 0, 1, 1], [], []>} : vector<28x32xf32>, vector<32x168xf32>, vector<28x168xf32> -> vector<28x168xf32>
    %139 = arith.addf %136, %138 : vector<28x168xf32>
    %140 = vector.extract_strided_slice %128 {offsets = [4, 0], sizes = [28, 32], strides = [1, 1]} : vector<32x32xf32> to vector<28x32xf32>
    %cst_106 = arith.constant dense<0.000000e+00> : vector<28x168xf32>
    %141 = tpu.matmul %140, %9, %cst_106 {dimension_numbers = #tpu.dot_dimension_numbers<[1], [0], [0], [1], [0, 0, 1, 1], [], []>} : vector<28x32xf32>, vector<32x168xf32>, vector<28x168xf32> -> vector<28x168xf32>
    %142 = arith.addf %139, %141 : vector<28x168xf32>
    %143 = vector.broadcast %30 : vector<1x168xf32> to vector<28x168xf32>
    %144 = arith.addf %142, %143 : vector<28x168xf32>
    %cst_107 = arith.constant dense<0.000000e+00> : vector<14x168xf32>
    %145 = tpu.matmul %33, %144, %cst_107 {dimension_numbers = #tpu.dot_dimension_numbers<[1], [0], [0], [1], [0, 0, 1, 1], [], []>} : vector<14x28xf32>, vector<28x168xf32>, vector<14x168xf32> -> vector<14x168xf32>
    %cst_108 = arith.constant dense<0.000000e+00> : vector<14x84xf32>
    %146 = tpu.matmul %145, %34, %cst_108 {dimension_numbers = #tpu.dot_dimension_numbers<[1], [0], [0], [1], [0, 0, 1, 1], [], []>} : vector<14x168xf32>, vector<168x84xf32>, vector<14x84xf32> -> vector<14x84xf32>
    %147 = vector.broadcast %37 : vector<1x84xf32> to vector<14x84xf32>
    %148 = arith.mulf %146, %147 : vector<14x84xf32>
    %149 = vector.broadcast %38 : vector<1x84xf32> to vector<14x84xf32>
    %150 = arith.addf %148, %149 : vector<14x84xf32>
    %cst_109 = arith.constant 0.666666686 : f32
    %151 = vector.broadcast %cst_109 : f32 to vector<14x84xf32>
    %152 = arith.mulf %151, %150 : vector<14x84xf32>
    %153 = math.tanh %152 : vector<14x84xf32>
    %cst_110 = arith.constant 1.715900e+00 : f32
    %154 = vector.broadcast %cst_110 : f32 to vector<14x84xf32>
    %155 = arith.mulf %154, %153 : vector<14x84xf32>
    %156 = vector.extract_strided_slice %155 {offsets = [0, 0], sizes = [10, 84], strides = [1, 1]} : vector<14x84xf32> to vector<10x84xf32>
    %cst_111 = arith.constant dense<0.000000e+00> : vector<10x160xf32>
    %157 = tpu.matmul %156, %11, %cst_111 {dimension_numbers = #tpu.dot_dimension_numbers<[1], [0], [0], [1], [0, 0, 1, 1], [], []>} : vector<10x84xf32>, vector<84x160xf32>, vector<10x160xf32> -> vector<10x160xf32>
    %158 = vector.extract_strided_slice %155 {offsets = [1, 0], sizes = [10, 84], strides = [1, 1]} : vector<14x84xf32> to vector<10x84xf32>
    %cst_112 = arith.constant dense<0.000000e+00> : vector<10x160xf32>
    %159 = tpu.matmul %158, %13, %cst_112 {dimension_numbers = #tpu.dot_dimension_numbers<[1], [0], [0], [1], [0, 0, 1, 1], [], []>} : vector<10x84xf32>, vector<84x160xf32>, vector<10x160xf32> -> vector<10x160xf32>
    %160 = arith.addf %157, %159 : vector<10x160xf32>
    %161 = vector.extract_strided_slice %155 {offsets = [2, 0], sizes = [10, 84], strides = [1, 1]} : vector<14x84xf32> to vector<10x84xf32>
    %cst_113 = arith.constant dense<0.000000e+00> : vector<10x160xf32>
    %162 = tpu.matmul %161, %15, %cst_113 {dimension_numbers = #tpu.dot_dimension_numbers<[1], [0], [0], [1], [0, 0, 1, 1], [], []>} : vector<10x84xf32>, vector<84x160xf32>, vector<10x160xf32> -> vector<10x160xf32>
    %163 = arith.addf %160, %162 : vector<10x160xf32>
    %164 = vector.extract_strided_slice %155 {offsets = [3, 0], sizes = [10, 84], strides = [1, 1]} : vector<14x84xf32> to vector<10x84xf32>
    %cst_114 = arith.constant dense<0.000000e+00> : vector<10x160xf32>
    %165 = tpu.matmul %164, %17, %cst_114 {dimension_numbers = #tpu.dot_dimension_numbers<[1], [0], [0], [1], [0, 0, 1, 1], [], []>} : vector<10x84xf32>, vector<84x160xf32>, vector<10x160xf32> -> vector<10x160xf32>
    %166 = arith.addf %163, %165 : vector<10x160xf32>
    %167 = vector.extract_strided_slice %155 {offsets = [4, 0], sizes = [10, 84], strides = [1, 1]} : vector<14x84xf32> to vector<10x84xf32>
    %cst_115 = arith.constant dense<0.000000e+00> : vector<10x160xf32>
    %168 = tpu.matmul %167, %19, %cst_115 {dimension_numbers = #tpu.dot_dimension_numbers<[1], [0], [0], [1], [0, 0, 1, 1], [], []>} : vector<10x84xf32>, vector<84x160xf32>, vector<10x160xf32> -> vector<10x160xf32>
    %169 = arith.addf %166, %168 : vector<10x160xf32>
    %170 = vector.broadcast %31 : vector<1x160xf32> to vector<10x160xf32>
    %171 = arith.addf %169, %170 : vector<10x160xf32>
    %cst_116 = arith.constant dense<0.000000e+00> : vector<5x160xf32>
    %172 = tpu.matmul %35, %171, %cst_116 {dimension_numbers = #tpu.dot_dimension_numbers<[1], [0], [0], [1], [0, 0, 1, 1], [], []>} : vector<5x10xf32>, vector<10x160xf32>, vector<5x160xf32> -> vector<5x160xf32>
    %cst_117 = arith.constant dense<0.000000e+00> : vector<5x80xf32>
    %173 = tpu.matmul %172, %36, %cst_117 {dimension_numbers = #tpu.dot_dimension_numbers<[1], [0], [0], [1], [0, 0, 1, 1], [], []>} : vector<5x160xf32>, vector<160x80xf32>, vector<5x80xf32> -> vector<5x80xf32>
    %174 = vector.broadcast %39 : vector<1x80xf32> to vector<5x80xf32>
    %175 = arith.mulf %173, %174 : vector<5x80xf32>
    %176 = vector.broadcast %40 : vector<1x80xf32> to vector<5x80xf32>
    %177 = arith.addf %175, %176 : vector<5x80xf32>
    %cst_118 = arith.constant 0.666666686 : f32
    %178 = vector.broadcast %cst_118 : f32 to vector<5x80xf32>
    %179 = arith.mulf %178, %177 : vector<5x80xf32>
    %180 = math.tanh %179 : vector<5x80xf32>
    %cst_119 = arith.constant 1.715900e+00 : f32
    %181 = vector.broadcast %cst_119 : f32 to vector<5x80xf32>
    %182 = arith.mulf %181, %180 : vector<5x80xf32>
    %183 = vector.extract_strided_slice %182 {offsets = [0, 0], sizes = [1, 80], strides = [1, 1]} : vector<5x80xf32> to vector<1x80xf32>
    %cst_120 = arith.constant dense<0.000000e+00> : vector<1x120xf32>
    %184 = tpu.matmul %183, %21, %cst_120 {dimension_numbers = #tpu.dot_dimension_numbers<[1], [0], [0], [1], [0, 0, 1, 1], [], []>} : vector<1x80xf32>, vector<80x120xf32>, vector<1x120xf32> -> vector<1x120xf32>
    %185 = vector.extract_strided_slice %182 {offsets = [1, 0], sizes = [1, 80], strides = [1, 1]} : vector<5x80xf32> to vector<1x80xf32>
    %cst_121 = arith.constant dense<0.000000e+00> : vector<1x120xf32>
    %186 = tpu.matmul %185, %23, %cst_121 {dimension_numbers = #tpu.dot_dimension_numbers<[1], [0], [0], [1], [0, 0, 1, 1], [], []>} : vector<1x80xf32>, vector<80x120xf32>, vector<1x120xf32> -> vector<1x120xf32>
    %187 = arith.addf %184, %186 : vector<1x120xf32>
    %188 = vector.extract_strided_slice %182 {offsets = [2, 0], sizes = [1, 80], strides = [1, 1]} : vector<5x80xf32> to vector<1x80xf32>
    %cst_122 = arith.constant dense<0.000000e+00> : vector<1x120xf32>
    %189 = tpu.matmul %188, %25, %cst_122 {dimension_numbers = #tpu.dot_dimension_numbers<[1], [0], [0], [1], [0, 0, 1, 1], [], []>} : vector<1x80xf32>, vector<80x120xf32>, vector<1x120xf32> -> vector<1x120xf32>
    %190 = arith.addf %187, %189 : vector<1x120xf32>
    %191 = vector.extract_strided_slice %182 {offsets = [3, 0], sizes = [1, 80], strides = [1, 1]} : vector<5x80xf32> to vector<1x80xf32>
    %cst_123 = arith.constant dense<0.000000e+00> : vector<1x120xf32>
    %192 = tpu.matmul %191, %27, %cst_123 {dimension_numbers = #tpu.dot_dimension_numbers<[1], [0], [0], [1], [0, 0, 1, 1], [], []>} : vector<1x80xf32>, vector<80x120xf32>, vector<1x120xf32> -> vector<1x120xf32>
    %193 = arith.addf %190, %192 : vector<1x120xf32>
    %194 = vector.extract_strided_slice %182 {offsets = [4, 0], sizes = [1, 80], strides = [1, 1]} : vector<5x80xf32> to vector<1x80xf32>
    %cst_124 = arith.constant dense<0.000000e+00> : vector<1x120xf32>
    %195 = tpu.matmul %194, %29, %cst_124 {dimension_numbers = #tpu.dot_dimension_numbers<[1], [0], [0], [1], [0, 0, 1, 1], [], []>} : vector<1x80xf32>, vector<80x120xf32>, vector<1x120xf32> -> vector<1x120xf32>
    %196 = arith.addf %193, %195 : vector<1x120xf32>
    %197 = arith.addf %196, %32 : vector<1x120xf32>
    %cst_125 = arith.constant dense<0.000000e+00> : vector<1x84xf32>
    %198 = tpu.matmul %197, %41, %cst_125 {dimension_numbers = #tpu.dot_dimension_numbers<[1], [0], [0], [1], [0, 0, 1, 1], [], []>} : vector<1x120xf32>, vector<120x84xf32>, vector<1x84xf32> -> vector<1x84xf32>
    %199 = arith.addf %198, %42 : vector<1x84xf32>
    %200 = arith.mulf %199, %199 : vector<1x84xf32>
    %cst_126 = arith.constant dense<0.000000e+00> : vector<1xf32>
    %201 = vector.multi_reduction <add>, %200, %cst_126 [1] : vector<1x84xf32> to vector<1xf32>
    %202 = vector.shape_cast %201 : vector<1xf32> to vector<1x1xf32>
    %203 = vector.broadcast %202 : vector<1x1xf32> to vector<1x10xf32>
    %204 = arith.addf %203, %44 : vector<1x10xf32>
    %cst_127 = arith.constant dense<0.000000e+00> : vector<1x10xf32>
    %205 = tpu.matmul %199, %43, %cst_127 {dimension_numbers = #tpu.dot_dimension_numbers<[1], [0], [0], [1], [0, 0, 1, 1], [], []>} : vector<1x84xf32>, vector<84x10xf32>, vector<1x10xf32> -> vector<1x10xf32>
    %cst_128 = arith.constant 2.000000e+00 : f32
    %206 = vector.broadcast %cst_128 : f32 to vector<1x10xf32>
    %207 = arith.mulf %206, %205 : vector<1x10xf32>
    %208 = arith.subf %204, %207 : vector<1x10xf32>
    %209 = tpu.concatenate %126, %208 in 0 : vector<1x10xf32>, vector<1x10xf32> -> vector<2x10xf32>
    %c0_129 = arith.constant 0 : index
    %c0_130 = arith.constant 0 : index
    %210 = vector.load %arg20[%c0_129, %c0_130] : memref<2x10xf32, #tpu.memory_space<vmem>>, vector<2x10xf32>
    tpu.vector_store %arg20[%c0_129, %c0_130], %209 {strides = array<i32>} : memref<2x10xf32, #tpu.memory_space<vmem>>, vector<2x10xf32>,
    return
  }
  func.func @transform_0(%arg0: i32) -> (i32, i32, i32) {
    %c0_i32 = arith.constant 0 : i32
    %c0_i32_0 = arith.constant 0 : i32
    %c0_i32_1 = arith.constant 0 : i32
    return %arg0, %c0_i32, %c0_i32_0 : i32, i32, i32
  }
  func.func @transform_1(%arg0: i32) -> (i32, i32, i32) {
    %c0_i32 = arith.constant 0 : i32
    %c0_i32_0 = arith.constant 0 : i32
    %c0_i32_1 = arith.constant 0 : i32
    %c0_i32_2 = arith.constant 0 : i32
    return %c0_i32, %c0_i32_0, %c0_i32_1 : i32, i32, i32
  }
  func.func @transform_2(%arg0: i32) -> (i32, i32) {
    %c0_i32 = arith.constant 0 : i32
    %c0_i32_0 = arith.constant 0 : i32
    %c0_i32_1 = arith.constant 0 : i32
    return %c0_i32, %c0_i32_0 : i32, i32
  }
  func.func @transform_3(%arg0: i32) -> (i32, i32) {
    %c0_i32 = arith.constant 0 : i32
    %c0_i32_0 = arith.constant 0 : i32
    %c0_i32_1 = arith.constant 0 : i32
    return %c0_i32, %c0_i32_0 : i32, i32
  }
  func.func @transform_4(%arg0: i32) -> (i32, i32) {
    %c0_i32 = arith.constant 0 : i32
    %c0_i32_0 = arith.constant 0 : i32
    %c0_i32_1 = arith.constant 0 : i32
    return %c0_i32, %c0_i32_0 : i32, i32
  }
  func.func @transform_5(%arg0: i32) -> (i32, i32) {
    %c0_i32 = arith.constant 0 : i32
    %c0_i32_0 = arith.constant 0 : i32
    %c0_i32_1 = arith.constant 0 : i32
    return %c0_i32, %c0_i32_0 : i32, i32
  }
  func.func @transform_6(%arg0: i32) -> (i32, i32) {
    %c0_i32 = arith.constant 0 : i32
    %c0_i32_0 = arith.constant 0 : i32
    %c0_i32_1 = arith.constant 0 : i32
    return %c0_i32, %c0_i32_0 : i32, i32
  }
  func.func @transform_7(%arg0: i32) -> (i32, i32, i32) {
    %c0_i32 = arith.constant 0 : i32
    %c0_i32_0 = arith.constant 0 : i32
    %c0_i32_1 = arith.constant 0 : i32
    %c0_i32_2 = arith.constant 0 : i32
    return %c0_i32, %c0_i32_0, %c0_i32_1 : i32, i32, i32
  }
  func.func @transform_8(%arg0: i32) -> (i32, i32) {
    %c0_i32 = arith.constant 0 : i32
    %c0_i32_0 = arith.constant 0 : i32
    %c0_i32_1 = arith.constant 0 : i32
    return %c0_i32, %c0_i32_0 : i32, i32
  }
  func.func @transform_9(%arg0: i32) -> (i32, i32) {
    %c0_i32 = arith.constant 0 : i32
    %c0_i32_0 = arith.constant 0 : i32
    %c0_i32_1 = arith.constant 0 : i32
    return %c0_i32, %c0_i32_0 : i32, i32
  }
  func.func @transform_10(%arg0: i32) -> (i32, i32) {
    %c0_i32 = arith.constant 0 : i32
    %c0_i32_0 = arith.constant 0 : i32
    %c0_i32_1 = arith.constant 0 : i32
    return %c0_i32, %c0_i32_0 : i32, i32
  }
  func.func @transform_11(%arg0: i32) -> (i32, i32) {
    %c0_i32 = arith.constant 0 : i32
    %c0_i32_0 = arith.constant 0 : i32
    %c0_i32_1 = arith.constant 0 : i32
    return %c0_i32, %c0_i32_0 : i32, i32
  }
  func.func @transform_12(%arg0: i32) -> (i32, i32) {
    %c0_i32 = arith.constant 0 : i32
    %c0_i32_0 = arith.constant 0 : i32
    %c0_i32_1 = arith.constant 0 : i32
    return %c0_i32, %c0_i32_0 : i32, i32
  }
  func.func @transform_13(%arg0: i32) -> (i32, i32, i32) {
    %c0_i32 = arith.constant 0 : i32
    %c0_i32_0 = arith.constant 0 : i32
    %c0_i32_1 = arith.constant 0 : i32
    %c0_i32_2 = arith.constant 0 : i32
    return %c0_i32, %c0_i32_0, %c0_i32_1 : i32, i32, i32
  }
  func.func @transform_14(%arg0: i32) -> (i32, i32) {
    %c0_i32 = arith.constant 0 : i32
    %c0_i32_0 = arith.constant 0 : i32
    %c0_i32_1 = arith.constant 0 : i32
    return %c0_i32, %c0_i32_0 : i32, i32
  }
  func.func @transform_15(%arg0: i32) -> (i32, i32) {
    %c0_i32 = arith.constant 0 : i32
    %c0_i32_0 = arith.constant 0 : i32
    %c0_i32_1 = arith.constant 0 : i32
    return %c0_i32, %c0_i32_0 : i32, i32
  }
  func.func @transform_16(%arg0: i32) -> (i32, i32) {
    %c0_i32 = arith.constant 0 : i32
    %c0_i32_0 = arith.constant 0 : i32
    %c0_i32_1 = arith.constant 0 : i32
    return %c0_i32, %c0_i32_0 : i32, i32
  }
  func.func @transform_17(%arg0: i32) -> (i32, i32) {
    %c0_i32 = arith.constant 0 : i32
    %c0_i32_0 = arith.constant 0 : i32
    %c0_i32_1 = arith.constant 0 : i32
    return %c0_i32, %c0_i32_0 : i32, i32
  }
  func.func @transform_18(%arg0: i32) -> (i32, i32) {
    %c0_i32 = arith.constant 0 : i32
    %c0_i32_0 = arith.constant 0 : i32
    %c0_i32_1 = arith.constant 0 : i32
    return %c0_i32, %c0_i32_0 : i32, i32
  }
  func.func @transform_19(%arg0: i32) -> (i32, i32) {
    %c0_i32 = arith.constant 0 : i32
    %c0_i32_0 = arith.constant 0 : i32
    return %arg0, %c0_i32 : i32, i32
  }
}

</mosaic_0001>

<llo_original>
// kernel: lenet_forward.1
$region0: #{lenet_forward.1}
  #allocation0 [shape = 'u32[]', space=smem, size = 0x4, offset = 0x4, fixed_abs, tag = 'smem constant byte address 0x4 - core index']
  #allocation1 [shape = 'u32[144,128]{1,0:T(1,128)}', space=vmem, size = 0x12000, scoped, tag = 'internal scratch']
  %s0 = inlined_call_operand.vmem [shape: f32[2,32,32], index: 0, kind: input, shape index: {}]
  %s1 = inlined_call_operand.vmem [shape: f32[5,32,168], index: 1, kind: input, shape index: {}]
  %s2 = inlined_call_operand.vmem [shape: f32[1,168], index: 2, kind: input, shape index: {}]
  %s3 = inlined_call_operand.vmem [shape: f32[14,28], index: 3, kind: input, shape index: {}]
  %s4 = inlined_call_operand.vmem [shape: f32[168,84], index: 4, kind: input, shape index: {}]
  %s5 = inlined_call_operand.vmem [shape: f32[1,84], index: 5, kind: input, shape index: {}]
  %s6 = inlined_call_operand.vmem [shape: f32[1,84], index: 6, kind: input, shape index: {}]
  %s7 = inlined_call_operand.vmem [shape: f32[5,84,160], index: 7, kind: input, shape index: {}]
  %s8 = inlined_call_operand.vmem [shape: f32[1,160], index: 8, kind: input, shape index: {}]
  %s9 = inlined_call_operand.vmem [shape: f32[5,10], index: 9, kind: input, shape index: {}]
  %s10 = inlined_call_operand.vmem [shape: f32[160,80], index: 10, kind: input, shape index: {}]
  %s11 = inlined_call_operand.vmem [shape: f32[1,80], index: 11, kind: input, shape index: {}]
  %s12 = inlined_call_operand.vmem [shape: f32[1,80], index: 12, kind: input, shape index: {}]
  %s13 = inlined_call_operand.vmem [shape: f32[5,80,120], index: 13, kind: input, shape index: {}]
  %s14 = inlined_call_operand.vmem [shape: f32[1,120], index: 14, kind: input, shape index: {}]
  %s15 = inlined_call_operand.vmem [shape: f32[120,84], index: 15, kind: input, shape index: {}]
  %s16 = inlined_call_operand.vmem [shape: f32[1,84], index: 16, kind: input, shape index: {}]
  %s17 = inlined_call_operand.vmem [shape: f32[84,10], index: 17, kind: input, shape index: {}]
  %s18 = inlined_call_operand.vmem [shape: f32[1,10], index: 18, kind: input, shape index: {}]
  %s19 = inlined_call_operand.hbm [shape: f32[2,10], index: 19, kind: output, shape index: {}]
  %s20 = sld [smem:[#allocation0]]
  $region86: #{lenet_forward.1} parent=0
    _
  %s22 = ssub.s32 1, %s20
  %s23 = scalar_select 0, %s22, %s20
  $region1: #{lenet_forward.1} parent=0
    #allocation2 [shape = 'u8[1024]{0}', space=vmem, size = 0x400, scoped, tag = 'output window, operand 0, single buffered']
    #allocation3 [shape = 's32[1]{0}', space=sflag, size = 0x4, scoped, tag = 'scoped memory for lenet_forward.1']
    %24 = vsyncpa [#allocation3], 0
    // Predicated region
    $region2: #{lenet_forward.1} parent=1 // pred_check
      _
    $region3: #{lenet_forward.1} parent=1 // pred_check_branch
      %26 = sbr.rel (0) target = $region5
    $region4: #{lenet_forward.1} parent=1 // pred_region
      _
    $region5: #{lenet_forward.1} parent=1 // pred_fallthru
      _
    // Predicated region
    $region6: #{lenet_forward.1} parent=1 // pred_check
      _
    $region7: #{lenet_forward.1} parent=1 // pred_check_branch
      %28 = sbr.rel (0) target = $region9
    $region8: #{lenet_forward.1} parent=1 // pred_region
      _
    $region9: #{lenet_forward.1} parent=1 // pred_fallthru
      _
    // Predicated region
    $region10: #{lenet_forward.1} parent=1 // pred_check
      _
    $region11: #{lenet_forward.1} parent=1 // pred_check_branch
      %30 = sbr.rel (0) target = $region13
    $region12: #{lenet_forward.1} parent=1 // pred_region
      _
    $region13: #{lenet_forward.1} parent=1 // pred_fallthru
      _
    // Predicated region
    $region14: #{lenet_forward.1} parent=1 // pred_check
      _
    $region15: #{lenet_forward.1} parent=1 // pred_check_branch
      %32 = sbr.rel (0) target = $region17
    $region16: #{lenet_forward.1} parent=1 // pred_region
      _
    $region17: #{lenet_forward.1} parent=1 // pred_fallthru
      _
    // Predicated region
    $region18: #{lenet_forward.1} parent=1 // pred_check
      _
    $region19: #{lenet_forward.1} parent=1 // pred_check_branch
      %34 = sbr.rel (0) target = $region21
    $region20: #{lenet_forward.1} parent=1 // pred_region
      _
    $region21: #{lenet_forward.1} parent=1 // pred_fallthru
      _
    // Predicated region
    $region22: #{lenet_forward.1} parent=1 // pred_check
      _
    $region23: #{lenet_forward.1} parent=1 // pred_check_branch
      %36 = sbr.rel (0) target = $region25
    $region24: #{lenet_forward.1} parent=1 // pred_region
      _
    $region25: #{lenet_forward.1} parent=1 // pred_fallthru
      _
    // Predicated region
    $region26: #{lenet_forward.1} parent=1 // pred_check
      _
    $region27: #{lenet_forward.1} parent=1 // pred_check_branch
      %38 = sbr.rel (0) target = $region29
    $region28: #{lenet_forward.1} parent=1 // pred_region
      _
    $region29: #{lenet_forward.1} parent=1 // pred_fallthru
      _
    // Predicated region
    $region30: #{lenet_forward.1} parent=1 // pred_check
      _
    $region31: #{lenet_forward.1} parent=1 // pred_check_branch
      %40 = sbr.rel (0) target = $region33
    $region32: #{lenet_forward.1} parent=1 // pred_region
      _
    $region33: #{lenet_forward.1} parent=1 // pred_fallthru
      _
    // Predicated region
    $region34: #{lenet_forward.1} parent=1 // pred_check
      _
    $region35: #{lenet_forward.1} parent=1 // pred_check_branch
      %42 = sbr.rel (0) target = $region37
    $region36: #{lenet_forward.1} parent=1 // pred_region
      _
    $region37: #{lenet_forward.1} parent=1 // pred_fallthru
      _
    // Predicated region
    $region38: #{lenet_forward.1} parent=1 // pred_check
      _
    $region39: #{lenet_forward.1} parent=1 // pred_check_branch
      %44 = sbr.rel (0) target = $region41
    $region40: #{lenet_forward.1} parent=1 // pred_region
      _
    $region41: #{lenet_forward.1} parent=1 // pred_fallthru
      _
    // Predicated region
    $region42: #{lenet_forward.1} parent=1 // pred_check
      _
    $region43: #{lenet_forward.1} parent=1 // pred_check_branch
      %46 = sbr.rel (0) target = $region45
    $region44: #{lenet_forward.1} parent=1 // pred_region
      _
    $region45: #{lenet_forward.1} parent=1 // pred_fallthru
      _
    // Predicated region
    $region46: #{lenet_forward.1} parent=1 // pred_check
      _
    $region47: #{lenet_forward.1} parent=1 // pred_check_branch
      %48 = sbr.rel (0) target = $region49
    $region48: #{lenet_forward.1} parent=1 // pred_region
      _
    $region49: #{lenet_forward.1} parent=1 // pred_fallthru
      _
    // Predicated region
    $region50: #{lenet_forward.1} parent=1 // pred_check
      _
    $region51: #{lenet_forward.1} parent=1 // pred_check_branch
      %50 = sbr.rel (0) target = $region53
    $region52: #{lenet_forward.1} parent=1 // pred_region
      _
    $region53: #{lenet_forward.1} parent=1 // pred_fallthru
      _
    // Predicated region
    $region54: #{lenet_forward.1} parent=1 // pred_check
      _
    $region55: #{lenet_forward.1} parent=1 // pred_check_branch
      %52 = sbr.rel (0) target = $region57
    $region56: #{lenet_forward.1} parent=1 // pred_region
      _
    $region57: #{lenet_forward.1} parent=1 // pred_fallthru
      _
    // Predicated region
    $region58: #{lenet_forward.1} parent=1 // pred_check
      _
    $region59: #{lenet_forward.1} parent=1 // pred_check_branch
      %54 = sbr.rel (0) target = $region61
    $region60: #{lenet_forward.1} parent=1 // pred_region
      _
    $region61: #{lenet_forward.1} parent=1 // pred_fallthru
      _
    // Predicated region
    $region62: #{lenet_forward.1} parent=1 // pred_check
      _
    $region63: #{lenet_forward.1} parent=1 // pred_check_branch
      %56 = sbr.rel (0) target = $region65
    $region64: #{lenet_forward.1} parent=1 // pred_region
      _
    $region65: #{lenet_forward.1} parent=1 // pred_fallthru
      _
    // Predicated region
    $region66: #{lenet_forward.1} parent=1 // pred_check
      _
    $region67: #{lenet_forward.1} parent=1 // pred_check_branch
      %58 = sbr.rel (0) target = $region69
    $region68: #{lenet_forward.1} parent=1 // pred_region
      _
    $region69: #{lenet_forward.1} parent=1 // pred_fallthru
      _
    // Predicated region
    $region70: #{lenet_forward.1} parent=1 // pred_check
      _
    $region71: #{lenet_forward.1} parent=1 // pred_check_branch
      %60 = sbr.rel (0) target = $region73
    $region72: #{lenet_forward.1} parent=1 // pred_region
      _
    $region73: #{lenet_forward.1} parent=1 // pred_fallthru
      _
    // Predicated region
    $region74: #{lenet_forward.1} parent=1 // pred_check
      _
    $region75: #{lenet_forward.1} parent=1 // pred_check_branch
      %62 = sbr.rel (0) target = $region77
    $region76: #{lenet_forward.1} parent=1 // pred_region
      _
    $region77: #{lenet_forward.1} parent=1 // pred_fallthru
      _
    %v63 = vld [vmem:[%s1] sm:$0xff]
    %v64 = vld [vmem:[%s1 + $0x8] sm:$0xff]
    %v65 = vld [vmem:[%s1 + $0x10] sm:$0xff]
    %v66 = vld [vmem:[%s1 + $0x18] sm:$0xff]
    %v67 = vld [vmem:[%s1 + $0x20] sm:$0xff]
    %v68 = vld [vmem:[%s1 + $0x28] sm:$0xff]
    %v69 = vld [vmem:[%s1 + $0x30] sm:$0xff]
    %v70 = vld [vmem:[%s1 + $0x38] sm:$0xff]
    %s71 = scalar_lea.vmem %s1, 64
    %v72 = vld [vmem:[%s71] sm:$0xff]
    %v73 = vld [vmem:[%s71 + $0x8] sm:$0xff]
    %v74 = vld [vmem:[%s71 + $0x10] sm:$0xff]
    %v75 = vld [vmem:[%s71 + $0x18] sm:$0xff]
    %v76 = vld [vmem:[%s71 + $0x20] sm:$0xff]
    %v77 = vld [vmem:[%s71 + $0x28] sm:$0xff]
    %v78 = vld [vmem:[%s71 + $0x30] sm:$0xff]
    %v79 = vld [vmem:[%s71 + $0x38] sm:$0xff]
    %s80 = scalar_lea.vmem %s1, 128
    %v81 = vld [vmem:[%s80] sm:$0xff]
    %v82 = vld [vmem:[%s80 + $0x8] sm:$0xff]
    %v83 = vld [vmem:[%s80 + $0x10] sm:$0xff]
    %v84 = vld [vmem:[%s80 + $0x18] sm:$0xff]
    %v85 = vld [vmem:[%s80 + $0x20] sm:$0xff]
    %v86 = vld [vmem:[%s80 + $0x28] sm:$0xff]
    %v87 = vld [vmem:[%s80 + $0x30] sm:$0xff]
    %v88 = vld [vmem:[%s80 + $0x38] sm:$0xff]
    %s89 = scalar_lea.vmem %s1, 192
    %v90 = vld [vmem:[%s89] sm:$0xff]
    %v91 = vld [vmem:[%s89 + $0x8] sm:$0xff]
    %v92 = vld [vmem:[%s89 + $0x10] sm:$0xff]
    %v93 = vld [vmem:[%s89 + $0x18] sm:$0xff]
    %v94 = vld [vmem:[%s89 + $0x20] sm:$0xff]
    %v95 = vld [vmem:[%s89 + $0x28] sm:$0xff]
    %v96 = vld [vmem:[%s89 + $0x30] sm:$0xff]
    %v97 = vld [vmem:[%s89 + $0x38] sm:$0xff]
    %s98 = scalar_lea.vmem %s1, 256
    %v99 = vld [vmem:[%s98] sm:$0xff]
    %v100 = vld [vmem:[%s98 + $0x8] sm:$0xff]
    %v101 = vld [vmem:[%s98 + $0x10] sm:$0xff]
    %v102 = vld [vmem:[%s98 + $0x18] sm:$0xff]
    %v103 = vld [vmem:[%s98 + $0x20] sm:$0xff]
    %v104 = vld [vmem:[%s98 + $0x28] sm:$0xff]
    %v105 = vld [vmem:[%s98 + $0x30] sm:$0xff]
    %v106 = vld [vmem:[%s98 + $0x38] sm:$0xff]
    %v107 = vld [vmem:[%s7] sm:$0xff]
    %v108 = vld [vmem:[%s7 + $0x8] sm:$0xff]
    %v109 = vld [vmem:[%s7 + $0x10] sm:$0xff]
    %v110 = vld [vmem:[%s7 + $0x18] sm:$0xff]
    %v111 = vld [vmem:[%s7 + $0x20] sm:$0xff]
    %v112 = vld [vmem:[%s7 + $0x28] sm:$0xff]
    %v113 = vld [vmem:[%s7 + $0x30] sm:$0xff]
    %v114 = vld [vmem:[%s7 + $0x38] sm:$0xff]
    %v115 = vld [vmem:[%s7 + $0x40] sm:$0xff]
    %v116 = vld [vmem:[%s7 + $0x48] sm:$0xff]
    %v117 = vld [vmem:[%s7 + $0x50] sm:$0xff]
    %v118 = vld [vmem:[%s7 + $0x58] sm:$0xff]
    %v119 = vld [vmem:[%s7 + $0x60] sm:$0xff]
    %v120 = vld [vmem:[%s7 + $0x68] sm:$0xff]
    %v121 = vld [vmem:[%s7 + $0x70] sm:$0xff]
    %v122 = vld [vmem:[%s7 + $0x78] sm:$0xff]
    %v123 = vld [vmem:[%s7 + $0x80] sm:$0xff]
    %v124 = vld [vmem:[%s7 + $0x88] sm:$0xff]
    %v125 = vld [vmem:[%s7 + $0x90] sm:$0xff]
    %v126 = vld [vmem:[%s7 + $0x98] sm:$0xff]
    %v127 = vld [vmem:[%s7 + $0xa0] sm:$0xf]
    %v128 = vld [vmem:[%s7 + $0xa8] sm:$0xf]
    %s129 = scalar_lea.vmem %s7, 176
    %v130 = vld [vmem:[%s129] sm:$0xff]
    %v131 = vld [vmem:[%s129 + $0x8] sm:$0xff]
    %v132 = vld [vmem:[%s129 + $0x10] sm:$0xff]
    %v133 = vld [vmem:[%s129 + $0x18] sm:$0xff]
    %v134 = vld [vmem:[%s129 + $0x20] sm:$0xff]
    %v135 = vld [vmem:[%s129 + $0x28] sm:$0xff]
    %v136 = vld [vmem:[%s129 + $0x30] sm:$0xff]
    %v137 = vld [vmem:[%s129 + $0x38] sm:$0xff]
    %v138 = vld [vmem:[%s129 + $0x40] sm:$0xff]
    %v139 = vld [vmem:[%s129 + $0x48] sm:$0xff]
    %v140 = vld [vmem:[%s129 + $0x50] sm:$0xff]
    %v141 = vld [vmem:[%s129 + $0x58] sm:$0xff]
    %v142 = vld [vmem:[%s129 + $0x60] sm:$0xff]
    %v143 = vld [vmem:[%s129 + $0x68] sm:$0xff]
    %v144 = vld [vmem:[%s129 + $0x70] sm:$0xff]
    %v145 = vld [vmem:[%s129 + $0x78] sm:$0xff]
    %v146 = vld [vmem:[%s129 + $0x80] sm:$0xff]
    %v147 = vld [vmem:[%s129 + $0x88] sm:$0xff]
    %v148 = vld [vmem:[%s129 + $0x90] sm:$0xff]
    %v149 = vld [vmem:[%s129 + $0x98] sm:$0xff]
    %v150 = vld [vmem:[%s129 + $0xa0] sm:$0xf]
    %v151 = vld [vmem:[%s129 + $0xa8] sm:$0xf]
    %s152 = scalar_lea.vmem %s7, 352
    %v153 = vld [vmem:[%s152] sm:$0xff]
    %v154 = vld [vmem:[%s152 + $0x8] sm:$0xff]
    %v155 = vld [vmem:[%s152 + $0x10] sm:$0xff]
    %v156 = vld [vmem:[%s152 + $0x18] sm:$0xff]
    %v157 = vld [vmem:[%s152 + $0x20] sm:$0xff]
    %v158 = vld [vmem:[%s152 + $0x28] sm:$0xff]
    %v159 = vld [vmem:[%s152 + $0x30] sm:$0xff]
    %v160 = vld [vmem:[%s152 + $0x38] sm:$0xff]
    %v161 = vld [vmem:[%s152 + $0x40] sm:$0xff]
    %v162 = vld [vmem:[%s152 + $0x48] sm:$0xff]
    %v163 = vld [vmem:[%s152 + $0x50] sm:$0xff]
    %v164 = vld [vmem:[%s152 + $0x58] sm:$0xff]
    %v165 = vld [vmem:[%s152 + $0x60] sm:$0xff]
    %v166 = vld [vmem:[%s152 + $0x68] sm:$0xff]
    %v167 = vld [vmem:[%s152 + $0x70] sm:$0xff]
    %v168 = vld [vmem:[%s152 + $0x78] sm:$0xff]
    %v169 = vld [vmem:[%s152 + $0x80] sm:$0xff]
    %v170 = vld [vmem:[%s152 + $0x88] sm:$0xff]
    %v171 = vld [vmem:[%s152 + $0x90] sm:$0xff]
    %v172 = vld [vmem:[%s152 + $0x98] sm:$0xff]
    %v173 = vld [vmem:[%s152 + $0xa0] sm:$0xf]
    %v174 = vld [vmem:[%s152 + $0xa8] sm:$0xf]
    %s175 = scalar_lea.vmem %s7, 528
    %v176 = vld [vmem:[%s175] sm:$0xff]
    %v177 = vld [vmem:[%s175 + $0x8] sm:$0xff]
    %v178 = vld [vmem:[%s175 + $0x10] sm:$0xff]
    %v179 = vld [vmem:[%s175 + $0x18] sm:$0xff]
    %v180 = vld [vmem:[%s175 + $0x20] sm:$0xff]
    %v181 = vld [vmem:[%s175 + $0x28] sm:$0xff]
    %v182 = vld [vmem:[%s175 + $0x30] sm:$0xff]
    %v183 = vld [vmem:[%s175 + $0x38] sm:$0xff]
    %v184 = vld [vmem:[%s175 + $0x40] sm:$0xff]
    %v185 = vld [vmem:[%s175 + $0x48] sm:$0xff]
    %v186 = vld [vmem:[%s175 + $0x50] sm:$0xff]
    %v187 = vld [vmem:[%s175 + $0x58] sm:$0xff]
    %v188 = vld [vmem:[%s175 + $0x60] sm:$0xff]
    %v189 = vld [vmem:[%s175 + $0x68] sm:$0xff]
    %v190 = vld [vmem:[%s175 + $0x70] sm:$0xff]
    %v191 = vld [vmem:[%s175 + $0x78] sm:$0xff]
    %v192 = vld [vmem:[%s175 + $0x80] sm:$0xff]
    %v193 = vld [vmem:[%s175 + $0x88] sm:$0xff]
    %v194 = vld [vmem:[%s175 + $0x90] sm:$0xff]
    %v195 = vld [vmem:[%s175 + $0x98] sm:$0xff]
    %v196 = vld [vmem:[%s175 + $0xa0] sm:$0xf]
    %v197 = vld [vmem:[%s175 + $0xa8] sm:$0xf]
    %s198 = scalar_lea.vmem %s7, 704
    %v199 = vld [vmem:[%s198] sm:$0xff]
    %v200 = vld [vmem:[%s198 + $0x8] sm:$0xff]
    %v201 = vld [vmem:[%s198 + $0x10] sm:$0xff]
    %v202 = vld [vmem:[%s198 + $0x18] sm:$0xff]
    %v203 = vld [vmem:[%s198 + $0x20] sm:$0xff]
    %v204 = vld [vmem:[%s198 + $0x28] sm:$0xff]
    %v205 = vld [vmem:[%s198 + $0x30] sm:$0xff]
    %v206 = vld [vmem:[%s198 + $0x38] sm:$0xff]
    %v207 = vld [vmem:[%s198 + $0x40] sm:$0xff]
    %v208 = vld [vmem:[%s198 + $0x48] sm:$0xff]
    %v209 = vld [vmem:[%s198 + $0x50] sm:$0xff]
    %v210 = vld [vmem:[%s198 + $0x58] sm:$0xff]
    %v211 = vld [vmem:[%s198 + $0x60] sm:$0xff]
    %v212 = vld [vmem:[%s198 + $0x68] sm:$0xff]
    %v213 = vld [vmem:[%s198 + $0x70] sm:$0xff]
    %v214 = vld [vmem:[%s198 + $0x78] sm:$0xff]
    %v215 = vld [vmem:[%s198 + $0x80] sm:$0xff]
    %v216 = vld [vmem:[%s198 + $0x88] sm:$0xff]
    %v217 = vld [vmem:[%s198 + $0x90] sm:$0xff]
    %v218 = vld [vmem:[%s198 + $0x98] sm:$0xff]
    %v219 = vld [vmem:[%s198 + $0xa0] sm:$0xf]
    %v220 = vld [vmem:[%s198 + $0xa8] sm:$0xf]
    %v221 = vld [vmem:[%s13] sm:$0xff]
    %v222 = vld [vmem:[%s13 + $0x8] sm:$0xff]
    %v223 = vld [vmem:[%s13 + $0x10] sm:$0xff]
    %v224 = vld [vmem:[%s13 + $0x18] sm:$0xff]
    %v225 = vld [vmem:[%s13 + $0x20] sm:$0xff]
    %v226 = vld [vmem:[%s13 + $0x28] sm:$0xff]
    %v227 = vld [vmem:[%s13 + $0x30] sm:$0xff]
    %v228 = vld [vmem:[%s13 + $0x38] sm:$0xff]
    %v229 = vld [vmem:[%s13 + $0x40] sm:$0xff]
    %v230 = vld [vmem:[%s13 + $0x48] sm:$0xff]
    %s231 = scalar_lea.vmem %s13, 80
    %v232 = vld [vmem:[%s231] sm:$0xff]
    %v233 = vld [vmem:[%s231 + $0x8] sm:$0xff]
    %v234 = vld [vmem:[%s231 + $0x10] sm:$0xff]
    %v235 = vld [vmem:[%s231 + $0x18] sm:$0xff]
    %v236 = vld [vmem:[%s231 + $0x20] sm:$0xff]
    %v237 = vld [vmem:[%s231 + $0x28] sm:$0xff]
    %v238 = vld [vmem:[%s231 + $0x30] sm:$0xff]
    %v239 = vld [vmem:[%s231 + $0x38] sm:$0xff]
    %v240 = vld [vmem:[%s231 + $0x40] sm:$0xff]
    %v241 = vld [vmem:[%s231 + $0x48] sm:$0xff]
    %s242 = scalar_lea.vmem %s13, 160
    %v243 = vld [vmem:[%s242] sm:$0xff]
    %v244 = vld [vmem:[%s242 + $0x8] sm:$0xff]
    %v245 = vld [vmem:[%s242 + $0x10] sm:$0xff]
    %v246 = vld [vmem:[%s242 + $0x18] sm:$0xff]
    %v247 = vld [vmem:[%s242 + $0x20] sm:$0xff]
    %v248 = vld [vmem:[%s242 + $0x28] sm:$0xff]
    %v249 = vld [vmem:[%s242 + $0x30] sm:$0xff]
    %v250 = vld [vmem:[%s242 + $0x38] sm:$0xff]
    %v251 = vld [vmem:[%s242 + $0x40] sm:$0xff]
    %v252 = vld [vmem:[%s242 + $0x48] sm:$0xff]
    %s253 = scalar_lea.vmem %s13, 240
    %v254 = vld [vmem:[%s253] sm:$0xff]
    %v255 = vld [vmem:[%s253 + $0x8] sm:$0xff]
    %v256 = vld [vmem:[%s253 + $0x10] sm:$0xff]
    %v257 = vld [vmem:[%s253 + $0x18] sm:$0xff]
    %v258 = vld [vmem:[%s253 + $0x20] sm:$0xff]
    %v259 = vld [vmem:[%s253 + $0x28] sm:$0xff]
    %v260 = vld [vmem:[%s253 + $0x30] sm:$0xff]
    %v261 = vld [vmem:[%s253 + $0x38] sm:$0xff]
    %v262 = vld [vmem:[%s253 + $0x40] sm:$0xff]
    %v263 = vld [vmem:[%s253 + $0x48] sm:$0xff]
    %s264 = scalar_lea.vmem %s13, 320
    %v265 = vld [vmem:[%s264] sm:$0xff]
    %v266 = vld [vmem:[%s264 + $0x8] sm:$0xff]
    %v267 = vld [vmem:[%s264 + $0x10] sm:$0xff]
    %v268 = vld [vmem:[%s264 + $0x18] sm:$0xff]
    %v269 = vld [vmem:[%s264 + $0x20] sm:$0xff]
    %v270 = vld [vmem:[%s264 + $0x28] sm:$0xff]
    %v271 = vld [vmem:[%s264 + $0x30] sm:$0xff]
    %v272 = vld [vmem:[%s264 + $0x38] sm:$0xff]
    %v273 = vld [vmem:[%s264 + $0x40] sm:$0xff]
    %v274 = vld [vmem:[%s264 + $0x48] sm:$0xff]
    %v275 = vld [vmem:[%s2] sm:$0x3]
    %v276 = vld [vmem:[%s8] sm:$0x3]
    %v277 = vld [vmem:[%s14] sm:$0x1]
    %v278 = vld [vmem:[%s3] sm:$0xff]
    %v279 = vld [vmem:[%s3 + $0x8] sm:$0x3f]
    %v280 = vld [vmem:[%s4] sm:$0xff]
    %v281 = vld [vmem:[%s4 + $0x8] sm:$0xff]
    %v282 = vld [vmem:[%s4 + $0x10] sm:$0xff]
    %v283 = vld [vmem:[%s4 + $0x18] sm:$0xff]
    %v284 = vld [vmem:[%s4 + $0x20] sm:$0xff]
    %v285 = vld [vmem:[%s4 + $0x28] sm:$0xff]
    %v286 = vld [vmem:[%s4 + $0x30] sm:$0xff]
    %v287 = vld [vmem:[%s4 + $0x38] sm:$0xff]
    %v288 = vld [vmem:[%s4 + $0x40] sm:$0xff]
    %v289 = vld [vmem:[%s4 + $0x48] sm:$0xff]
    %v290 = vld [vmem:[%s4 + $0x50] sm:$0xff]
    %v291 = vld [vmem:[%s4 + $0x58] sm:$0xff]
    %v292 = vld [vmem:[%s4 + $0x60] sm:$0xff]
    %v293 = vld [vmem:[%s4 + $0x68] sm:$0xff]
    %v294 = vld [vmem:[%s4 + $0x70] sm:$0xff]
    %v295 = vld [vmem:[%s4 + $0x78] sm:$0xff]
    %v296 = vld [vmem:[%s4 + $0x80] sm:$0xff]
    %v297 = vld [vmem:[%s4 + $0x88] sm:$0xff]
    %v298 = vld [vmem:[%s4 + $0x90] sm:$0xff]
    %v299 = vld [vmem:[%s4 + $0x98] sm:$0xff]
    %v300 = vld [vmem:[%s4 + $0xa0] sm:$0xff]
    %v301 = vld [vmem:[%s9] sm:$0x1f]
    %v302 = vld [vmem:[%s10] sm:$0xff]
    %v303 = vld [vmem:[%s10 + $0x8] sm:$0xff]
    %v304 = vld [vmem:[%s10 + $0x10] sm:$0xff]
    %v305 = vld [vmem:[%s10 + $0x18] sm:$0xff]
    %v306 = vld [vmem:[%s10 + $0x20] sm:$0xff]
    %v307 = vld [vmem:[%s10 + $0x28] sm:$0xff]
    %v308 = vld [vmem:[%s10 + $0x30] sm:$0xff]
    %v309 = vld [vmem:[%s10 + $0x38] sm:$0xff]
    %v310 = vld [vmem:[%s10 + $0x40] sm:$0xff]
    %v311 = vld [vmem:[%s10 + $0x48] sm:$0xff]
    %v312 = vld [vmem:[%s10 + $0x50] sm:$0xff]
    %v313 = vld [vmem:[%s10 + $0x58] sm:$0xff]
    %v314 = vld [vmem:[%s10 + $0x60] sm:$0xff]
    %v315 = vld [vmem:[%s10 + $0x68] sm:$0xff]
    %v316 = vld [vmem:[%s10 + $0x70] sm:$0xff]
    %v317 = vld [vmem:[%s10 + $0x78] sm:$0xff]
    %v318 = vld [vmem:[%s10 + $0x80] sm:$0xff]
    %v319 = vld [vmem:[%s10 + $0x88] sm:$0xff]
    %v320 = vld [vmem:[%s10 + $0x90] sm:$0xff]
    %v321 = vld [vmem:[%s10 + $0x98] sm:$0xff]
    %v322 = vld [vmem:[%s5] sm:$0x1]
    %v323 = vld [vmem:[%s6] sm:$0x1]
    %v324 = vld [vmem:[%s11] sm:$0x1]
    %v325 = vld [vmem:[%s12] sm:$0x1]
    %v326 = vld [vmem:[%s15] sm:$0xff]
    %v327 = vld [vmem:[%s15 + $0x8] sm:$0xff]
    %v328 = vld [vmem:[%s15 + $0x10] sm:$0xff]
    %v329 = vld [vmem:[%s15 + $0x18] sm:$0xff]
    %v330 = vld [vmem:[%s15 + $0x20] sm:$0xff]
    %v331 = vld [vmem:[%s15 + $0x28] sm:$0xff]
    %v332 = vld [vmem:[%s15 + $0x30] sm:$0xff]
    %v333 = vld [vmem:[%s15 + $0x38] sm:$0xff]
    %v334 = vld [vmem:[%s15 + $0x40] sm:$0xff]
    %v335 = vld [vmem:[%s15 + $0x48] sm:$0xff]
    %v336 = vld [vmem:[%s15 + $0x50] sm:$0xff]
    %v337 = vld [vmem:[%s15 + $0x58] sm:$0xff]
    %v338 = vld [vmem:[%s15 + $0x60] sm:$0xff]
    %v339 = vld [vmem:[%s15 + $0x68] sm:$0xff]
    %v340 = vld [vmem:[%s15 + $0x70] sm:$0xff]
    %v341 = vld [vmem:[%s16] sm:$0x1]
    %v342 = vld [vmem:[%s17] sm:$0xff]
    %v343 = vld [vmem:[%s17 + $0x8] sm:$0xff]
    %v344 = vld [vmem:[%s17 + $0x10] sm:$0xff]
    %v345 = vld [vmem:[%s17 + $0x18] sm:$0xff]
    %v346 = vld [vmem:[%s17 + $0x20] sm:$0xff]
    %v347 = vld [vmem:[%s17 + $0x28] sm:$0xff]
    %v348 = vld [vmem:[%s17 + $0x30] sm:$0xff]
    %v349 = vld [vmem:[%s17 + $0x38] sm:$0xff]
    %v350 = vld [vmem:[%s17 + $0x40] sm:$0xff]
    %v351 = vld [vmem:[%s17 + $0x48] sm:$0xff]
    %v352 = vld [vmem:[%s17 + $0x50] sm:$0xf]
    %v353 = vld [vmem:[%s18] sm:$0x1]
    %v354 = vld [vmem:[%s0] sm:$0xff]
    %v355 = vld [vmem:[%s0 + $0x8] sm:$0xff]
    %v356 = vld [vmem:[%s0 + $0x10] sm:$0xff]
    %v357 = vld [vmem:[%s0 + $0x18] sm:$0xff]
    %vm362 = vcmask 1046528
    %v363 = vrot.slane %v354, 1
    %v364 = vrot.slane %v355, 1
    %v365 = vsel %vm362, %v363, %v364
    %v366 = vrot.slane %v356, 1
    %v367 = vsel %vm362, %v364, %v366
    %v368 = vrot.slane %v357, 1
    %v369 = vsel %vm362, %v366, %v368
    %vm370 = vcmask 261120
    %v371 = vsel %vm370, %v365, 0
    %v373 = vsel %vm370, %v367, 0
    %v375 = vsel %vm370, %v369, 0
    %v377 = vsel %vm370, %v368, 0
    %379 = vmatprep.subr.mxu0 %v73
    %380 = vmatpush1.msra.mxu0 %v72
    %381 = vmatprep.subr.mxu0 %v75
    %382 = vmatpush1.msra.mxu0 %v74
    %383 = vmatprep.subr.mxu0 %v77
    %384 = vmatpush1.msra.mxu0 %v76
    %385 = vmatprep.subr.mxu0 %v79
    %386 = vmatpush1.msra.mxu0 %v78
    %387 = vmatprep.subr.mxu0 0.0
    %388 = vmatpush1.msra.mxu0 0.0
    %389 = vmatprep.subr.mxu0 0.0
    %390 = vmatpush1.msra.mxu0 0.0
    %391 = vmatprep.subr.mxu0 0.0
    %392 = vmatpush1.msra.mxu0 0.0
    %393 = vmatprep.subr.mxu0 0.0
    %394 = vmatpush1.msra.mxu0 0.0
    %395 = vmatprep.subr.mxu0 0.0
    %396 = vmatpush1.msra.mxu0 0.0
    %397 = vmatprep.subr.mxu0 0.0
    %398 = vmatpush1.msra.mxu0 0.0
    %399 = vmatprep.subr.mxu0 0.0
    %400 = vmatpush1.msra.mxu0 0.0
    %401 = vmatprep.subr.mxu0 0.0
    %402 = vmatpush1.msra.mxu0 0.0
    %403 = vmatprep.subr.mxu0 0.0
    %404 = vmatpush1.msra.mxu0 0.0
    %405 = vmatprep.subr.mxu0 0.0
    %406 = vmatpush1.msra.mxu0 0.0
    %407 = vmatprep.subr.mxu0 0.0
    %408 = vmatpush1.msra.mxu0 0.0
    %409 = vmatprep.subr.mxu0 0.0
    %410 = vmatpush1.msra.mxu0 0.0
    %411 = vmatprep.subr.mxu0 0.0
    %412 = vmatpush1.msra.mxu0 0.0
    %413 = vmatprep.subr.mxu0 0.0
    %414 = vmatpush1.msra.mxu0 0.0
    %415 = vmatprep.subr.mxu0 0.0
    %416 = vmatpush1.msra.mxu0 0.0
    %417 = vmatprep.subr.mxu0 0.0
    %418 = vmatpush1.msra.mxu0 0.0
    %419 = vmatprep.subr.mxu0 0.0
    %420 = vmatpush1.msra.mxu0 0.0
    %421 = vmatprep.subr.mxu0 0.0
    %422 = vmatpush1.msra.mxu0 0.0
    %423 = vmatprep.subr.mxu0 0.0
    %424 = vmatpush1.msra.mxu0 0.0
    %425 = vmatprep.subr.mxu0 0.0
    %426 = vmatpush1.msra.mxu0 0.0
    %427 = vmatprep.subr.mxu0 0.0
    %428 = vmatpush1.msra.mxu0 0.0
    %429 = vmatprep.subr.mxu0 0.0
    %430 = vmatpush1.msra.mxu0 0.0
    %431 = vmatprep.subr.mxu0 0.0
    %432 = vmatpush1.msra.mxu0 0.0
    %433 = vmatprep.subr.mxu0 0.0
    %434 = vmatpush1.msra.mxu0 0.0
    %435 = vmatprep.subr.mxu0 0.0
    %436 = vmatpush1.msra.mxu0 0.0
    %437 = vmatprep.subr.mxu0 0.0
    %438 = vmatpush1.msra.mxu0 0.0
    %439 = vmatprep.subr.mxu0 0.0
    %440 = vmatpush1.msra.mxu0 0.0
    %441 = vmatprep.subr.mxu0 0.0
    %442 = vmatpush1.msra.mxu0 0.0
    %443 = vmatprep.mubr.f32.mxu0 0.0
    %444 = vmatmul.mubr.f32.gmra.mrb[0].mxu0 %v371
    %v445 = vpop.f32.mrb[0].mxu0
    %v446 = vadd.f32 0.0, %v445
    %v447 = vpop.f32.mrb[0].mxu0
    %v448 = vadd.f32 0.0, %v447
    %449 = vmatprep.mubr.f32.mxu0 0.0
    %450 = vmatmul.mubr.f32.gmra.mrb[0].mxu0 %v373
    %v451 = vpop.f32.mrb[0].mxu0
    %v452 = vadd.f32 0.0, %v451
    %v453 = vpop.f32.mrb[0].mxu0
    %v454 = vadd.f32 0.0, %v453
    %455 = vmatprep.mubr.f32.mxu0 0.0
    %456 = vmatmul.mubr.f32.gmra.mrb[0].mxu0 %v375
    %v457 = vpop.f32.mrb[0].mxu0
    %v458 = vadd.f32 0.0, %v457
    %v459 = vpop.f32.mrb[0].mxu0
    %v460 = vadd.f32 0.0, %v459
    %461 = vmatprep.mubr.f32.mxu0 0.0
    %462 = vmatmul.mubr.f32.gmra.mrb[0].mxu0 %v377
    %v463 = vpop.f32.mrb[0].mxu0
    %v464 = vadd.f32 0.0, %v463
    %v465 = vpop.f32.mrb[0].mxu0
    %v466 = vadd.f32 0.0, %v465
    %467 = vdwg.mxu0
    %v468 = vsel %vm370, %v354, 0
    %v470 = vsel %vm370, %v355, 0
    %v472 = vsel %vm370, %v356, 0
    %v474 = vsel %vm370, %v357, 0
    %476 = vmatprep.subr.mxu0 %v64
    %477 = vmatpush1.msra.mxu0 %v63
    %478 = vmatprep.subr.mxu0 %v66
    %479 = vmatpush1.msra.mxu0 %v65
    %480 = vmatprep.subr.mxu0 %v68
    %481 = vmatpush1.msra.mxu0 %v67
    %482 = vmatprep.subr.mxu0 %v70
    %483 = vmatpush1.msra.mxu0 %v69
    %484 = vmatprep.subr.mxu0 0.0
    %485 = vmatpush1.msra.mxu0 0.0
    %486 = vmatprep.subr.mxu0 0.0
    %487 = vmatpush1.msra.mxu0 0.0
    %488 = vmatprep.subr.mxu0 0.0
    %489 = vmatpush1.msra.mxu0 0.0
    %490 = vmatprep.subr.mxu0 0.0
    %491 = vmatpush1.msra.mxu0 0.0
    %492 = vmatprep.subr.mxu0 0.0
    %493 = vmatpush1.msra.mxu0 0.0
    %494 = vmatprep.subr.mxu0 0.0
    %495 = vmatpush1.msra.mxu0 0.0
    %496 = vmatprep.subr.mxu0 0.0
    %497 = vmatpush1.msra.mxu0 0.0
    %498 = vmatprep.subr.mxu0 0.0
    %499 = vmatpush1.msra.mxu0 0.0
    %500 = vmatprep.subr.mxu0 0.0
    %501 = vmatpush1.msra.mxu0 0.0
    %502 = vmatprep.subr.mxu0 0.0
    %503 = vmatpush1.msra.mxu0 0.0
    %504 = vmatprep.subr.mxu0 0.0
    %505 = vmatpush1.msra.mxu0 0.0
    %506 = vmatprep.subr.mxu0 0.0
    %507 = vmatpush1.msra.mxu0 0.0
    %508 = vmatprep.subr.mxu0 0.0
    %509 = vmatpush1.msra.mxu0 0.0
    %510 = vmatprep.subr.mxu0 0.0
    %511 = vmatpush1.msra.mxu0 0.0
    %512 = vmatprep.subr.mxu0 0.0
    %513 = vmatpush1.msra.mxu0 0.0
    %514 = vmatprep.subr.mxu0 0.0
    %515 = vmatpush1.msra.mxu0 0.0
    %516 = vmatprep.subr.mxu0 0.0
    %517 = vmatpush1.msra.mxu0 0.0
    %518 = vmatprep.subr.mxu0 0.0
    %519 = vmatpush1.msra.mxu0 0.0
    %520 = vmatprep.subr.mxu0 0.0
    %521 = vmatpush1.msra.mxu0 0.0
    %522 = vmatprep.subr.mxu0 0.0
    %523 = vmatpush1.msra.mxu0 0.0
    %524 = vmatprep.subr.mxu0 0.0
    %525 = vmatpush1.msra.mxu0 0.0
    %526 = vmatprep.subr.mxu0 0.0
    %527 = vmatpush1.msra.mxu0 0.0
    %528 = vmatprep.subr.mxu0 0.0
    %529 = vmatpush1.msra.mxu0 0.0
    %530 = vmatprep.subr.mxu0 0.0
    %531 = vmatpush1.msra.mxu0 0.0
    %532 = vmatprep.subr.mxu0 0.0
    %533 = vmatpush1.msra.mxu0 0.0
    %534 = vmatprep.subr.mxu0 0.0
    %535 = vmatpush1.msra.mxu0 0.0
    %536 = vmatprep.subr.mxu0 0.0
    %537 = vmatpush1.msra.mxu0 0.0
    %538 = vmatprep.subr.mxu0 0.0
    %539 = vmatpush1.msra.mxu0 0.0
    %540 = vmatprep.mubr.f32.mxu0 0.0
    %541 = vmatmul.mubr.f32.gmra.mrb[0].mxu0 %v468
    %v542 = vpop.f32.mrb[0].mxu0
    %v543 = vadd.f32 %v446, %v542
    %v544 = vpop.f32.mrb[0].mxu0
    %v545 = vadd.f32 %v448, %v544
    %546 = vmatprep.mubr.f32.mxu0 0.0
    %547 = vmatmul.mubr.f32.gmra.mrb[0].mxu0 %v470
    %v548 = vpop.f32.mrb[0].mxu0
    %v549 = vadd.f32 %v452, %v548
    %v550 = vpop.f32.mrb[0].mxu0
    %v551 = vadd.f32 %v454, %v550
    %552 = vmatprep.mubr.f32.mxu0 0.0
    %553 = vmatmul.mubr.f32.gmra.mrb[0].mxu0 %v472
    %v554 = vpop.f32.mrb[0].mxu0
    %v555 = vadd.f32 %v458, %v554
    %v556 = vpop.f32.mrb[0].mxu0
    %v557 = vadd.f32 %v460, %v556
    %558 = vmatprep.mubr.f32.mxu0 0.0
    %559 = vmatmul.mubr.f32.gmra.mrb[0].mxu0 %v474
    %v560 = vpop.f32.mrb[0].mxu0
    %v561 = vadd.f32 %v464, %v560
    %v562 = vpop.f32.mrb[0].mxu0
    %v563 = vadd.f32 %v466, %v562
    %564 = vdwg.mxu0
    %vm565 = vcmask 1045504
    %v566 = vrot.slane %v354, 2
    %v567 = vrot.slane %v355, 2
    %v568 = vsel %vm565, %v566, %v567
    %v569 = vrot.slane %v356, 2
    %v570 = vsel %vm565, %v567, %v569
    %v571 = vrot.slane %v357, 2
    %v572 = vsel %vm565, %v569, %v571
    %v573 = vsel %vm370, %v568, 0
    %v575 = vsel %vm370, %v570, 0
    %v577 = vsel %vm370, %v572, 0
    %v579 = vsel %vm370, %v571, 0
    %581 = vmatprep.subr.mxu0 %v82
    %582 = vmatpush1.msra.mxu0 %v81
    %583 = vmatprep.subr.mxu0 %v84
    %584 = vmatpush1.msra.mxu0 %v83
    %585 = vmatprep.subr.mxu0 %v86
    %586 = vmatpush1.msra.mxu0 %v85
    %587 = vmatprep.subr.mxu0 %v88
    %588 = vmatpush1.msra.mxu0 %v87
    %589 = vmatprep.subr.mxu0 0.0
    %590 = vmatpush1.msra.mxu0 0.0
    %591 = vmatprep.subr.mxu0 0.0
    %592 = vmatpush1.msra.mxu0 0.0
    %593 = vmatprep.subr.mxu0 0.0
    %594 = vmatpush1.msra.mxu0 0.0
    %595 = vmatprep.subr.mxu0 0.0
    %596 = vmatpush1.msra.mxu0 0.0
    %597 = vmatprep.subr.mxu0 0.0
    %598 = vmatpush1.msra.mxu0 0.0
    %599 = vmatprep.subr.mxu0 0.0
    %600 = vmatpush1.msra.mxu0 0.0
    %601 = vmatprep.subr.mxu0 0.0
    %602 = vmatpush1.msra.mxu0 0.0
    %603 = vmatprep.subr.mxu0 0.0
    %604 = vmatpush1.msra.mxu0 0.0
    %605 = vmatprep.subr.mxu0 0.0
    %606 = vmatpush1.msra.mxu0 0.0
    %607 = vmatprep.subr.mxu0 0.0
    %608 = vmatpush1.msra.mxu0 0.0
    %609 = vmatprep.subr.mxu0 0.0
    %610 = vmatpush1.msra.mxu0 0.0
    %611 = vmatprep.subr.mxu0 0.0
    %612 = vmatpush1.msra.mxu0 0.0
    %613 = vmatprep.subr.mxu0 0.0
    %614 = vmatpush1.msra.mxu0 0.0
    %615 = vmatprep.subr.mxu0 0.0
    %616 = vmatpush1.msra.mxu0 0.0
    %617 = vmatprep.subr.mxu0 0.0
    %618 = vmatpush1.msra.mxu0 0.0
    %619 = vmatprep.subr.mxu0 0.0
    %620 = vmatpush1.msra.mxu0 0.0
    %621 = vmatprep.subr.mxu0 0.0
    %622 = vmatpush1.msra.mxu0 0.0
    %623 = vmatprep.subr.mxu0 0.0
    %624 = vmatpush1.msra.mxu0 0.0
    %625 = vmatprep.subr.mxu0 0.0
    %626 = vmatpush1.msra.mxu0 0.0
    %627 = vmatprep.subr.mxu0 0.0
    %628 = vmatpush1.msra.mxu0 0.0
    %629 = vmatprep.subr.mxu0 0.0
    %630 = vmatpush1.msra.mxu0 0.0
    %631 = vmatprep.subr.mxu0 0.0
    %632 = vmatpush1.msra.mxu0 0.0
    %633 = vmatprep.subr.mxu0 0.0
    %634 = vmatpush1.msra.mxu0 0.0
    %635 = vmatprep.subr.mxu0 0.0
    %636 = vmatpush1.msra.mxu0 0.0
    %637 = vmatprep.subr.mxu0 0.0
    %638 = vmatpush1.msra.mxu0 0.0
    %639 = vmatprep.subr.mxu0 0.0
    %640 = vmatpush1.msra.mxu0 0.0
    %641 = vmatprep.subr.mxu0 0.0
    %642 = vmatpush1.msra.mxu0 0.0
    %643 = vmatprep.subr.mxu0 0.0
    %644 = vmatpush1.msra.mxu0 0.0
    %645 = vmatprep.mubr.f32.mxu0 0.0
    %646 = vmatmul.mubr.f32.gmra.mrb[0].mxu0 %v573
    %v647 = vpop.f32.mrb[0].mxu0
    %v648 = vadd.f32 0.0, %v647
    %v649 = vpop.f32.mrb[0].mxu0
    %v650 = vadd.f32 0.0, %v649
    %651 = vmatprep.mubr.f32.mxu0 0.0
    %652 = vmatmul.mubr.f32.gmra.mrb[0].mxu0 %v575
    %v653 = vpop.f32.mrb[0].mxu0
    %v654 = vadd.f32 0.0, %v653
    %v655 = vpop.f32.mrb[0].mxu0
    %v656 = vadd.f32 0.0, %v655
    %657 = vmatprep.mubr.f32.mxu0 0.0
    %658 = vmatmul.mubr.f32.gmra.mrb[0].mxu0 %v577
    %v659 = vpop.f32.mrb[0].mxu0
    %v660 = vadd.f32 0.0, %v659
    %v661 = vpop.f32.mrb[0].mxu0
    %v662 = vadd.f32 0.0, %v661
    %663 = vmatprep.mubr.f32.mxu0 0.0
    %664 = vmatmul.mubr.f32.gmra.mrb[0].mxu0 %v579
    %v665 = vpop.f32.mrb[0].mxu0
    %v666 = vadd.f32 0.0, %v665
    %v667 = vpop.f32.mrb[0].mxu0
    %v668 = vadd.f32 0.0, %v667
    %669 = vdwg.mxu0
    %v670 = vadd.f32 %v543, %v648
    %v671 = vadd.f32 %v545, %v650
    %v672 = vadd.f32 %v549, %v654
    %v673 = vadd.f32 %v551, %v656
    %v674 = vadd.f32 %v555, %v660
    %v675 = vadd.f32 %v557, %v662
    %v676 = vadd.f32 %v561, %v666
    %v677 = vadd.f32 %v563, %v668
    %vm678 = vcmask 1044480
    %v679 = vrot.slane %v354, 3
    %v680 = vrot.slane %v355, 3
    %v681 = vsel %vm678, %v679, %v680
    %v682 = vrot.slane %v356, 3
    %v683 = vsel %vm678, %v680, %v682
    %v684 = vrot.slane %v357, 3
    %v685 = vsel %vm678, %v682, %v684
    %v686 = vsel %vm370, %v681, 0
    %v688 = vsel %vm370, %v683, 0
    %v690 = vsel %vm370, %v685, 0
    %v692 = vsel %vm370, %v684, 0
    %694 = vmatprep.subr.mxu0 %v91
    %695 = vmatpush1.msra.mxu0 %v90
    %696 = vmatprep.subr.mxu0 %v93
    %697 = vmatpush1.msra.mxu0 %v92
    %698 = vmatprep.subr.mxu0 %v95
    %699 = vmatpush1.msra.mxu0 %v94
    %700 = vmatprep.subr.mxu0 %v97
    %701 = vmatpush1.msra.mxu0 %v96
    %702 = vmatprep.subr.mxu0 0.0
    %703 = vmatpush1.msra.mxu0 0.0
    %704 = vmatprep.subr.mxu0 0.0
    %705 = vmatpush1.msra.mxu0 0.0
    %706 = vmatprep.subr.mxu0 0.0
    %707 = vmatpush1.msra.mxu0 0.0
    %708 = vmatprep.subr.mxu0 0.0
    %709 = vmatpush1.msra.mxu0 0.0
    %710 = vmatprep.subr.mxu0 0.0
    %711 = vmatpush1.msra.mxu0 0.0
    %712 = vmatprep.subr.mxu0 0.0
    %713 = vmatpush1.msra.mxu0 0.0
    %714 = vmatprep.subr.mxu0 0.0
    %715 = vmatpush1.msra.mxu0 0.0
    %716 = vmatprep.subr.mxu0 0.0
    %717 = vmatpush1.msra.mxu0 0.0
    %718 = vmatprep.subr.mxu0 0.0
    %719 = vmatpush1.msra.mxu0 0.0
    %720 = vmatprep.subr.mxu0 0.0
    %721 = vmatpush1.msra.mxu0 0.0
    %722 = vmatprep.subr.mxu0 0.0
    %723 = vmatpush1.msra.mxu0 0.0
    %724 = vmatprep.subr.mxu0 0.0
    %725 = vmatpush1.msra.mxu0 0.0
    %726 = vmatprep.subr.mxu0 0.0
    %727 = vmatpush1.msra.mxu0 0.0
    %728 = vmatprep.subr.mxu0 0.0
    %729 = vmatpush1.msra.mxu0 0.0
    %730 = vmatprep.subr.mxu0 0.0
    %731 = vmatpush1.msra.mxu0 0.0
    %732 = vmatprep.subr.mxu0 0.0
    %733 = vmatpush1.msra.mxu0 0.0
    %734 = vmatprep.subr.mxu0 0.0
    %735 = vmatpush1.msra.mxu0 0.0
    %736 = vmatprep.subr.mxu0 0.0
    %737 = vmatpush1.msra.mxu0 0.0
    %738 = vmatprep.subr.mxu0 0.0
    %739 = vmatpush1.msra.mxu0 0.0
    %740 = vmatprep.subr.mxu0 0.0
    %741 = vmatpush1.msra.mxu0 0.0
    %742 = vmatprep.subr.mxu0 0.0
    %743 = vmatpush1.msra.mxu0 0.0
    %744 = vmatprep.subr.mxu0 0.0
    %745 = vmatpush1.msra.mxu0 0.0
    %746 = vmatprep.subr.mxu0 0.0
    %747 = vmatpush1.msra.mxu0 0.0
    %748 = vmatprep.subr.mxu0 0.0
    %749 = vmatpush1.msra.mxu0 0.0
    %750 = vmatprep.subr.mxu0 0.0
    %751 = vmatpush1.msra.mxu0 0.0
    %752 = vmatprep.subr.mxu0 0.0
    %753 = vmatpush1.msra.mxu0 0.0
    %754 = vmatprep.subr.mxu0 0.0
    %755 = vmatpush1.msra.mxu0 0.0
    %756 = vmatprep.subr.mxu0 0.0
    %757 = vmatpush1.msra.mxu0 0.0
    %758 = vmatprep.mubr.f32.mxu0 0.0
    %759 = vmatmul.mubr.f32.gmra.mrb[0].mxu0 %v686
    %v760 = vpop.f32.mrb[0].mxu0
    %v761 = vadd.f32 0.0, %v760
    %v762 = vpop.f32.mrb[0].mxu0
    %v763 = vadd.f32 0.0, %v762
    %764 = vmatprep.mubr.f32.mxu0 0.0
    %765 = vmatmul.mubr.f32.gmra.mrb[0].mxu0 %v688
    %v766 = vpop.f32.mrb[0].mxu0
    %v767 = vadd.f32 0.0, %v766
    %v768 = vpop.f32.mrb[0].mxu0
    %v769 = vadd.f32 0.0, %v768
    %770 = vmatprep.mubr.f32.mxu0 0.0
    %771 = vmatmul.mubr.f32.gmra.mrb[0].mxu0 %v690
    %v772 = vpop.f32.mrb[0].mxu0
    %v773 = vadd.f32 0.0, %v772
    %v774 = vpop.f32.mrb[0].mxu0
    %v775 = vadd.f32 0.0, %v774
    %776 = vmatprep.mubr.f32.mxu0 0.0
    %777 = vmatmul.mubr.f32.gmra.mrb[0].mxu0 %v692
    %v778 = vpop.f32.mrb[0].mxu0
    %v779 = vadd.f32 0.0, %v778
    %v780 = vpop.f32.mrb[0].mxu0
    %v781 = vadd.f32 0.0, %v780
    %782 = vdwg.mxu0
    %v783 = vadd.f32 %v670, %v761
    %v784 = vadd.f32 %v671, %v763
    %v785 = vadd.f32 %v672, %v767
    %v786 = vadd.f32 %v673, %v769
    %v787 = vadd.f32 %v674, %v773
    %v788 = vadd.f32 %v675, %v775
    %v789 = vadd.f32 %v676, %v779
    %v790 = vadd.f32 %v677, %v781
    %vm791 = vcmask 1043456
    %v792 = vrot.slane %v354, 4
    %v793 = vrot.slane %v355, 4
    %v794 = vsel %vm791, %v792, %v793
    %v795 = vrot.slane %v356, 4
    %v796 = vsel %vm791, %v793, %v795
    %v797 = vrot.slane %v357, 4
    %v798 = vsel %vm791, %v795, %v797
    %v799 = vsel %vm370, %v794, 0
    %v801 = vsel %vm370, %v796, 0
    %v803 = vsel %vm370, %v798, 0
    %v805 = vsel %vm370, %v797, 0
    %807 = vmatprep.subr.mxu0 %v100
    %808 = vmatpush1.msra.mxu0 %v99
    %809 = vmatprep.subr.mxu0 %v102
    %810 = vmatpush1.msra.mxu0 %v101
    %811 = vmatprep.subr.mxu0 %v104
    %812 = vmatpush1.msra.mxu0 %v103
    %813 = vmatprep.subr.mxu0 %v106
    %814 = vmatpush1.msra.mxu0 %v105
    %815 = vmatprep.subr.mxu0 0.0
    %816 = vmatpush1.msra.mxu0 0.0
    %817 = vmatprep.subr.mxu0 0.0
    %818 = vmatpush1.msra.mxu0 0.0
    %819 = vmatprep.subr.mxu0 0.0
    %820 = vmatpush1.msra.mxu0 0.0
    %821 = vmatprep.subr.mxu0 0.0
    %822 = vmatpush1.msra.mxu0 0.0
    %823 = vmatprep.subr.mxu0 0.0
    %824 = vmatpush1.msra.mxu0 0.0
    %825 = vmatprep.subr.mxu0 0.0
    %826 = vmatpush1.msra.mxu0 0.0
    %827 = vmatprep.subr.mxu0 0.0
    %828 = vmatpush1.msra.mxu0 0.0
    %829 = vmatprep.subr.mxu0 0.0
    %830 = vmatpush1.msra.mxu0 0.0
    %831 = vmatprep.subr.mxu0 0.0
    %832 = vmatpush1.msra.mxu0 0.0
    %833 = vmatprep.subr.mxu0 0.0
    %834 = vmatpush1.msra.mxu0 0.0
    %835 = vmatprep.subr.mxu0 0.0
    %836 = vmatpush1.msra.mxu0 0.0
    %837 = vmatprep.subr.mxu0 0.0
    %838 = vmatpush1.msra.mxu0 0.0
    %839 = vmatprep.subr.mxu0 0.0
    %840 = vmatpush1.msra.mxu0 0.0
    %841 = vmatprep.subr.mxu0 0.0
    %842 = vmatpush1.msra.mxu0 0.0
    %843 = vmatprep.subr.mxu0 0.0
    %844 = vmatpush1.msra.mxu0 0.0
    %845 = vmatprep.subr.mxu0 0.0
    %846 = vmatpush1.msra.mxu0 0.0
    %847 = vmatprep.subr.mxu0 0.0
    %848 = vmatpush1.msra.mxu0 0.0
    %849 = vmatprep.subr.mxu0 0.0
    %850 = vmatpush1.msra.mxu0 0.0
    %851 = vmatprep.subr.mxu0 0.0
    %852 = vmatpush1.msra.mxu0 0.0
    %853 = vmatprep.subr.mxu0 0.0
    %854 = vmatpush1.msra.mxu0 0.0
    %855 = vmatprep.subr.mxu0 0.0
    %856 = vmatpush1.msra.mxu0 0.0
    %857 = vmatprep.subr.mxu0 0.0
    %858 = vmatpush1.msra.mxu0 0.0
    %859 = vmatprep.subr.mxu0 0.0
    %860 = vmatpush1.msra.mxu0 0.0
    %861 = vmatprep.subr.mxu0 0.0
    %862 = vmatpush1.msra.mxu0 0.0
    %863 = vmatprep.subr.mxu0 0.0
    %864 = vmatpush1.msra.mxu0 0.0
    %865 = vmatprep.subr.mxu0 0.0
    %866 = vmatpush1.msra.mxu0 0.0
    %867 = vmatprep.subr.mxu0 0.0
    %868 = vmatpush1.msra.mxu0 0.0
    %869 = vmatprep.subr.mxu0 0.0
    %870 = vmatpush1.msra.mxu0 0.0
    %871 = vmatprep.mubr.f32.mxu0 0.0
    %872 = vmatmul.mubr.f32.gmra.mrb[0].mxu0 %v799
    %v873 = vpop.f32.mrb[0].mxu0
    %v874 = vadd.f32 0.0, %v873
    %v875 = vpop.f32.mrb[0].mxu0
    %v876 = vadd.f32 0.0, %v875
    %877 = vmatprep.mubr.f32.mxu0 0.0
    %878 = vmatmul.mubr.f32.gmra.mrb[0].mxu0 %v801
    %v879 = vpop.f32.mrb[0].mxu0
    %v880 = vadd.f32 0.0, %v879
    %v881 = vpop.f32.mrb[0].mxu0
    %v882 = vadd.f32 0.0, %v881
    %883 = vmatprep.mubr.f32.mxu0 0.0
    %884 = vmatmul.mubr.f32.gmra.mrb[0].mxu0 %v803
    %v885 = vpop.f32.mrb[0].mxu0
    %v886 = vadd.f32 0.0, %v885
    %v887 = vpop.f32.mrb[0].mxu0
    %v888 = vadd.f32 0.0, %v887
    %889 = vmatprep.mubr.f32.mxu0 0.0
    %890 = vmatmul.mubr.f32.gmra.mrb[0].mxu0 %v805
    %v891 = vpop.f32.mrb[0].mxu0
    %v892 = vadd.f32 0.0, %v891
    %v893 = vpop.f32.mrb[0].mxu0
    %v894 = vadd.f32 0.0, %v893
    %895 = vdwg.mxu0
    %v896 = vadd.f32 %v783, %v874
    %v897 = vadd.f32 %v784, %v876
    %v898 = vadd.f32 %v785, %v880
    %v899 = vadd.f32 %v786, %v882
    %v900 = vadd.f32 %v787, %v886
    %v901 = vadd.f32 %v788, %v888
    %v902 = vadd.f32 %v789, %v892
    %v903 = vadd.f32 %v790, %v894
    %v905 = vlaneseq
    %v906 = vshrl.u32 %v905, 7
    %v907 = vsub.s32 0, %v906
    %v908 = vrot.slane %v275, %v907
    %v909 = vlaneseq
    %v910 = vshrl.u32 %v909, 7
    %v911 = vsub.s32 1, %v910
    %v912 = vrot.slane %v275, %v911
    %v915 = vadd.f32 %v896, %v908
    %v916 = vadd.f32 %v897, %v912
    %v917 = vadd.f32 %v898, %v908
    %v918 = vadd.f32 %v899, %v912
    %v919 = vadd.f32 %v900, %v908
    %v920 = vadd.f32 %v901, %v912
    %v921 = vadd.f32 %v902, %v908
    %v922 = vadd.f32 %v903, %v912
    %vm923 = vcmask 228352
    %v925 = vsel %vm923, %v278, 0
    %v928 = vsel %vm923, %v279, 0
    %v931 = vsel %vm791, %v921, 0
    %v934 = vsel %vm791, %v922, 0
    %936 = vmatprep.subr.mxu0 %v916
    %937 = vmatpush1.msra.mxu0 %v915
    %938 = vmatprep.subr.mxu0 %v918
    %939 = vmatpush1.msra.mxu0 %v917
    %940 = vmatprep.subr.mxu0 %v920
    %941 = vmatpush1.msra.mxu0 %v919
    %942 = vmatprep.subr.mxu0 %v934
    %943 = vmatpush1.msra.mxu0 %v931
    %944 = vmatprep.subr.mxu0 0.0
    %945 = vmatpush1.msra.mxu0 0.0
    %946 = vmatprep.subr.mxu0 0.0
    %947 = vmatpush1.msra.mxu0 0.0
    %948 = vmatprep.subr.mxu0 0.0
    %949 = vmatpush1.msra.mxu0 0.0
    %950 = vmatprep.subr.mxu0 0.0
    %951 = vmatpush1.msra.mxu0 0.0
    %952 = vmatprep.subr.mxu0 0.0
    %953 = vmatpush1.msra.mxu0 0.0
    %954 = vmatprep.subr.mxu0 0.0
    %955 = vmatpush1.msra.mxu0 0.0
    %956 = vmatprep.subr.mxu0 0.0
    %957 = vmatpush1.msra.mxu0 0.0
    %958 = vmatprep.subr.mxu0 0.0
    %959 = vmatpush1.msra.mxu0 0.0
    %960 = vmatprep.subr.mxu0 0.0
    %961 = vmatpush1.msra.mxu0 0.0
    %962 = vmatprep.subr.mxu0 0.0
    %963 = vmatpush1.msra.mxu0 0.0
    %964 = vmatprep.subr.mxu0 0.0
    %965 = vmatpush1.msra.mxu0 0.0
    %966 = vmatprep.subr.mxu0 0.0
    %967 = vmatpush1.msra.mxu0 0.0
    %968 = vmatprep.subr.mxu0 0.0
    %969 = vmatpush1.msra.mxu0 0.0
    %970 = vmatprep.subr.mxu0 0.0
    %971 = vmatpush1.msra.mxu0 0.0
    %972 = vmatprep.subr.mxu0 0.0
    %973 = vmatpush1.msra.mxu0 0.0
    %974 = vmatprep.subr.mxu0 0.0
    %975 = vmatpush1.msra.mxu0 0.0
    %976 = vmatprep.subr.mxu0 0.0
    %977 = vmatpush1.msra.mxu0 0.0
    %978 = vmatprep.subr.mxu0 0.0
    %979 = vmatpush1.msra.mxu0 0.0
    %980 = vmatprep.subr.mxu0 0.0
    %981 = vmatpush1.msra.mxu0 0.0
    %982 = vmatprep.subr.mxu0 0.0
    %983 = vmatpush1.msra.mxu0 0.0
    %984 = vmatprep.subr.mxu0 0.0
    %985 = vmatpush1.msra.mxu0 0.0
    %986 = vmatprep.subr.mxu0 0.0
    %987 = vmatpush1.msra.mxu0 0.0
    %988 = vmatprep.subr.mxu0 0.0
    %989 = vmatpush1.msra.mxu0 0.0
    %990 = vmatprep.subr.mxu0 0.0
    %991 = vmatpush1.msra.mxu0 0.0
    %992 = vmatprep.subr.mxu0 0.0
    %993 = vmatpush1.msra.mxu0 0.0
    %994 = vmatprep.subr.mxu0 0.0
    %995 = vmatpush1.msra.mxu0 0.0
    %996 = vmatprep.subr.mxu0 0.0
    %997 = vmatpush1.msra.mxu0 0.0
    %998 = vmatprep.subr.mxu0 0.0
    %999 = vmatpush1.msra.mxu0 0.0
    %1000 = vmatprep.mubr.f32.mxu0 0.0
    %1001 = vmatmul.mubr.f32.gmra.mrb[0].mxu0 %v925
    %v1002 = vpop.f32.mrb[0].mxu0
    %v1003 = vadd.f32 0.0, %v1002
    %v1004 = vpop.f32.mrb[0].mxu0
    %v1005 = vadd.f32 0.0, %v1004
    %1006 = vmatprep.mubr.f32.mxu0 0.0
    %1007 = vmatmul.mubr.f32.gmra.mrb[0].mxu0 %v928
    %v1008 = vpop.f32.mrb[0].mxu0
    %v1009 = vadd.f32 0.0, %v1008
    %v1010 = vpop.f32.mrb[0].mxu0
    %v1011 = vadd.f32 0.0, %v1010
    %1012 = vdwg.mxu0
    %vm1013 = vcmask 326656
    %v1015 = vsel %vm1013, %v1005, 0
    %v1018 = vsel %vm1013, %v1011, 0
    %1020 = vmatprep.subr.mxu0 0.0
    %1021 = vmatpush1.msra.mxu0 %v280
    %1022 = vmatprep.subr.mxu0 0.0
    %1023 = vmatpush1.msra.mxu0 %v281
    %1024 = vmatprep.subr.mxu0 0.0
    %1025 = vmatpush1.msra.mxu0 %v282
    %1026 = vmatprep.subr.mxu0 0.0
    %1027 = vmatpush1.msra.mxu0 %v283
    %1028 = vmatprep.subr.mxu0 0.0
    %1029 = vmatpush1.msra.mxu0 %v284
    %1030 = vmatprep.subr.mxu0 0.0
    %1031 = vmatpush1.msra.mxu0 %v285
    %1032 = vmatprep.subr.mxu0 0.0
    %1033 = vmatpush1.msra.mxu0 %v286
    %1034 = vmatprep.subr.mxu0 0.0
    %1035 = vmatpush1.msra.mxu0 %v287
    %1036 = vmatprep.subr.mxu0 0.0
    %1037 = vmatpush1.msra.mxu0 %v288
    %1038 = vmatprep.subr.mxu0 0.0
    %1039 = vmatpush1.msra.mxu0 %v289
    %1040 = vmatprep.subr.mxu0 0.0
    %1041 = vmatpush1.msra.mxu0 %v290
    %1042 = vmatprep.subr.mxu0 0.0
    %1043 = vmatpush1.msra.mxu0 %v291
    %1044 = vmatprep.subr.mxu0 0.0
    %1045 = vmatpush1.msra.mxu0 %v292
    %1046 = vmatprep.subr.mxu0 0.0
    %1047 = vmatpush1.msra.mxu0 %v293
    %1048 = vmatprep.subr.mxu0 0.0
    %1049 = vmatpush1.msra.mxu0 %v294
    %1050 = vmatprep.subr.mxu0 0.0
    %1051 = vmatpush1.msra.mxu0 %v295
    %1052 = vmatprep.subr.mxu0 0.0
    %1053 = vmatpush1.msra.mxu0 %v296
    %1054 = vmatprep.subr.mxu0 0.0
    %1055 = vmatpush1.msra.mxu0 %v297
    %1056 = vmatprep.subr.mxu0 0.0
    %1057 = vmatpush1.msra.mxu0 %v298
    %1058 = vmatprep.subr.mxu0 0.0
    %1059 = vmatpush1.msra.mxu0 %v299
    %1060 = vmatprep.subr.mxu0 0.0
    %1061 = vmatpush1.msra.mxu0 %v300
    %1062 = vmatprep.subr.mxu0 0.0
    %1063 = vmatpush1.msra.mxu0 0.0
    %1064 = vmatprep.subr.mxu0 0.0
    %1065 = vmatpush1.msra.mxu0 0.0
    %1066 = vmatprep.subr.mxu0 0.0
    %1067 = vmatpush1.msra.mxu0 0.0
    %1068 = vmatprep.subr.mxu0 0.0
    %1069 = vmatpush1.msra.mxu0 0.0
    %1070 = vmatprep.subr.mxu0 0.0
    %1071 = vmatpush1.msra.mxu0 0.0
    %1072 = vmatprep.subr.mxu0 0.0
    %1073 = vmatpush1.msra.mxu0 0.0
    %1074 = vmatprep.subr.mxu0 0.0
    %1075 = vmatpush1.msra.mxu0 0.0
    %1076 = vmatprep.subr.mxu0 0.0
    %1077 = vmatpush1.msra.mxu0 0.0
    %1078 = vmatprep.subr.mxu0 0.0
    %1079 = vmatpush1.msra.mxu0 0.0
    %1080 = vmatprep.subr.mxu0 0.0
    %1081 = vmatpush1.msra.mxu0 0.0
    %1082 = vmatprep.subr.mxu0 0.0
    %1083 = vmatpush1.msra.mxu0 0.0
    %1084 = vmatprep.mubr.f32.mxu0 %v1015
    %1085 = vmatmul.mubr.f32.gmra.mrb[0].mxu0 %v1003
    %v1086 = vpop.f32.mrb[0].mxu0
    %v1087 = vadd.f32 0.0, %v1086
    %v1088 = vpop.f32.mrb[0].mxu0
    %1089 = vmatprep.mubr.f32.mxu0 %v1018
    %1090 = vmatmul.mubr.f32.gmra.mrb[0].mxu0 %v1009
    %v1091 = vpop.f32.mrb[0].mxu0
    %v1092 = vadd.f32 0.0, %v1091
    %v1093 = vpop.f32.mrb[0].mxu0
    %1094 = vdwg.mxu0
    %v1096 = vlaneseq
    %v1097 = vshrl.u32 %v1096, 7
    %v1098 = vsub.s32 0, %v1097
    %v1099 = vrot.slane %v322, %v1098
    %v1101 = vmul.f32 %v1087, %v1099
    %v1102 = vmul.f32 %v1092, %v1099
    %v1104 = vlaneseq
    %v1105 = vshrl.u32 %v1104, 7
    %v1106 = vsub.s32 0, %v1105
    %v1107 = vrot.slane %v323, %v1106
    %v1109 = vadd.f32 %v1101, %v1107
    %v1110 = vadd.f32 %v1102, %v1107
    %v1111 = vmul.f32 %v1109, 0.6666667
    %v1112 = vmul.f32 %v1110, 0.6666667
    %v1113 = vtanh.pop %v1111
    %v1114 = vtanh.pop %v1112
    %v1115 = vmul.f32 %v1113, 1.7159
    %v1116 = vmul.f32 %v1114, 1.7159
    %v1119 = vrot.slane %v1115, 1
    %v1120 = vrot.slane %v1116, 1
    %v1121 = vsel %vm362, %v1119, %v1120
    %vm1122 = vcmask 687104
    %v1123 = vsel %vm1122, %v1121, 0
    %v1125 = vsel %vm1122, %v1120, 0
    %v1128 = vsel %vm791, %v150, 0
    %v1131 = vsel %vm791, %v151, 0
    %1133 = vmatprep.subr.mxu0 %v131
    %1134 = vmatpush1.msra.mxu0 %v130
    %1135 = vmatprep.subr.mxu0 %v133
    %1136 = vmatpush1.msra.mxu0 %v132
    %1137 = vmatprep.subr.mxu0 %v135
    %1138 = vmatpush1.msra.mxu0 %v134
    %1139 = vmatprep.subr.mxu0 %v137
    %1140 = vmatpush1.msra.mxu0 %v136
    %1141 = vmatprep.subr.mxu0 %v139
    %1142 = vmatpush1.msra.mxu0 %v138
    %1143 = vmatprep.subr.mxu0 %v141
    %1144 = vmatpush1.msra.mxu0 %v140
    %1145 = vmatprep.subr.mxu0 %v143
    %1146 = vmatpush1.msra.mxu0 %v142
    %1147 = vmatprep.subr.mxu0 %v145
    %1148 = vmatpush1.msra.mxu0 %v144
    %1149 = vmatprep.subr.mxu0 %v147
    %1150 = vmatpush1.msra.mxu0 %v146
    %1151 = vmatprep.subr.mxu0 %v149
    %1152 = vmatpush1.msra.mxu0 %v148
    %1153 = vmatprep.subr.mxu0 %v1131
    %1154 = vmatpush1.msra.mxu0 %v1128
    %1155 = vmatprep.subr.mxu0 0.0
    %1156 = vmatpush1.msra.mxu0 0.0
    %1157 = vmatprep.subr.mxu0 0.0
    %1158 = vmatpush1.msra.mxu0 0.0
    %1159 = vmatprep.subr.mxu0 0.0
    %1160 = vmatpush1.msra.mxu0 0.0
    %1161 = vmatprep.subr.mxu0 0.0
    %1162 = vmatpush1.msra.mxu0 0.0
    %1163 = vmatprep.subr.mxu0 0.0
    %1164 = vmatpush1.msra.mxu0 0.0
    %1165 = vmatprep.subr.mxu0 0.0
    %1166 = vmatpush1.msra.mxu0 0.0
    %1167 = vmatprep.subr.mxu0 0.0
    %1168 = vmatpush1.msra.mxu0 0.0
    %1169 = vmatprep.subr.mxu0 0.0
    %1170 = vmatpush1.msra.mxu0 0.0
    %1171 = vmatprep.subr.mxu0 0.0
    %1172 = vmatpush1.msra.mxu0 0.0
    %1173 = vmatprep.subr.mxu0 0.0
    %1174 = vmatpush1.msra.mxu0 0.0
    %1175 = vmatprep.subr.mxu0 0.0
    %1176 = vmatpush1.msra.mxu0 0.0
    %1177 = vmatprep.subr.mxu0 0.0
    %1178 = vmatpush1.msra.mxu0 0.0
    %1179 = vmatprep.subr.mxu0 0.0
    %1180 = vmatpush1.msra.mxu0 0.0
    %1181 = vmatprep.subr.mxu0 0.0
    %1182 = vmatpush1.msra.mxu0 0.0
    %1183 = vmatprep.subr.mxu0 0.0
    %1184 = vmatpush1.msra.mxu0 0.0
    %1185 = vmatprep.subr.mxu0 0.0
    %1186 = vmatpush1.msra.mxu0 0.0
    %1187 = vmatprep.subr.mxu0 0.0
    %1188 = vmatpush1.msra.mxu0 0.0
    %1189 = vmatprep.subr.mxu0 0.0
    %1190 = vmatpush1.msra.mxu0 0.0
    %1191 = vmatprep.subr.mxu0 0.0
    %1192 = vmatpush1.msra.mxu0 0.0
    %1193 = vmatprep.subr.mxu0 0.0
    %1194 = vmatpush1.msra.mxu0 0.0
    %1195 = vmatprep.subr.mxu0 0.0
    %1196 = vmatpush1.msra.mxu0 0.0
    %1197 = vmatprep.mubr.f32.mxu0 0.0
    %1198 = vmatmul.mubr.f32.gmra.mrb[0].mxu0 %v1123
    %v1199 = vpop.f32.mrb[0].mxu0
    %v1200 = vadd.f32 0.0, %v1199
    %v1201 = vpop.f32.mrb[0].mxu0
    %v1202 = vadd.f32 0.0, %v1201
    %1203 = vmatprep.mubr.f32.mxu0 0.0
    %1204 = vmatmul.mubr.f32.gmra.mrb[0].mxu0 %v1125
    %v1205 = vpop.f32.mrb[0].mxu0
    %v1206 = vadd.f32 0.0, %v1205
    %v1207 = vpop.f32.mrb[0].mxu0
    %v1208 = vadd.f32 0.0, %v1207
    %1209 = vdwg.mxu0
    %v1210 = vsel %vm1122, %v1115, 0
    %v1212 = vsel %vm1122, %v1116, 0
    %v1215 = vsel %vm791, %v127, 0
    %v1218 = vsel %vm791, %v128, 0
    %1220 = vmatprep.subr.mxu0 %v108
    %1221 = vmatpush1.msra.mxu0 %v107
    %1222 = vmatprep.subr.mxu0 %v110
    %1223 = vmatpush1.msra.mxu0 %v109
    %1224 = vmatprep.subr.mxu0 %v112
    %1225 = vmatpush1.msra.mxu0 %v111
    %1226 = vmatprep.subr.mxu0 %v114
    %1227 = vmatpush1.msra.mxu0 %v113
    %1228 = vmatprep.subr.mxu0 %v116
    %1229 = vmatpush1.msra.mxu0 %v115
    %1230 = vmatprep.subr.mxu0 %v118
    %1231 = vmatpush1.msra.mxu0 %v117
    %1232 = vmatprep.subr.mxu0 %v120
    %1233 = vmatpush1.msra.mxu0 %v119
    %1234 = vmatprep.subr.mxu0 %v122
    %1235 = vmatpush1.msra.mxu0 %v121
    %1236 = vmatprep.subr.mxu0 %v124
    %1237 = vmatpush1.msra.mxu0 %v123
    %1238 = vmatprep.subr.mxu0 %v126
    %1239 = vmatpush1.msra.mxu0 %v125
    %1240 = vmatprep.subr.mxu0 %v1218
    %1241 = vmatpush1.msra.mxu0 %v1215
    %1242 = vmatprep.subr.mxu0 0.0
    %1243 = vmatpush1.msra.mxu0 0.0
    %1244 = vmatprep.subr.mxu0 0.0
    %1245 = vmatpush1.msra.mxu0 0.0
    %1246 = vmatprep.subr.mxu0 0.0
    %1247 = vmatpush1.msra.mxu0 0.0
    %1248 = vmatprep.subr.mxu0 0.0
    %1249 = vmatpush1.msra.mxu0 0.0
    %1250 = vmatprep.subr.mxu0 0.0
    %1251 = vmatpush1.msra.mxu0 0.0
    %1252 = vmatprep.subr.mxu0 0.0
    %1253 = vmatpush1.msra.mxu0 0.0
    %1254 = vmatprep.subr.mxu0 0.0
    %1255 = vmatpush1.msra.mxu0 0.0
    %1256 = vmatprep.subr.mxu0 0.0
    %1257 = vmatpush1.msra.mxu0 0.0
    %1258 = vmatprep.subr.mxu0 0.0
    %1259 = vmatpush1.msra.mxu0 0.0
    %1260 = vmatprep.subr.mxu0 0.0
    %1261 = vmatpush1.msra.mxu0 0.0
    %1262 = vmatprep.subr.mxu0 0.0
    %1263 = vmatpush1.msra.mxu0 0.0
    %1264 = vmatprep.subr.mxu0 0.0
    %1265 = vmatpush1.msra.mxu0 0.0
    %1266 = vmatprep.subr.mxu0 0.0
    %1267 = vmatpush1.msra.mxu0 0.0
    %1268 = vmatprep.subr.mxu0 0.0
    %1269 = vmatpush1.msra.mxu0 0.0
    %1270 = vmatprep.subr.mxu0 0.0
    %1271 = vmatpush1.msra.mxu0 0.0
    %1272 = vmatprep.subr.mxu0 0.0
    %1273 = vmatpush1.msra.mxu0 0.0
    %1274 = vmatprep.subr.mxu0 0.0
    %1275 = vmatpush1.msra.mxu0 0.0
    %1276 = vmatprep.subr.mxu0 0.0
    %1277 = vmatpush1.msra.mxu0 0.0
    %1278 = vmatprep.subr.mxu0 0.0
    %1279 = vmatpush1.msra.mxu0 0.0
    %1280 = vmatprep.subr.mxu0 0.0
    %1281 = vmatpush1.msra.mxu0 0.0
    %1282 = vmatprep.subr.mxu0 0.0
    %1283 = vmatpush1.msra.mxu0 0.0
    %1284 = vmatprep.mubr.f32.mxu0 0.0
    %1285 = vmatmul.mubr.f32.gmra.mrb[0].mxu0 %v1210
    %v1286 = vpop.f32.mrb[0].mxu0
    %v1287 = vadd.f32 %v1200, %v1286
    %v1288 = vpop.f32.mrb[0].mxu0
    %v1289 = vadd.f32 %v1202, %v1288
    %1290 = vmatprep.mubr.f32.mxu0 0.0
    %1291 = vmatmul.mubr.f32.gmra.mrb[0].mxu0 %v1212
    %v1292 = vpop.f32.mrb[0].mxu0
    %v1293 = vadd.f32 %v1206, %v1292
    %v1294 = vpop.f32.mrb[0].mxu0
    %v1295 = vadd.f32 %v1208, %v1294
    %1296 = vdwg.mxu0
    %v1297 = vrot.slane %v1115, 2
    %v1298 = vrot.slane %v1116, 2
    %v1299 = vsel %vm565, %v1297, %v1298
    %v1300 = vsel %vm1122, %v1299, 0
    %v1302 = vsel %vm1122, %v1298, 0
    %v1305 = vsel %vm791, %v173, 0
    %v1308 = vsel %vm791, %v174, 0
    %1310 = vmatprep.subr.mxu0 %v154
    %1311 = vmatpush1.msra.mxu0 %v153
    %1312 = vmatprep.subr.mxu0 %v156
    %1313 = vmatpush1.msra.mxu0 %v155
    %1314 = vmatprep.subr.mxu0 %v158
    %1315 = vmatpush1.msra.mxu0 %v157
    %1316 = vmatprep.subr.mxu0 %v160
    %1317 = vmatpush1.msra.mxu0 %v159
    %1318 = vmatprep.subr.mxu0 %v162
    %1319 = vmatpush1.msra.mxu0 %v161
    %1320 = vmatprep.subr.mxu0 %v164
    %1321 = vmatpush1.msra.mxu0 %v163
    %1322 = vmatprep.subr.mxu0 %v166
    %1323 = vmatpush1.msra.mxu0 %v165
    %1324 = vmatprep.subr.mxu0 %v168
    %1325 = vmatpush1.msra.mxu0 %v167
    %1326 = vmatprep.subr.mxu0 %v170
    %1327 = vmatpush1.msra.mxu0 %v169
    %1328 = vmatprep.subr.mxu0 %v172
    %1329 = vmatpush1.msra.mxu0 %v171
    %1330 = vmatprep.subr.mxu0 %v1308
    %1331 = vmatpush1.msra.mxu0 %v1305
    %1332 = vmatprep.subr.mxu0 0.0
    %1333 = vmatpush1.msra.mxu0 0.0
    %1334 = vmatprep.subr.mxu0 0.0
    %1335 = vmatpush1.msra.mxu0 0.0
    %1336 = vmatprep.subr.mxu0 0.0
    %1337 = vmatpush1.msra.mxu0 0.0
    %1338 = vmatprep.subr.mxu0 0.0
    %1339 = vmatpush1.msra.mxu0 0.0
    %1340 = vmatprep.subr.mxu0 0.0
    %1341 = vmatpush1.msra.mxu0 0.0
    %1342 = vmatprep.subr.mxu0 0.0
    %1343 = vmatpush1.msra.mxu0 0.0
    %1344 = vmatprep.subr.mxu0 0.0
    %1345 = vmatpush1.msra.mxu0 0.0
    %1346 = vmatprep.subr.mxu0 0.0
    %1347 = vmatpush1.msra.mxu0 0.0
    %1348 = vmatprep.subr.mxu0 0.0
    %1349 = vmatpush1.msra.mxu0 0.0
    %1350 = vmatprep.subr.mxu0 0.0
    %1351 = vmatpush1.msra.mxu0 0.0
    %1352 = vmatprep.subr.mxu0 0.0
    %1353 = vmatpush1.msra.mxu0 0.0
    %1354 = vmatprep.subr.mxu0 0.0
    %1355 = vmatpush1.msra.mxu0 0.0
    %1356 = vmatprep.subr.mxu0 0.0
    %1357 = vmatpush1.msra.mxu0 0.0
    %1358 = vmatprep.subr.mxu0 0.0
    %1359 = vmatpush1.msra.mxu0 0.0
    %1360 = vmatprep.subr.mxu0 0.0
    %1361 = vmatpush1.msra.mxu0 0.0
    %1362 = vmatprep.subr.mxu0 0.0
    %1363 = vmatpush1.msra.mxu0 0.0
    %1364 = vmatprep.subr.mxu0 0.0
    %1365 = vmatpush1.msra.mxu0 0.0
    %1366 = vmatprep.subr.mxu0 0.0
    %1367 = vmatpush1.msra.mxu0 0.0
    %1368 = vmatprep.subr.mxu0 0.0
    %1369 = vmatpush1.msra.mxu0 0.0
    %1370 = vmatprep.subr.mxu0 0.0
    %1371 = vmatpush1.msra.mxu0 0.0
    %1372 = vmatprep.subr.mxu0 0.0
    %1373 = vmatpush1.msra.mxu0 0.0
    %1374 = vmatprep.mubr.f32.mxu0 0.0
    %1375 = vmatmul.mubr.f32.gmra.mrb[0].mxu0 %v1300
    %v1376 = vpop.f32.mrb[0].mxu0
    %v1377 = vadd.f32 0.0, %v1376
    %v1378 = vpop.f32.mrb[0].mxu0
    %v1379 = vadd.f32 0.0, %v1378
    %1380 = vmatprep.mubr.f32.mxu0 0.0
    %1381 = vmatmul.mubr.f32.gmra.mrb[0].mxu0 %v1302
    %v1382 = vpop.f32.mrb[0].mxu0
    %v1383 = vadd.f32 0.0, %v1382
    %v1384 = vpop.f32.mrb[0].mxu0
    %v1385 = vadd.f32 0.0, %v1384
    %1386 = vdwg.mxu0
    %v1387 = vadd.f32 %v1287, %v1377
    %v1388 = vadd.f32 %v1289, %v1379
    %v1389 = vadd.f32 %v1293, %v1383
    %v1390 = vadd.f32 %v1295, %v1385
    %v1391 = vrot.slane %v1115, 3
    %v1392 = vrot.slane %v1116, 3
    %v1393 = vsel %vm678, %v1391, %v1392
    %v1394 = vsel %vm1122, %v1393, 0
    %v1396 = vsel %vm1122, %v1392, 0
    %v1399 = vsel %vm791, %v196, 0
    %v1402 = vsel %vm791, %v197, 0
    %1404 = vmatprep.subr.mxu0 %v177
    %1405 = vmatpush1.msra.mxu0 %v176
    %1406 = vmatprep.subr.mxu0 %v179
    %1407 = vmatpush1.msra.mxu0 %v178
    %1408 = vmatprep.subr.mxu0 %v181
    %1409 = vmatpush1.msra.mxu0 %v180
    %1410 = vmatprep.subr.mxu0 %v183
    %1411 = vmatpush1.msra.mxu0 %v182
    %1412 = vmatprep.subr.mxu0 %v185
    %1413 = vmatpush1.msra.mxu0 %v184
    %1414 = vmatprep.subr.mxu0 %v187
    %1415 = vmatpush1.msra.mxu0 %v186
    %1416 = vmatprep.subr.mxu0 %v189
    %1417 = vmatpush1.msra.mxu0 %v188
    %1418 = vmatprep.subr.mxu0 %v191
    %1419 = vmatpush1.msra.mxu0 %v190
    %1420 = vmatprep.subr.mxu0 %v193
    %1421 = vmatpush1.msra.mxu0 %v192
    %1422 = vmatprep.subr.mxu0 %v195
    %1423 = vmatpush1.msra.mxu0 %v194
    %1424 = vmatprep.subr.mxu0 %v1402
    %1425 = vmatpush1.msra.mxu0 %v1399
    %1426 = vmatprep.subr.mxu0 0.0
    %1427 = vmatpush1.msra.mxu0 0.0
    %1428 = vmatprep.subr.mxu0 0.0
    %1429 = vmatpush1.msra.mxu0 0.0
    %1430 = vmatprep.subr.mxu0 0.0
    %1431 = vmatpush1.msra.mxu0 0.0
    %1432 = vmatprep.subr.mxu0 0.0
    %1433 = vmatpush1.msra.mxu0 0.0
    %1434 = vmatprep.subr.mxu0 0.0
    %1435 = vmatpush1.msra.mxu0 0.0
    %1436 = vmatprep.subr.mxu0 0.0
    %1437 = vmatpush1.msra.mxu0 0.0
    %1438 = vmatprep.subr.mxu0 0.0
    %1439 = vmatpush1.msra.mxu0 0.0
    %1440 = vmatprep.subr.mxu0 0.0
    %1441 = vmatpush1.msra.mxu0 0.0
    %1442 = vmatprep.subr.mxu0 0.0
    %1443 = vmatpush1.msra.mxu0 0.0
    %1444 = vmatprep.subr.mxu0 0.0
    %1445 = vmatpush1.msra.mxu0 0.0
    %1446 = vmatprep.subr.mxu0 0.0
    %1447 = vmatpush1.msra.mxu0 0.0
    %1448 = vmatprep.subr.mxu0 0.0
    %1449 = vmatpush1.msra.mxu0 0.0
    %1450 = vmatprep.subr.mxu0 0.0
    %1451 = vmatpush1.msra.mxu0 0.0
    %1452 = vmatprep.subr.mxu0 0.0
    %1453 = vmatpush1.msra.mxu0 0.0
    %1454 = vmatprep.subr.mxu0 0.0
    %1455 = vmatpush1.msra.mxu0 0.0
    %1456 = vmatprep.subr.mxu0 0.0
    %1457 = vmatpush1.msra.mxu0 0.0
    %1458 = vmatprep.subr.mxu0 0.0
    %1459 = vmatpush1.msra.mxu0 0.0
    %1460 = vmatprep.subr.mxu0 0.0
    %1461 = vmatpush1.msra.mxu0 0.0
    %1462 = vmatprep.subr.mxu0 0.0
    %1463 = vmatpush1.msra.mxu0 0.0
    %1464 = vmatprep.subr.mxu0 0.0
    %1465 = vmatpush1.msra.mxu0 0.0
    %1466 = vmatprep.subr.mxu0 0.0
    %1467 = vmatpush1.msra.mxu0 0.0
    %1468 = vmatprep.mubr.f32.mxu0 0.0
    %1469 = vmatmul.mubr.f32.gmra.mrb[0].mxu0 %v1394
    %v1470 = vpop.f32.mrb[0].mxu0
    %v1471 = vadd.f32 0.0, %v1470
    %v1472 = vpop.f32.mrb[0].mxu0
    %v1473 = vadd.f32 0.0, %v1472
    %1474 = vmatprep.mubr.f32.mxu0 0.0
    %1475 = vmatmul.mubr.f32.gmra.mrb[0].mxu0 %v1396
    %v1476 = vpop.f32.mrb[0].mxu0
    %v1477 = vadd.f32 0.0, %v1476
    %v1478 = vpop.f32.mrb[0].mxu0
    %v1479 = vadd.f32 0.0, %v1478
    %1480 = vdwg.mxu0
    %v1481 = vadd.f32 %v1387, %v1471
    %v1482 = vadd.f32 %v1388, %v1473
    %v1483 = vadd.f32 %v1389, %v1477
    %v1484 = vadd.f32 %v1390, %v1479
    %v1485 = vrot.slane %v1115, 4
    %v1486 = vrot.slane %v1116, 4
    %v1487 = vsel %vm791, %v1485, %v1486
    %v1488 = vsel %vm1122, %v1487, 0
    %v1490 = vsel %vm1122, %v1486, 0
    %v1493 = vsel %vm791, %v219, 0
    %v1496 = vsel %vm791, %v220, 0
    %1498 = vmatprep.subr.mxu0 %v200
    %1499 = vmatpush1.msra.mxu0 %v199
    %1500 = vmatprep.subr.mxu0 %v202
    %1501 = vmatpush1.msra.mxu0 %v201
    %1502 = vmatprep.subr.mxu0 %v204
    %1503 = vmatpush1.msra.mxu0 %v203
    %1504 = vmatprep.subr.mxu0 %v206
    %1505 = vmatpush1.msra.mxu0 %v205
    %1506 = vmatprep.subr.mxu0 %v208
    %1507 = vmatpush1.msra.mxu0 %v207
    %1508 = vmatprep.subr.mxu0 %v210
    %1509 = vmatpush1.msra.mxu0 %v209
    %1510 = vmatprep.subr.mxu0 %v212
    %1511 = vmatpush1.msra.mxu0 %v211
    %1512 = vmatprep.subr.mxu0 %v214
    %1513 = vmatpush1.msra.mxu0 %v213
    %1514 = vmatprep.subr.mxu0 %v216
    %1515 = vmatpush1.msra.mxu0 %v215
    %1516 = vmatprep.subr.mxu0 %v218
    %1517 = vmatpush1.msra.mxu0 %v217
    %1518 = vmatprep.subr.mxu0 %v1496
    %1519 = vmatpush1.msra.mxu0 %v1493
    %1520 = vmatprep.subr.mxu0 0.0
    %1521 = vmatpush1.msra.mxu0 0.0
    %1522 = vmatprep.subr.mxu0 0.0
    %1523 = vmatpush1.msra.mxu0 0.0
    %1524 = vmatprep.subr.mxu0 0.0
    %1525 = vmatpush1.msra.mxu0 0.0
    %1526 = vmatprep.subr.mxu0 0.0
    %1527 = vmatpush1.msra.mxu0 0.0
    %1528 = vmatprep.subr.mxu0 0.0
    %1529 = vmatpush1.msra.mxu0 0.0
    %1530 = vmatprep.subr.mxu0 0.0
    %1531 = vmatpush1.msra.mxu0 0.0
    %1532 = vmatprep.subr.mxu0 0.0
    %1533 = vmatpush1.msra.mxu0 0.0
    %1534 = vmatprep.subr.mxu0 0.0
    %1535 = vmatpush1.msra.mxu0 0.0
    %1536 = vmatprep.subr.mxu0 0.0
    %1537 = vmatpush1.msra.mxu0 0.0
    %1538 = vmatprep.subr.mxu0 0.0
    %1539 = vmatpush1.msra.mxu0 0.0
    %1540 = vmatprep.subr.mxu0 0.0
    %1541 = vmatpush1.msra.mxu0 0.0
    %1542 = vmatprep.subr.mxu0 0.0
    %1543 = vmatpush1.msra.mxu0 0.0
    %1544 = vmatprep.subr.mxu0 0.0
    %1545 = vmatpush1.msra.mxu0 0.0
    %1546 = vmatprep.subr.mxu0 0.0
    %1547 = vmatpush1.msra.mxu0 0.0
    %1548 = vmatprep.subr.mxu0 0.0
    %1549 = vmatpush1.msra.mxu0 0.0
    %1550 = vmatprep.subr.mxu0 0.0
    %1551 = vmatpush1.msra.mxu0 0.0
    %1552 = vmatprep.subr.mxu0 0.0
    %1553 = vmatpush1.msra.mxu0 0.0
    %1554 = vmatprep.subr.mxu0 0.0
    %1555 = vmatpush1.msra.mxu0 0.0
    %1556 = vmatprep.subr.mxu0 0.0
    %1557 = vmatpush1.msra.mxu0 0.0
    %1558 = vmatprep.subr.mxu0 0.0
    %1559 = vmatpush1.msra.mxu0 0.0
    %1560 = vmatprep.subr.mxu0 0.0
    %1561 = vmatpush1.msra.mxu0 0.0
    %1562 = vmatprep.mubr.f32.mxu0 0.0
    %1563 = vmatmul.mubr.f32.gmra.mrb[0].mxu0 %v1488
    %v1564 = vpop.f32.mrb[0].mxu0
    %v1565 = vadd.f32 0.0, %v1564
    %v1566 = vpop.f32.mrb[0].mxu0
    %v1567 = vadd.f32 0.0, %v1566
    %1568 = vmatprep.mubr.f32.mxu0 0.0
    %1569 = vmatmul.mubr.f32.gmra.mrb[0].mxu0 %v1490
    %v1570 = vpop.f32.mrb[0].mxu0
    %v1571 = vadd.f32 0.0, %v1570
    %v1572 = vpop.f32.mrb[0].mxu0
    %v1573 = vadd.f32 0.0, %v1572
    %1574 = vdwg.mxu0
    %v1575 = vadd.f32 %v1481, %v1565
    %v1576 = vadd.f32 %v1482, %v1567
    %v1577 = vadd.f32 %v1483, %v1571
    %v1578 = vadd.f32 %v1484, %v1573
    %v1580 = vlaneseq
    %v1581 = vshrl.u32 %v1580, 7
    %v1582 = vsub.s32 0, %v1581
    %v1583 = vrot.slane %v276, %v1582
    %v1584 = vlaneseq
    %v1585 = vshrl.u32 %v1584, 7
    %v1586 = vsub.s32 1, %v1585
    %v1587 = vrot.slane %v276, %v1586
    %v1590 = vadd.f32 %v1575, %v1583
    %v1591 = vadd.f32 %v1576, %v1587
    %v1592 = vadd.f32 %v1577, %v1583
    %v1593 = vadd.f32 %v1578, %v1587
    %vm1594 = vcmask 80896
    %v1596 = vsel %vm1594, %v301, 0
    %vm1598 = vcmask 1041408
    %v1600 = vsel %vm1598, %v1592, 0
    %v1603 = vsel %vm1598, %v1593, 0
    %1605 = vmatprep.subr.mxu0 %v1591
    %1606 = vmatpush1.msra.mxu0 %v1590
    %1607 = vmatprep.subr.mxu0 %v1603
    %1608 = vmatpush1.msra.mxu0 %v1600
    %1609 = vmatprep.subr.mxu0 0.0
    %1610 = vmatpush1.msra.mxu0 0.0
    %1611 = vmatprep.subr.mxu0 0.0
    %1612 = vmatpush1.msra.mxu0 0.0
    %1613 = vmatprep.subr.mxu0 0.0
    %1614 = vmatpush1.msra.mxu0 0.0
    %1615 = vmatprep.subr.mxu0 0.0
    %1616 = vmatpush1.msra.mxu0 0.0
    %1617 = vmatprep.subr.mxu0 0.0
    %1618 = vmatpush1.msra.mxu0 0.0
    %1619 = vmatprep.subr.mxu0 0.0
    %1620 = vmatpush1.msra.mxu0 0.0
    %1621 = vmatprep.subr.mxu0 0.0
    %1622 = vmatpush1.msra.mxu0 0.0
    %1623 = vmatprep.subr.mxu0 0.0
    %1624 = vmatpush1.msra.mxu0 0.0
    %1625 = vmatprep.subr.mxu0 0.0
    %1626 = vmatpush1.msra.mxu0 0.0
    %1627 = vmatprep.subr.mxu0 0.0
    %1628 = vmatpush1.msra.mxu0 0.0
    %1629 = vmatprep.subr.mxu0 0.0
    %1630 = vmatpush1.msra.mxu0 0.0
    %1631 = vmatprep.subr.mxu0 0.0
    %1632 = vmatpush1.msra.mxu0 0.0
    %1633 = vmatprep.subr.mxu0 0.0
    %1634 = vmatpush1.msra.mxu0 0.0
    %1635 = vmatprep.subr.mxu0 0.0
    %1636 = vmatpush1.msra.mxu0 0.0
    %1637 = vmatprep.subr.mxu0 0.0
    %1638 = vmatpush1.msra.mxu0 0.0
    %1639 = vmatprep.subr.mxu0 0.0
    %1640 = vmatpush1.msra.mxu0 0.0
    %1641 = vmatprep.subr.mxu0 0.0
    %1642 = vmatpush1.msra.mxu0 0.0
    %1643 = vmatprep.subr.mxu0 0.0
    %1644 = vmatpush1.msra.mxu0 0.0
    %1645 = vmatprep.subr.mxu0 0.0
    %1646 = vmatpush1.msra.mxu0 0.0
    %1647 = vmatprep.subr.mxu0 0.0
    %1648 = vmatpush1.msra.mxu0 0.0
    %1649 = vmatprep.subr.mxu0 0.0
    %1650 = vmatpush1.msra.mxu0 0.0
    %1651 = vmatprep.subr.mxu0 0.0
    %1652 = vmatpush1.msra.mxu0 0.0
    %1653 = vmatprep.subr.mxu0 0.0
    %1654 = vmatpush1.msra.mxu0 0.0
    %1655 = vmatprep.subr.mxu0 0.0
    %1656 = vmatpush1.msra.mxu0 0.0
    %1657 = vmatprep.subr.mxu0 0.0
    %1658 = vmatpush1.msra.mxu0 0.0
    %1659 = vmatprep.subr.mxu0 0.0
    %1660 = vmatpush1.msra.mxu0 0.0
    %1661 = vmatprep.subr.mxu0 0.0
    %1662 = vmatpush1.msra.mxu0 0.0
    %1663 = vmatprep.subr.mxu0 0.0
    %1664 = vmatpush1.msra.mxu0 0.0
    %1665 = vmatprep.subr.mxu0 0.0
    %1666 = vmatpush1.msra.mxu0 0.0
    %1667 = vmatprep.subr.mxu0 0.0
    %1668 = vmatpush1.msra.mxu0 0.0
    %1669 = vmatprep.mubr.f32.mxu0 0.0
    %1670 = vmatmul.mubr.f32.gmra.mrb[0].mxu0 %v1596
    %v1671 = vpop.f32.mrb[0].mxu0
    %v1672 = vadd.f32 0.0, %v1671
    %v1673 = vpop.f32.mrb[0].mxu0
    %v1674 = vadd.f32 0.0, %v1673
    %1675 = vdwg.mxu0
    %v1677 = vsel %vm370, %v1674, 0
    %1679 = vmatprep.subr.mxu0 0.0
    %1680 = vmatpush1.msra.mxu0 %v302
    %1681 = vmatprep.subr.mxu0 0.0
    %1682 = vmatpush1.msra.mxu0 %v303
    %1683 = vmatprep.subr.mxu0 0.0
    %1684 = vmatpush1.msra.mxu0 %v304
    %1685 = vmatprep.subr.mxu0 0.0
    %1686 = vmatpush1.msra.mxu0 %v305
    %1687 = vmatprep.subr.mxu0 0.0
    %1688 = vmatpush1.msra.mxu0 %v306
    %1689 = vmatprep.subr.mxu0 0.0
    %1690 = vmatpush1.msra.mxu0 %v307
    %1691 = vmatprep.subr.mxu0 0.0
    %1692 = vmatpush1.msra.mxu0 %v308
    %1693 = vmatprep.subr.mxu0 0.0
    %1694 = vmatpush1.msra.mxu0 %v309
    %1695 = vmatprep.subr.mxu0 0.0
    %1696 = vmatpush1.msra.mxu0 %v310
    %1697 = vmatprep.subr.mxu0 0.0
    %1698 = vmatpush1.msra.mxu0 %v311
    %1699 = vmatprep.subr.mxu0 0.0
    %1700 = vmatpush1.msra.mxu0 %v312
    %1701 = vmatprep.subr.mxu0 0.0
    %1702 = vmatpush1.msra.mxu0 %v313
    %1703 = vmatprep.subr.mxu0 0.0
    %1704 = vmatpush1.msra.mxu0 %v314
    %1705 = vmatprep.subr.mxu0 0.0
    %1706 = vmatpush1.msra.mxu0 %v315
    %1707 = vmatprep.subr.mxu0 0.0
    %1708 = vmatpush1.msra.mxu0 %v316
    %1709 = vmatprep.subr.mxu0 0.0
    %1710 = vmatpush1.msra.mxu0 %v317
    %1711 = vmatprep.subr.mxu0 0.0
    %1712 = vmatpush1.msra.mxu0 %v318
    %1713 = vmatprep.subr.mxu0 0.0
    %1714 = vmatpush1.msra.mxu0 %v319
    %1715 = vmatprep.subr.mxu0 0.0
    %1716 = vmatpush1.msra.mxu0 %v320
    %1717 = vmatprep.subr.mxu0 0.0
    %1718 = vmatpush1.msra.mxu0 %v321
    %1719 = vmatprep.subr.mxu0 0.0
    %1720 = vmatpush1.msra.mxu0 0.0
    %1721 = vmatprep.subr.mxu0 0.0
    %1722 = vmatpush1.msra.mxu0 0.0
    %1723 = vmatprep.subr.mxu0 0.0
    %1724 = vmatpush1.msra.mxu0 0.0
    %1725 = vmatprep.subr.mxu0 0.0
    %1726 = vmatpush1.msra.mxu0 0.0
    %1727 = vmatprep.subr.mxu0 0.0
    %1728 = vmatpush1.msra.mxu0 0.0
    %1729 = vmatprep.subr.mxu0 0.0
    %1730 = vmatpush1.msra.mxu0 0.0
    %1731 = vmatprep.subr.mxu0 0.0
    %1732 = vmatpush1.msra.mxu0 0.0
    %1733 = vmatprep.subr.mxu0 0.0
    %1734 = vmatpush1.msra.mxu0 0.0
    %1735 = vmatprep.subr.mxu0 0.0
    %1736 = vmatpush1.msra.mxu0 0.0
    %1737 = vmatprep.subr.mxu0 0.0
    %1738 = vmatpush1.msra.mxu0 0.0
    %1739 = vmatprep.subr.mxu0 0.0
    %1740 = vmatpush1.msra.mxu0 0.0
    %1741 = vmatprep.subr.mxu0 0.0
    %1742 = vmatpush1.msra.mxu0 0.0
    %1743 = vmatprep.mubr.f32.mxu0 %v1677
    %1744 = vmatmul.mubr.f32.gmra.mrb[0].mxu0 %v1672
    %v1745 = vpop.f32.mrb[0].mxu0
    %v1746 = vadd.f32 0.0, %v1745
    %v1747 = vpop.f32.mrb[0].mxu0
    %1748 = vdwg.mxu0
    %v1750 = vlaneseq
    %v1751 = vshrl.u32 %v1750, 7
    %v1752 = vsub.s32 0, %v1751
    %v1753 = vrot.slane %v324, %v1752
    %v1755 = vmul.f32 %v1746, %v1753
    %v1757 = vlaneseq
    %v1758 = vshrl.u32 %v1757, 7
    %v1759 = vsub.s32 0, %v1758
    %v1760 = vrot.slane %v325, %v1759
    %v1762 = vadd.f32 %v1755, %v1760
    %v1763 = vmul.f32 %v1762, 0.6666667
    %v1764 = vtanh.pop %v1763
    %v1765 = vmul.f32 %v1764, 1.7159
    %v1767 = vrot.slane %v1765, 1
    %vm1768 = vcmask 654336
    %v1769 = vsel %vm1768, %v1767, 0
    %1771 = vmatprep.subr.mxu0 0.0
    %1772 = vmatpush1.msra.mxu0 %v232
    %1773 = vmatprep.subr.mxu0 0.0
    %1774 = vmatpush1.msra.mxu0 %v233
    %1775 = vmatprep.subr.mxu0 0.0
    %1776 = vmatpush1.msra.mxu0 %v234
    %1777 = vmatprep.subr.mxu0 0.0
    %1778 = vmatpush1.msra.mxu0 %v235
    %1779 = vmatprep.subr.mxu0 0.0
    %1780 = vmatpush1.msra.mxu0 %v236
    %1781 = vmatprep.subr.mxu0 0.0
    %1782 = vmatpush1.msra.mxu0 %v237
    %1783 = vmatprep.subr.mxu0 0.0
    %1784 = vmatpush1.msra.mxu0 %v238
    %1785 = vmatprep.subr.mxu0 0.0
    %1786 = vmatpush1.msra.mxu0 %v239
    %1787 = vmatprep.subr.mxu0 0.0
    %1788 = vmatpush1.msra.mxu0 %v240
    %1789 = vmatprep.subr.mxu0 0.0
    %1790 = vmatpush1.msra.mxu0 %v241
    %1791 = vmatprep.subr.mxu0 0.0
    %1792 = vmatpush1.msra.mxu0 0.0
    %1793 = vmatprep.subr.mxu0 0.0
    %1794 = vmatpush1.msra.mxu0 0.0
    %1795 = vmatprep.subr.mxu0 0.0
    %1796 = vmatpush1.msra.mxu0 0.0
    %1797 = vmatprep.subr.mxu0 0.0
    %1798 = vmatpush1.msra.mxu0 0.0
    %1799 = vmatprep.subr.mxu0 0.0
    %1800 = vmatpush1.msra.mxu0 0.0
    %1801 = vmatprep.subr.mxu0 0.0
    %1802 = vmatpush1.msra.mxu0 0.0
    %1803 = vmatprep.subr.mxu0 0.0
    %1804 = vmatpush1.msra.mxu0 0.0
    %1805 = vmatprep.subr.mxu0 0.0
    %1806 = vmatpush1.msra.mxu0 0.0
    %1807 = vmatprep.subr.mxu0 0.0
    %1808 = vmatpush1.msra.mxu0 0.0
    %1809 = vmatprep.subr.mxu0 0.0
    %1810 = vmatpush1.msra.mxu0 0.0
    %1811 = vmatprep.subr.mxu0 0.0
    %1812 = vmatpush1.msra.mxu0 0.0
    %1813 = vmatprep.subr.mxu0 0.0
    %1814 = vmatpush1.msra.mxu0 0.0
    %1815 = vmatprep.subr.mxu0 0.0
    %1816 = vmatpush1.msra.mxu0 0.0
    %1817 = vmatprep.subr.mxu0 0.0
    %1818 = vmatpush1.msra.mxu0 0.0
    %1819 = vmatprep.subr.mxu0 0.0
    %1820 = vmatpush1.msra.mxu0 0.0
    %1821 = vmatprep.subr.mxu0 0.0
    %1822 = vmatpush1.msra.mxu0 0.0
    %1823 = vmatprep.subr.mxu0 0.0
    %1824 = vmatpush1.msra.mxu0 0.0
    %1825 = vmatprep.subr.mxu0 0.0
    %1826 = vmatpush1.msra.mxu0 0.0
    %1827 = vmatprep.subr.mxu0 0.0
    %1828 = vmatpush1.msra.mxu0 0.0
    %1829 = vmatprep.subr.mxu0 0.0
    %1830 = vmatpush1.msra.mxu0 0.0
    %1831 = vmatprep.subr.mxu0 0.0
    %1832 = vmatpush1.msra.mxu0 0.0
    %1833 = vmatprep.subr.mxu0 0.0
    %1834 = vmatpush1.msra.mxu0 0.0
    %1835 = vmatprep.mubr.f32.mxu0 0.0
    %1836 = vmatmul.mubr.f32.gmra.mrb[0].mxu0 %v1769
    %v1837 = vpop.f32.mrb[0].mxu0
    %v1838 = vadd.f32 0.0, %v1837
    %v1839 = vpop.f32.mrb[0].mxu0
    %1840 = vdwg.mxu0
    %v1841 = vsel %vm1768, %v1765, 0
    %1843 = vmatprep.subr.mxu0 0.0
    %1844 = vmatpush1.msra.mxu0 %v221
    %1845 = vmatprep.subr.mxu0 0.0
    %1846 = vmatpush1.msra.mxu0 %v222
    %1847 = vmatprep.subr.mxu0 0.0
    %1848 = vmatpush1.msra.mxu0 %v223
    %1849 = vmatprep.subr.mxu0 0.0
    %1850 = vmatpush1.msra.mxu0 %v224
    %1851 = vmatprep.subr.mxu0 0.0
    %1852 = vmatpush1.msra.mxu0 %v225
    %1853 = vmatprep.subr.mxu0 0.0
    %1854 = vmatpush1.msra.mxu0 %v226
    %1855 = vmatprep.subr.mxu0 0.0
    %1856 = vmatpush1.msra.mxu0 %v227
    %1857 = vmatprep.subr.mxu0 0.0
    %1858 = vmatpush1.msra.mxu0 %v228
    %1859 = vmatprep.subr.mxu0 0.0
    %1860 = vmatpush1.msra.mxu0 %v229
    %1861 = vmatprep.subr.mxu0 0.0
    %1862 = vmatpush1.msra.mxu0 %v230
    %1863 = vmatprep.subr.mxu0 0.0
    %1864 = vmatpush1.msra.mxu0 0.0
    %1865 = vmatprep.subr.mxu0 0.0
    %1866 = vmatpush1.msra.mxu0 0.0
    %1867 = vmatprep.subr.mxu0 0.0
    %1868 = vmatpush1.msra.mxu0 0.0
    %1869 = vmatprep.subr.mxu0 0.0
    %1870 = vmatpush1.msra.mxu0 0.0
    %1871 = vmatprep.subr.mxu0 0.0
    %1872 = vmatpush1.msra.mxu0 0.0
    %1873 = vmatprep.subr.mxu0 0.0
    %1874 = vmatpush1.msra.mxu0 0.0
    %1875 = vmatprep.subr.mxu0 0.0
    %1876 = vmatpush1.msra.mxu0 0.0
    %1877 = vmatprep.subr.mxu0 0.0
    %1878 = vmatpush1.msra.mxu0 0.0
    %1879 = vmatprep.subr.mxu0 0.0
    %1880 = vmatpush1.msra.mxu0 0.0
    %1881 = vmatprep.subr.mxu0 0.0
    %1882 = vmatpush1.msra.mxu0 0.0
    %1883 = vmatprep.subr.mxu0 0.0
    %1884 = vmatpush1.msra.mxu0 0.0
    %1885 = vmatprep.subr.mxu0 0.0
    %1886 = vmatpush1.msra.mxu0 0.0
    %1887 = vmatprep.subr.mxu0 0.0
    %1888 = vmatpush1.msra.mxu0 0.0
    %1889 = vmatprep.subr.mxu0 0.0
    %1890 = vmatpush1.msra.mxu0 0.0
    %1891 = vmatprep.subr.mxu0 0.0
    %1892 = vmatpush1.msra.mxu0 0.0
    %1893 = vmatprep.subr.mxu0 0.0
    %1894 = vmatpush1.msra.mxu0 0.0
    %1895 = vmatprep.subr.mxu0 0.0
    %1896 = vmatpush1.msra.mxu0 0.0
    %1897 = vmatprep.subr.mxu0 0.0
    %1898 = vmatpush1.msra.mxu0 0.0
    %1899 = vmatprep.subr.mxu0 0.0
    %1900 = vmatpush1.msra.mxu0 0.0
    %1901 = vmatprep.subr.mxu0 0.0
    %1902 = vmatpush1.msra.mxu0 0.0
    %1903 = vmatprep.subr.mxu0 0.0
    %1904 = vmatpush1.msra.mxu0 0.0
    %1905 = vmatprep.subr.mxu0 0.0
    %1906 = vmatpush1.msra.mxu0 0.0
    %1907 = vmatprep.mubr.f32.mxu0 0.0
    %1908 = vmatmul.mubr.f32.gmra.mrb[0].mxu0 %v1841
    %v1909 = vpop.f32.mrb[0].mxu0
    %v1910 = vadd.f32 %v1838, %v1909
    %v1911 = vpop.f32.mrb[0].mxu0
    %1912 = vdwg.mxu0
    %v1913 = vrot.slane %v1765, 2
    %v1914 = vsel %vm1768, %v1913, 0
    %1916 = vmatprep.subr.mxu0 0.0
    %1917 = vmatpush1.msra.mxu0 %v243
    %1918 = vmatprep.subr.mxu0 0.0
    %1919 = vmatpush1.msra.mxu0 %v244
    %1920 = vmatprep.subr.mxu0 0.0
    %1921 = vmatpush1.msra.mxu0 %v245
    %1922 = vmatprep.subr.mxu0 0.0
    %1923 = vmatpush1.msra.mxu0 %v246
    %1924 = vmatprep.subr.mxu0 0.0
    %1925 = vmatpush1.msra.mxu0 %v247
    %1926 = vmatprep.subr.mxu0 0.0
    %1927 = vmatpush1.msra.mxu0 %v248
    %1928 = vmatprep.subr.mxu0 0.0
    %1929 = vmatpush1.msra.mxu0 %v249
    %1930 = vmatprep.subr.mxu0 0.0
    %1931 = vmatpush1.msra.mxu0 %v250
    %1932 = vmatprep.subr.mxu0 0.0
    %1933 = vmatpush1.msra.mxu0 %v251
    %1934 = vmatprep.subr.mxu0 0.0
    %1935 = vmatpush1.msra.mxu0 %v252
    %1936 = vmatprep.subr.mxu0 0.0
    %1937 = vmatpush1.msra.mxu0 0.0
    %1938 = vmatprep.subr.mxu0 0.0
    %1939 = vmatpush1.msra.mxu0 0.0
    %1940 = vmatprep.subr.mxu0 0.0
    %1941 = vmatpush1.msra.mxu0 0.0
    %1942 = vmatprep.subr.mxu0 0.0
    %1943 = vmatpush1.msra.mxu0 0.0
    %1944 = vmatprep.subr.mxu0 0.0
    %1945 = vmatpush1.msra.mxu0 0.0
    %1946 = vmatprep.subr.mxu0 0.0
    %1947 = vmatpush1.msra.mxu0 0.0
    %1948 = vmatprep.subr.mxu0 0.0
    %1949 = vmatpush1.msra.mxu0 0.0
    %1950 = vmatprep.subr.mxu0 0.0
    %1951 = vmatpush1.msra.mxu0 0.0
    %1952 = vmatprep.subr.mxu0 0.0
    %1953 = vmatpush1.msra.mxu0 0.0
    %1954 = vmatprep.subr.mxu0 0.0
    %1955 = vmatpush1.msra.mxu0 0.0
    %1956 = vmatprep.subr.mxu0 0.0
    %1957 = vmatpush1.msra.mxu0 0.0
    %1958 = vmatprep.subr.mxu0 0.0
    %1959 = vmatpush1.msra.mxu0 0.0
    %1960 = vmatprep.subr.mxu0 0.0
    %1961 = vmatpush1.msra.mxu0 0.0
    %1962 = vmatprep.subr.mxu0 0.0
    %1963 = vmatpush1.msra.mxu0 0.0
    %1964 = vmatprep.subr.mxu0 0.0
    %1965 = vmatpush1.msra.mxu0 0.0
    %1966 = vmatprep.subr.mxu0 0.0
    %1967 = vmatpush1.msra.mxu0 0.0
    %1968 = vmatprep.subr.mxu0 0.0
    %1969 = vmatpush1.msra.mxu0 0.0
    %1970 = vmatprep.subr.mxu0 0.0
    %1971 = vmatpush1.msra.mxu0 0.0
    %1972 = vmatprep.subr.mxu0 0.0
    %1973 = vmatpush1.msra.mxu0 0.0
    %1974 = vmatprep.subr.mxu0 0.0
    %1975 = vmatpush1.msra.mxu0 0.0
    %1976 = vmatprep.subr.mxu0 0.0
    %1977 = vmatpush1.msra.mxu0 0.0
    %1978 = vmatprep.subr.mxu0 0.0
    %1979 = vmatpush1.msra.mxu0 0.0
    %1980 = vmatprep.mubr.f32.mxu0 0.0
    %1981 = vmatmul.mubr.f32.gmra.mrb[0].mxu0 %v1914
    %v1982 = vpop.f32.mrb[0].mxu0
    %v1983 = vadd.f32 0.0, %v1982
    %v1984 = vpop.f32.mrb[0].mxu0
    %1985 = vdwg.mxu0
    %v1986 = vadd.f32 %v1910, %v1983
    %v1987 = vrot.slane %v1765, 3
    %v1988 = vsel %vm1768, %v1987, 0
    %1990 = vmatprep.subr.mxu0 0.0
    %1991 = vmatpush1.msra.mxu0 %v254
    %1992 = vmatprep.subr.mxu0 0.0
    %1993 = vmatpush1.msra.mxu0 %v255
    %1994 = vmatprep.subr.mxu0 0.0
    %1995 = vmatpush1.msra.mxu0 %v256
    %1996 = vmatprep.subr.mxu0 0.0
    %1997 = vmatpush1.msra.mxu0 %v257
    %1998 = vmatprep.subr.mxu0 0.0
    %1999 = vmatpush1.msra.mxu0 %v258
    %2000 = vmatprep.subr.mxu0 0.0
    %2001 = vmatpush1.msra.mxu0 %v259
    %2002 = vmatprep.subr.mxu0 0.0
    %2003 = vmatpush1.msra.mxu0 %v260
    %2004 = vmatprep.subr.mxu0 0.0
    %2005 = vmatpush1.msra.mxu0 %v261
    %2006 = vmatprep.subr.mxu0 0.0
    %2007 = vmatpush1.msra.mxu0 %v262
    %2008 = vmatprep.subr.mxu0 0.0
    %2009 = vmatpush1.msra.mxu0 %v263
    %2010 = vmatprep.subr.mxu0 0.0
    %2011 = vmatpush1.msra.mxu0 0.0
    %2012 = vmatprep.subr.mxu0 0.0
    %2013 = vmatpush1.msra.mxu0 0.0
    %2014 = vmatprep.subr.mxu0 0.0
    %2015 = vmatpush1.msra.mxu0 0.0
    %2016 = vmatprep.subr.mxu0 0.0
    %2017 = vmatpush1.msra.mxu0 0.0
    %2018 = vmatprep.subr.mxu0 0.0
    %2019 = vmatpush1.msra.mxu0 0.0
    %2020 = vmatprep.subr.mxu0 0.0
    %2021 = vmatpush1.msra.mxu0 0.0
    %2022 = vmatprep.subr.mxu0 0.0
    %2023 = vmatpush1.msra.mxu0 0.0
    %2024 = vmatprep.subr.mxu0 0.0
    %2025 = vmatpush1.msra.mxu0 0.0
    %2026 = vmatprep.subr.mxu0 0.0
    %2027 = vmatpush1.msra.mxu0 0.0
    %2028 = vmatprep.subr.mxu0 0.0
    %2029 = vmatpush1.msra.mxu0 0.0
    %2030 = vmatprep.subr.mxu0 0.0
    %2031 = vmatpush1.msra.mxu0 0.0
    %2032 = vmatprep.subr.mxu0 0.0
    %2033 = vmatpush1.msra.mxu0 0.0
    %2034 = vmatprep.subr.mxu0 0.0
    %2035 = vmatpush1.msra.mxu0 0.0
    %2036 = vmatprep.subr.mxu0 0.0
    %2037 = vmatpush1.msra.mxu0 0.0
    %2038 = vmatprep.subr.mxu0 0.0
    %2039 = vmatpush1.msra.mxu0 0.0
    %2040 = vmatprep.subr.mxu0 0.0
    %2041 = vmatpush1.msra.mxu0 0.0
    %2042 = vmatprep.subr.mxu0 0.0
    %2043 = vmatpush1.msra.mxu0 0.0
    %2044 = vmatprep.subr.mxu0 0.0
    %2045 = vmatpush1.msra.mxu0 0.0
    %2046 = vmatprep.subr.mxu0 0.0
    %2047 = vmatpush1.msra.mxu0 0.0
    %2048 = vmatprep.subr.mxu0 0.0
    %2049 = vmatpush1.msra.mxu0 0.0
    %2050 = vmatprep.subr.mxu0 0.0
    %2051 = vmatpush1.msra.mxu0 0.0
    %2052 = vmatprep.subr.mxu0 0.0
    %2053 = vmatpush1.msra.mxu0 0.0
    %2054 = vmatprep.mubr.f32.mxu0 0.0
    %2055 = vmatmul.mubr.f32.gmra.mrb[0].mxu0 %v1988
    %v2056 = vpop.f32.mrb[0].mxu0
    %v2057 = vadd.f32 0.0, %v2056
    %v2058 = vpop.f32.mrb[0].mxu0
    %2059 = vdwg.mxu0
    %v2060 = vadd.f32 %v1986, %v2057
    %v2061 = vrot.slane %v1765, 4
    %v2062 = vsel %vm1768, %v2061, 0
    %2064 = vmatprep.subr.mxu0 0.0
    %2065 = vmatpush1.msra.mxu0 %v265
    %2066 = vmatprep.subr.mxu0 0.0
    %2067 = vmatpush1.msra.mxu0 %v266
    %2068 = vmatprep.subr.mxu0 0.0
    %2069 = vmatpush1.msra.mxu0 %v267
    %2070 = vmatprep.subr.mxu0 0.0
    %2071 = vmatpush1.msra.mxu0 %v268
    %2072 = vmatprep.subr.mxu0 0.0
    %2073 = vmatpush1.msra.mxu0 %v269
    %2074 = vmatprep.subr.mxu0 0.0
    %2075 = vmatpush1.msra.mxu0 %v270
    %2076 = vmatprep.subr.mxu0 0.0
    %2077 = vmatpush1.msra.mxu0 %v271
    %2078 = vmatprep.subr.mxu0 0.0
    %2079 = vmatpush1.msra.mxu0 %v272
    %2080 = vmatprep.subr.mxu0 0.0
    %2081 = vmatpush1.msra.mxu0 %v273
    %2082 = vmatprep.subr.mxu0 0.0
    %2083 = vmatpush1.msra.mxu0 %v274
    %2084 = vmatprep.subr.mxu0 0.0
    %2085 = vmatpush1.msra.mxu0 0.0
    %2086 = vmatprep.subr.mxu0 0.0
    %2087 = vmatpush1.msra.mxu0 0.0
    %2088 = vmatprep.subr.mxu0 0.0
    %2089 = vmatpush1.msra.mxu0 0.0
    %2090 = vmatprep.subr.mxu0 0.0
    %2091 = vmatpush1.msra.mxu0 0.0
    %2092 = vmatprep.subr.mxu0 0.0
    %2093 = vmatpush1.msra.mxu0 0.0
    %2094 = vmatprep.subr.mxu0 0.0
    %2095 = vmatpush1.msra.mxu0 0.0
    %2096 = vmatprep.subr.mxu0 0.0
    %2097 = vmatpush1.msra.mxu0 0.0
    %2098 = vmatprep.subr.mxu0 0.0
    %2099 = vmatpush1.msra.mxu0 0.0
    %2100 = vmatprep.subr.mxu0 0.0
    %2101 = vmatpush1.msra.mxu0 0.0
    %2102 = vmatprep.subr.mxu0 0.0
    %2103 = vmatpush1.msra.mxu0 0.0
    %2104 = vmatprep.subr.mxu0 0.0
    %2105 = vmatpush1.msra.mxu0 0.0
    %2106 = vmatprep.subr.mxu0 0.0
    %2107 = vmatpush1.msra.mxu0 0.0
    %2108 = vmatprep.subr.mxu0 0.0
    %2109 = vmatpush1.msra.mxu0 0.0
    %2110 = vmatprep.subr.mxu0 0.0
    %2111 = vmatpush1.msra.mxu0 0.0
    %2112 = vmatprep.subr.mxu0 0.0
    %2113 = vmatpush1.msra.mxu0 0.0
    %2114 = vmatprep.subr.mxu0 0.0
    %2115 = vmatpush1.msra.mxu0 0.0
    %2116 = vmatprep.subr.mxu0 0.0
    %2117 = vmatpush1.msra.mxu0 0.0
    %2118 = vmatprep.subr.mxu0 0.0
    %2119 = vmatpush1.msra.mxu0 0.0
    %2120 = vmatprep.subr.mxu0 0.0
    %2121 = vmatpush1.msra.mxu0 0.0
    %2122 = vmatprep.subr.mxu0 0.0
    %2123 = vmatpush1.msra.mxu0 0.0
    %2124 = vmatprep.subr.mxu0 0.0
    %2125 = vmatpush1.msra.mxu0 0.0
    %2126 = vmatprep.subr.mxu0 0.0
    %2127 = vmatpush1.msra.mxu0 0.0
    %2128 = vmatprep.mubr.f32.mxu0 0.0
    %2129 = vmatmul.mubr.f32.gmra.mrb[0].mxu0 %v2062
    %v2130 = vpop.f32.mrb[0].mxu0
    %v2131 = vadd.f32 0.0, %v2130
    %v2132 = vpop.f32.mrb[0].mxu0
    %2133 = vdwg.mxu0
    %v2134 = vadd.f32 %v2060, %v2131
    %v2135 = vadd.f32 %v2134, %v277
    %vm2136 = vcmask 982016
    %v2138 = vsel %vm2136, %v2135, 0
    %2140 = vmatprep.subr.mxu0 0.0
    %2141 = vmatpush1.msra.mxu0 %v326
    %2142 = vmatprep.subr.mxu0 0.0
    %2143 = vmatpush1.msra.mxu0 %v327
    %2144 = vmatprep.subr.mxu0 0.0
    %2145 = vmatpush1.msra.mxu0 %v328
    %2146 = vmatprep.subr.mxu0 0.0
    %2147 = vmatpush1.msra.mxu0 %v329
    %2148 = vmatprep.subr.mxu0 0.0
    %2149 = vmatpush1.msra.mxu0 %v330
    %2150 = vmatprep.subr.mxu0 0.0
    %2151 = vmatpush1.msra.mxu0 %v331
    %2152 = vmatprep.subr.mxu0 0.0
    %2153 = vmatpush1.msra.mxu0 %v332
    %2154 = vmatprep.subr.mxu0 0.0
    %2155 = vmatpush1.msra.mxu0 %v333
    %2156 = vmatprep.subr.mxu0 0.0
    %2157 = vmatpush1.msra.mxu0 %v334
    %2158 = vmatprep.subr.mxu0 0.0
    %2159 = vmatpush1.msra.mxu0 %v335
    %2160 = vmatprep.subr.mxu0 0.0
    %2161 = vmatpush1.msra.mxu0 %v336
    %2162 = vmatprep.subr.mxu0 0.0
    %2163 = vmatpush1.msra.mxu0 %v337
    %2164 = vmatprep.subr.mxu0 0.0
    %2165 = vmatpush1.msra.mxu0 %v338
    %2166 = vmatprep.subr.mxu0 0.0
    %2167 = vmatpush1.msra.mxu0 %v339
    %2168 = vmatprep.subr.mxu0 0.0
    %2169 = vmatpush1.msra.mxu0 %v340
    %2170 = vmatprep.subr.mxu0 0.0
    %2171 = vmatpush1.msra.mxu0 0.0
    %2172 = vmatprep.subr.mxu0 0.0
    %2173 = vmatpush1.msra.mxu0 0.0
    %2174 = vmatprep.subr.mxu0 0.0
    %2175 = vmatpush1.msra.mxu0 0.0
    %2176 = vmatprep.subr.mxu0 0.0
    %2177 = vmatpush1.msra.mxu0 0.0
    %2178 = vmatprep.subr.mxu0 0.0
    %2179 = vmatpush1.msra.mxu0 0.0
    %2180 = vmatprep.subr.mxu0 0.0
    %2181 = vmatpush1.msra.mxu0 0.0
    %2182 = vmatprep.subr.mxu0 0.0
    %2183 = vmatpush1.msra.mxu0 0.0
    %2184 = vmatprep.subr.mxu0 0.0
    %2185 = vmatpush1.msra.mxu0 0.0
    %2186 = vmatprep.subr.mxu0 0.0
    %2187 = vmatpush1.msra.mxu0 0.0
    %2188 = vmatprep.subr.mxu0 0.0
    %2189 = vmatpush1.msra.mxu0 0.0
    %2190 = vmatprep.subr.mxu0 0.0
    %2191 = vmatpush1.msra.mxu0 0.0
    %2192 = vmatprep.subr.mxu0 0.0
    %2193 = vmatpush1.msra.mxu0 0.0
    %2194 = vmatprep.subr.mxu0 0.0
    %2195 = vmatpush1.msra.mxu0 0.0
    %2196 = vmatprep.subr.mxu0 0.0
    %2197 = vmatpush1.msra.mxu0 0.0
    %2198 = vmatprep.subr.mxu0 0.0
    %2199 = vmatpush1.msra.mxu0 0.0
    %2200 = vmatprep.subr.mxu0 0.0
    %2201 = vmatpush1.msra.mxu0 0.0
    %2202 = vmatprep.subr.mxu0 0.0
    %2203 = vmatpush1.msra.mxu0 0.0
    %2204 = vmatprep.mubr.f32.mxu0 0.0
    %2205 = vmatmul.mubr.f32.gmra.mrb[0].mxu0 %v2138
    %v2206 = vpop.f32.mrb[0].mxu0
    %v2207 = vadd.f32 %v341, %v2206
    %v2208 = vpop.f32.mrb[0].mxu0
    %2209 = vdwg.mxu0
    %v2210 = vmul.f32 %v2207, %v2207
    %vm2211 = vcmask 679936
    %v2212 = vsel %vm2211, %v2210, 0.0
    %2213 = vadd.xlane.f32.xlu0 %v2212
    %v2214 = vpop.xlane.xlu0 %2213
    %v2215 = vadd.f32 %v2214, %v353
    %v2217 = vsel %vm1122, %v2207, 0
    %v2220 = vsel %vm791, %v352, 0
    %2222 = vmatprep.subr.mxu0 0.0
    %2223 = vmatpush1.msra.mxu0 %v342
    %2224 = vmatprep.subr.mxu0 0.0
    %2225 = vmatpush1.msra.mxu0 %v343
    %2226 = vmatprep.subr.mxu0 0.0
    %2227 = vmatpush1.msra.mxu0 %v344
    %2228 = vmatprep.subr.mxu0 0.0
    %2229 = vmatpush1.msra.mxu0 %v345
    %2230 = vmatprep.subr.mxu0 0.0
    %2231 = vmatpush1.msra.mxu0 %v346
    %2232 = vmatprep.subr.mxu0 0.0
    %2233 = vmatpush1.msra.mxu0 %v347
    %2234 = vmatprep.subr.mxu0 0.0
    %2235 = vmatpush1.msra.mxu0 %v348
    %2236 = vmatprep.subr.mxu0 0.0
    %2237 = vmatpush1.msra.mxu0 %v349
    %2238 = vmatprep.subr.mxu0 0.0
    %2239 = vmatpush1.msra.mxu0 %v350
    %2240 = vmatprep.subr.mxu0 0.0
    %2241 = vmatpush1.msra.mxu0 %v351
    %2242 = vmatprep.subr.mxu0 0.0
    %2243 = vmatpush1.msra.mxu0 %v2220
    %2244 = vmatprep.subr.mxu0 0.0
    %2245 = vmatpush1.msra.mxu0 0.0
    %2246 = vmatprep.subr.mxu0 0.0
    %2247 = vmatpush1.msra.mxu0 0.0
    %2248 = vmatprep.subr.mxu0 0.0
    %2249 = vmatpush1.msra.mxu0 0.0
    %2250 = vmatprep.subr.mxu0 0.0
    %2251 = vmatpush1.msra.mxu0 0.0
    %2252 = vmatprep.subr.mxu0 0.0
    %2253 = vmatpush1.msra.mxu0 0.0
    %2254 = vmatprep.subr.mxu0 0.0
    %2255 = vmatpush1.msra.mxu0 0.0
    %2256 = vmatprep.subr.mxu0 0.0
    %2257 = vmatpush1.msra.mxu0 0.0
    %2258 = vmatprep.subr.mxu0 0.0
    %2259 = vmatpush1.msra.mxu0 0.0
    %2260 = vmatprep.subr.mxu0 0.0
    %2261 = vmatpush1.msra.mxu0 0.0
    %2262 = vmatprep.subr.mxu0 0.0
    %2263 = vmatpush1.msra.mxu0 0.0
    %2264 = vmatprep.subr.mxu0 0.0
    %2265 = vmatpush1.msra.mxu0 0.0
    %2266 = vmatprep.subr.mxu0 0.0
    %2267 = vmatpush1.msra.mxu0 0.0
    %2268 = vmatprep.subr.mxu0 0.0
    %2269 = vmatpush1.msra.mxu0 0.0
    %2270 = vmatprep.subr.mxu0 0.0
    %2271 = vmatpush1.msra.mxu0 0.0
    %2272 = vmatprep.subr.mxu0 0.0
    %2273 = vmatpush1.msra.mxu0 0.0
    %2274 = vmatprep.subr.mxu0 0.0
    %2275 = vmatpush1.msra.mxu0 0.0
    %2276 = vmatprep.subr.mxu0 0.0
    %2277 = vmatpush1.msra.mxu0 0.0
    %2278 = vmatprep.subr.mxu0 0.0
    %2279 = vmatpush1.msra.mxu0 0.0
    %2280 = vmatprep.subr.mxu0 0.0
    %2281 = vmatpush1.msra.mxu0 0.0
    %2282 = vmatprep.subr.mxu0 0.0
    %2283 = vmatpush1.msra.mxu0 0.0
    %2284 = vmatprep.subr.mxu0 0.0
    %2285 = vmatpush1.msra.mxu0 0.0
    %2286 = vmatprep.mubr.f32.mxu0 0.0
    %2287 = vmatmul.mubr.f32.gmra.mrb[0].mxu0 %v2217
    %v2288 = vpop.f32.mrb[0].mxu0
    %v2289 = vadd.f32 0.0, %v2288
    %v2290 = vpop.f32.mrb[0].mxu0
    %2291 = vdwg.mxu0
    %v2292 = vmul.f32 %v2289, 2.0
    %v2293 = vsub.f32 %v2215, %v2292
    %s2294 = scalar_lea.vmem %s0, 32
    %v2295 = vld [vmem:[%s2294] sm:$0xff]
    %v2296 = vld [vmem:[%s2294 + $0x8] sm:$0xff]
    %v2297 = vld [vmem:[%s2294 + $0x10] sm:$0xff]
    %v2298 = vld [vmem:[%s2294 + $0x18] sm:$0xff]
    %v2303 = vrot.slane %v2295, 1
    %v2304 = vrot.slane %v2296, 1
    %v2305 = vsel %vm362, %v2303, %v2304
    %v2306 = vrot.slane %v2297, 1
    %v2307 = vsel %vm362, %v2304, %v2306
    %v2308 = vrot.slane %v2298, 1
    %v2309 = vsel %vm362, %v2306, %v2308
    %v2310 = vsel %vm370, %v2305, 0
    %v2312 = vsel %vm370, %v2307, 0
    %v2314 = vsel %vm370, %v2309, 0
    %v2316 = vsel %vm370, %v2308, 0
    %2318 = vmatprep.subr.mxu0 %v73
    %2319 = vmatpush1.msra.mxu0 %v72
    %2320 = vmatprep.subr.mxu0 %v75
    %2321 = vmatpush1.msra.mxu0 %v74
    %2322 = vmatprep.subr.mxu0 %v77
    %2323 = vmatpush1.msra.mxu0 %v76
    %2324 = vmatprep.subr.mxu0 %v79
    %2325 = vmatpush1.msra.mxu0 %v78
    %2326 = vmatprep.subr.mxu0 0.0
    %2327 = vmatpush1.msra.mxu0 0.0
    %2328 = vmatprep.subr.mxu0 0.0
    %2329 = vmatpush1.msra.mxu0 0.0
    %2330 = vmatprep.subr.mxu0 0.0
    %2331 = vmatpush1.msra.mxu0 0.0
    %2332 = vmatprep.subr.mxu0 0.0
    %2333 = vmatpush1.msra.mxu0 0.0
    %2334 = vmatprep.subr.mxu0 0.0
    %2335 = vmatpush1.msra.mxu0 0.0
    %2336 = vmatprep.subr.mxu0 0.0
    %2337 = vmatpush1.msra.mxu0 0.0
    %2338 = vmatprep.subr.mxu0 0.0
    %2339 = vmatpush1.msra.mxu0 0.0
    %2340 = vmatprep.subr.mxu0 0.0
    %2341 = vmatpush1.msra.mxu0 0.0
    %2342 = vmatprep.subr.mxu0 0.0
    %2343 = vmatpush1.msra.mxu0 0.0
    %2344 = vmatprep.subr.mxu0 0.0
    %2345 = vmatpush1.msra.mxu0 0.0
    %2346 = vmatprep.subr.mxu0 0.0
    %2347 = vmatpush1.msra.mxu0 0.0
    %2348 = vmatprep.subr.mxu0 0.0
    %2349 = vmatpush1.msra.mxu0 0.0
    %2350 = vmatprep.subr.mxu0 0.0
    %2351 = vmatpush1.msra.mxu0 0.0
    %2352 = vmatprep.subr.mxu0 0.0
    %2353 = vmatpush1.msra.mxu0 0.0
    %2354 = vmatprep.subr.mxu0 0.0
    %2355 = vmatpush1.msra.mxu0 0.0
    %2356 = vmatprep.subr.mxu0 0.0
    %2357 = vmatpush1.msra.mxu0 0.0
    %2358 = vmatprep.subr.mxu0 0.0
    %2359 = vmatpush1.msra.mxu0 0.0
    %2360 = vmatprep.subr.mxu0 0.0
    %2361 = vmatpush1.msra.mxu0 0.0
    %2362 = vmatprep.subr.mxu0 0.0
    %2363 = vmatpush1.msra.mxu0 0.0
    %2364 = vmatprep.subr.mxu0 0.0
    %2365 = vmatpush1.msra.mxu0 0.0
    %2366 = vmatprep.subr.mxu0 0.0
    %2367 = vmatpush1.msra.mxu0 0.0
    %2368 = vmatprep.subr.mxu0 0.0
    %2369 = vmatpush1.msra.mxu0 0.0
    %2370 = vmatprep.subr.mxu0 0.0
    %2371 = vmatpush1.msra.mxu0 0.0
    %2372 = vmatprep.subr.mxu0 0.0
    %2373 = vmatpush1.msra.mxu0 0.0
    %2374 = vmatprep.subr.mxu0 0.0
    %2375 = vmatpush1.msra.mxu0 0.0
    %2376 = vmatprep.subr.mxu0 0.0
    %2377 = vmatpush1.msra.mxu0 0.0
    %2378 = vmatprep.subr.mxu0 0.0
    %2379 = vmatpush1.msra.mxu0 0.0
    %2380 = vmatprep.subr.mxu0 0.0
    %2381 = vmatpush1.msra.mxu0 0.0
    %2382 = vmatprep.mubr.f32.mxu0 0.0
    %2383 = vmatmul.mubr.f32.gmra.mrb[0].mxu0 %v2310
    %v2384 = vpop.f32.mrb[0].mxu0
    %v2385 = vadd.f32 0.0, %v2384
    %v2386 = vpop.f32.mrb[0].mxu0
    %v2387 = vadd.f32 0.0, %v2386
    %2388 = vmatprep.mubr.f32.mxu0 0.0
    %2389 = vmatmul.mubr.f32.gmra.mrb[0].mxu0 %v2312
    %v2390 = vpop.f32.mrb[0].mxu0
    %v2391 = vadd.f32 0.0, %v2390
    %v2392 = vpop.f32.mrb[0].mxu0
    %v2393 = vadd.f32 0.0, %v2392
    %2394 = vmatprep.mubr.f32.mxu0 0.0
    %2395 = vmatmul.mubr.f32.gmra.mrb[0].mxu0 %v2314
    %v2396 = vpop.f32.mrb[0].mxu0
    %v2397 = vadd.f32 0.0, %v2396
    %v2398 = vpop.f32.mrb[0].mxu0
    %v2399 = vadd.f32 0.0, %v2398
    %2400 = vmatprep.mubr.f32.mxu0 0.0
    %2401 = vmatmul.mubr.f32.gmra.mrb[0].mxu0 %v2316
    %v2402 = vpop.f32.mrb[0].mxu0
    %v2403 = vadd.f32 0.0, %v2402
    %v2404 = vpop.f32.mrb[0].mxu0
    %v2405 = vadd.f32 0.0, %v2404
    %2406 = vdwg.mxu0
    %v2407 = vsel %vm370, %v2295, 0
    %v2409 = vsel %vm370, %v2296, 0
    %v2411 = vsel %vm370, %v2297, 0
    %v2413 = vsel %vm370, %v2298, 0
    %2415 = vmatprep.subr.mxu0 %v64
    %2416 = vmatpush1.msra.mxu0 %v63
    %2417 = vmatprep.subr.mxu0 %v66
    %2418 = vmatpush1.msra.mxu0 %v65
    %2419 = vmatprep.subr.mxu0 %v68
    %2420 = vmatpush1.msra.mxu0 %v67
    %2421 = vmatprep.subr.mxu0 %v70
    %2422 = vmatpush1.msra.mxu0 %v69
    %2423 = vmatprep.subr.mxu0 0.0
    %2424 = vmatpush1.msra.mxu0 0.0
    %2425 = vmatprep.subr.mxu0 0.0
    %2426 = vmatpush1.msra.mxu0 0.0
    %2427 = vmatprep.subr.mxu0 0.0
    %2428 = vmatpush1.msra.mxu0 0.0
    %2429 = vmatprep.subr.mxu0 0.0
    %2430 = vmatpush1.msra.mxu0 0.0
    %2431 = vmatprep.subr.mxu0 0.0
    %2432 = vmatpush1.msra.mxu0 0.0
    %2433 = vmatprep.subr.mxu0 0.0
    %2434 = vmatpush1.msra.mxu0 0.0
    %2435 = vmatprep.subr.mxu0 0.0
    %2436 = vmatpush1.msra.mxu0 0.0
    %2437 = vmatprep.subr.mxu0 0.0
    %2438 = vmatpush1.msra.mxu0 0.0
    %2439 = vmatprep.subr.mxu0 0.0
    %2440 = vmatpush1.msra.mxu0 0.0
    %2441 = vmatprep.subr.mxu0 0.0
    %2442 = vmatpush1.msra.mxu0 0.0
    %2443 = vmatprep.subr.mxu0 0.0
    %2444 = vmatpush1.msra.mxu0 0.0
    %2445 = vmatprep.subr.mxu0 0.0
    %2446 = vmatpush1.msra.mxu0 0.0
    %2447 = vmatprep.subr.mxu0 0.0
    %2448 = vmatpush1.msra.mxu0 0.0
    %2449 = vmatprep.subr.mxu0 0.0
    %2450 = vmatpush1.msra.mxu0 0.0
    %2451 = vmatprep.subr.mxu0 0.0
    %2452 = vmatpush1.msra.mxu0 0.0
    %2453 = vmatprep.subr.mxu0 0.0
    %2454 = vmatpush1.msra.mxu0 0.0
    %2455 = vmatprep.subr.mxu0 0.0
    %2456 = vmatpush1.msra.mxu0 0.0
    %2457 = vmatprep.subr.mxu0 0.0
    %2458 = vmatpush1.msra.mxu0 0.0
    %2459 = vmatprep.subr.mxu0 0.0
    %2460 = vmatpush1.msra.mxu0 0.0
    %2461 = vmatprep.subr.mxu0 0.0
    %2462 = vmatpush1.msra.mxu0 0.0
    %2463 = vmatprep.subr.mxu0 0.0
    %2464 = vmatpush1.msra.mxu0 0.0
    %2465 = vmatprep.subr.mxu0 0.0
    %2466 = vmatpush1.msra.mxu0 0.0
    %2467 = vmatprep.subr.mxu0 0.0
    %2468 = vmatpush1.msra.mxu0 0.0
    %2469 = vmatprep.subr.mxu0 0.0
    %2470 = vmatpush1.msra.mxu0 0.0
    %2471 = vmatprep.subr.mxu0 0.0
    %2472 = vmatpush1.msra.mxu0 0.0
    %2473 = vmatprep.subr.mxu0 0.0
    %2474 = vmatpush1.msra.mxu0 0.0
    %2475 = vmatprep.subr.mxu0 0.0
    %2476 = vmatpush1.msra.mxu0 0.0
    %2477 = vmatprep.subr.mxu0 0.0
    %2478 = vmatpush1.msra.mxu0 0.0
    %2479 = vmatprep.mubr.f32.mxu0 0.0
    %2480 = vmatmul.mubr.f32.gmra.mrb[0].mxu0 %v2407
    %v2481 = vpop.f32.mrb[0].mxu0
    %v2482 = vadd.f32 %v2385, %v2481
    %v2483 = vpop.f32.mrb[0].mxu0
    %v2484 = vadd.f32 %v2387, %v2483
    %2485 = vmatprep.mubr.f32.mxu0 0.0
    %2486 = vmatmul.mubr.f32.gmra.mrb[0].mxu0 %v2409
    %v2487 = vpop.f32.mrb[0].mxu0
    %v2488 = vadd.f32 %v2391, %v2487
    %v2489 = vpop.f32.mrb[0].mxu0
    %v2490 = vadd.f32 %v2393, %v2489
    %2491 = vmatprep.mubr.f32.mxu0 0.0
    %2492 = vmatmul.mubr.f32.gmra.mrb[0].mxu0 %v2411
    %v2493 = vpop.f32.mrb[0].mxu0
    %v2494 = vadd.f32 %v2397, %v2493
    %v2495 = vpop.f32.mrb[0].mxu0
    %v2496 = vadd.f32 %v2399, %v2495
    %2497 = vmatprep.mubr.f32.mxu0 0.0
    %2498 = vmatmul.mubr.f32.gmra.mrb[0].mxu0 %v2413
    %v2499 = vpop.f32.mrb[0].mxu0
    %v2500 = vadd.f32 %v2403, %v2499
    %v2501 = vpop.f32.mrb[0].mxu0
    %v2502 = vadd.f32 %v2405, %v2501
    %2503 = vdwg.mxu0
    %v2504 = vrot.slane %v2295, 2
    %v2505 = vrot.slane %v2296, 2
    %v2506 = vsel %vm565, %v2504, %v2505
    %v2507 = vrot.slane %v2297, 2
    %v2508 = vsel %vm565, %v2505, %v2507
    %v2509 = vrot.slane %v2298, 2
    %v2510 = vsel %vm565, %v2507, %v2509
    %v2511 = vsel %vm370, %v2506, 0
    %v2513 = vsel %vm370, %v2508, 0
    %v2515 = vsel %vm370, %v2510, 0
    %v2517 = vsel %vm370, %v2509, 0
    %2519 = vmatprep.subr.mxu0 %v82
    %2520 = vmatpush1.msra.mxu0 %v81
    %2521 = vmatprep.subr.mxu0 %v84
    %2522 = vmatpush1.msra.mxu0 %v83
    %2523 = vmatprep.subr.mxu0 %v86
    %2524 = vmatpush1.msra.mxu0 %v85
    %2525 = vmatprep.subr.mxu0 %v88
    %2526 = vmatpush1.msra.mxu0 %v87
    %2527 = vmatprep.subr.mxu0 0.0
    %2528 = vmatpush1.msra.mxu0 0.0
    %2529 = vmatprep.subr.mxu0 0.0
    %2530 = vmatpush1.msra.mxu0 0.0
    %2531 = vmatprep.subr.mxu0 0.0
    %2532 = vmatpush1.msra.mxu0 0.0
    %2533 = vmatprep.subr.mxu0 0.0
    %2534 = vmatpush1.msra.mxu0 0.0
    %2535 = vmatprep.subr.mxu0 0.0
    %2536 = vmatpush1.msra.mxu0 0.0
    %2537 = vmatprep.subr.mxu0 0.0
    %2538 = vmatpush1.msra.mxu0 0.0
    %2539 = vmatprep.subr.mxu0 0.0
    %2540 = vmatpush1.msra.mxu0 0.0
    %2541 = vmatprep.subr.mxu0 0.0
    %2542 = vmatpush1.msra.mxu0 0.0
    %2543 = vmatprep.subr.mxu0 0.0
    %2544 = vmatpush1.msra.mxu0 0.0
    %2545 = vmatprep.subr.mxu0 0.0
    %2546 = vmatpush1.msra.mxu0 0.0
    %2547 = vmatprep.subr.mxu0 0.0
    %2548 = vmatpush1.msra.mxu0 0.0
    %2549 = vmatprep.subr.mxu0 0.0
    %2550 = vmatpush1.msra.mxu0 0.0
    %2551 = vmatprep.subr.mxu0 0.0
    %2552 = vmatpush1.msra.mxu0 0.0
    %2553 = vmatprep.subr.mxu0 0.0
    %2554 = vmatpush1.msra.mxu0 0.0
    %2555 = vmatprep.subr.mxu0 0.0
    %2556 = vmatpush1.msra.mxu0 0.0
    %2557 = vmatprep.subr.mxu0 0.0
    %2558 = vmatpush1.msra.mxu0 0.0
    %2559 = vmatprep.subr.mxu0 0.0
    %2560 = vmatpush1.msra.mxu0 0.0
    %2561 = vmatprep.subr.mxu0 0.0
    %2562 = vmatpush1.msra.mxu0 0.0
    %2563 = vmatprep.subr.mxu0 0.0
    %2564 = vmatpush1.msra.mxu0 0.0
    %2565 = vmatprep.subr.mxu0 0.0
    %2566 = vmatpush1.msra.mxu0 0.0
    %2567 = vmatprep.subr.mxu0 0.0
    %2568 = vmatpush1.msra.mxu0 0.0
    %2569 = vmatprep.subr.mxu0 0.0
    %2570 = vmatpush1.msra.mxu0 0.0
    %2571 = vmatprep.subr.mxu0 0.0
    %2572 = vmatpush1.msra.mxu0 0.0
    %2573 = vmatprep.subr.mxu0 0.0
    %2574 = vmatpush1.msra.mxu0 0.0
    %2575 = vmatprep.subr.mxu0 0.0
    %2576 = vmatpush1.msra.mxu0 0.0
    %2577 = vmatprep.subr.mxu0 0.0
    %2578 = vmatpush1.msra.mxu0 0.0
    %2579 = vmatprep.subr.mxu0 0.0
    %2580 = vmatpush1.msra.mxu0 0.0
    %2581 = vmatprep.subr.mxu0 0.0
    %2582 = vmatpush1.msra.mxu0 0.0
    %2583 = vmatprep.mubr.f32.mxu0 0.0
    %2584 = vmatmul.mubr.f32.gmra.mrb[0].mxu0 %v2511
    %v2585 = vpop.f32.mrb[0].mxu0
    %v2586 = vadd.f32 0.0, %v2585
    %v2587 = vpop.f32.mrb[0].mxu0
    %v2588 = vadd.f32 0.0, %v2587
    %2589 = vmatprep.mubr.f32.mxu0 0.0
    %2590 = vmatmul.mubr.f32.gmra.mrb[0].mxu0 %v2513
    %v2591 = vpop.f32.mrb[0].mxu0
    %v2592 = vadd.f32 0.0, %v2591
    %v2593 = vpop.f32.mrb[0].mxu0
    %v2594 = vadd.f32 0.0, %v2593
    %2595 = vmatprep.mubr.f32.mxu0 0.0
    %2596 = vmatmul.mubr.f32.gmra.mrb[0].mxu0 %v2515
    %v2597 = vpop.f32.mrb[0].mxu0
    %v2598 = vadd.f32 0.0, %v2597
    %v2599 = vpop.f32.mrb[0].mxu0
    %v2600 = vadd.f32 0.0, %v2599
    %2601 = vmatprep.mubr.f32.mxu0 0.0
    %2602 = vmatmul.mubr.f32.gmra.mrb[0].mxu0 %v2517
    %v2603 = vpop.f32.mrb[0].mxu0
    %v2604 = vadd.f32 0.0, %v2603
    %v2605 = vpop.f32.mrb[0].mxu0
    %v2606 = vadd.f32 0.0, %v2605
    %2607 = vdwg.mxu0
    %v2608 = vadd.f32 %v2482, %v2586
    %v2609 = vadd.f32 %v2484, %v2588
    %v2610 = vadd.f32 %v2488, %v2592
    %v2611 = vadd.f32 %v2490, %v2594
    %v2612 = vadd.f32 %v2494, %v2598
    %v2613 = vadd.f32 %v2496, %v2600
    %v2614 = vadd.f32 %v2500, %v2604
    %v2615 = vadd.f32 %v2502, %v2606
    %v2616 = vrot.slane %v2295, 3
    %v2617 = vrot.slane %v2296, 3
    %v2618 = vsel %vm678, %v2616, %v2617
    %v2619 = vrot.slane %v2297, 3
    %v2620 = vsel %vm678, %v2617, %v2619
    %v2621 = vrot.slane %v2298, 3
    %v2622 = vsel %vm678, %v2619, %v2621
    %v2623 = vsel %vm370, %v2618, 0
    %v2625 = vsel %vm370, %v2620, 0
    %v2627 = vsel %vm370, %v2622, 0
    %v2629 = vsel %vm370, %v2621, 0
    %2631 = vmatprep.subr.mxu0 %v91
    %2632 = vmatpush1.msra.mxu0 %v90
    %2633 = vmatprep.subr.mxu0 %v93
    %2634 = vmatpush1.msra.mxu0 %v92
    %2635 = vmatprep.subr.mxu0 %v95
    %2636 = vmatpush1.msra.mxu0 %v94
    %2637 = vmatprep.subr.mxu0 %v97
    %2638 = vmatpush1.msra.mxu0 %v96
    %2639 = vmatprep.subr.mxu0 0.0
    %2640 = vmatpush1.msra.mxu0 0.0
    %2641 = vmatprep.subr.mxu0 0.0
    %2642 = vmatpush1.msra.mxu0 0.0
    %2643 = vmatprep.subr.mxu0 0.0
    %2644 = vmatpush1.msra.mxu0 0.0
    %2645 = vmatprep.subr.mxu0 0.0
    %2646 = vmatpush1.msra.mxu0 0.0
    %2647 = vmatprep.subr.mxu0 0.0
    %2648 = vmatpush1.msra.mxu0 0.0
    %2649 = vmatprep.subr.mxu0 0.0
    %2650 = vmatpush1.msra.mxu0 0.0
    %2651 = vmatprep.subr.mxu0 0.0
    %2652 = vmatpush1.msra.mxu0 0.0
    %2653 = vmatprep.subr.mxu0 0.0
    %2654 = vmatpush1.msra.mxu0 0.0
    %2655 = vmatprep.subr.mxu0 0.0
    %2656 = vmatpush1.msra.mxu0 0.0
    %2657 = vmatprep.subr.mxu0 0.0
    %2658 = vmatpush1.msra.mxu0 0.0
    %2659 = vmatprep.subr.mxu0 0.0
    %2660 = vmatpush1.msra.mxu0 0.0
    %2661 = vmatprep.subr.mxu0 0.0
    %2662 = vmatpush1.msra.mxu0 0.0
    %2663 = vmatprep.subr.mxu0 0.0
    %2664 = vmatpush1.msra.mxu0 0.0
    %2665 = vmatprep.subr.mxu0 0.0
    %2666 = vmatpush1.msra.mxu0 0.0
    %2667 = vmatprep.subr.mxu0 0.0
    %2668 = vmatpush1.msra.mxu0 0.0
    %2669 = vmatprep.subr.mxu0 0.0
    %2670 = vmatpush1.msra.mxu0 0.0
    %2671 = vmatprep.subr.mxu0 0.0
    %2672 = vmatpush1.msra.mxu0 0.0
    %2673 = vmatprep.subr.mxu0 0.0
    %2674 = vmatpush1.msra.mxu0 0.0
    %2675 = vmatprep.subr.mxu0 0.0
    %2676 = vmatpush1.msra.mxu0 0.0
    %2677 = vmatprep.subr.mxu0 0.0
    %2678 = vmatpush1.msra.mxu0 0.0
    %2679 = vmatprep.subr.mxu0 0.0
    %2680 = vmatpush1.msra.mxu0 0.0
    %2681 = vmatprep.subr.mxu0 0.0
    %2682 = vmatpush1.msra.mxu0 0.0
    %2683 = vmatprep.subr.mxu0 0.0
    %2684 = vmatpush1.msra.mxu0 0.0
    %2685 = vmatprep.subr.mxu0 0.0
    %2686 = vmatpush1.msra.mxu0 0.0
    %2687 = vmatprep.subr.mxu0 0.0
    %2688 = vmatpush1.msra.mxu0 0.0
    %2689 = vmatprep.subr.mxu0 0.0
    %2690 = vmatpush1.msra.mxu0 0.0
    %2691 = vmatprep.subr.mxu0 0.0
    %2692 = vmatpush1.msra.mxu0 0.0
    %2693 = vmatprep.subr.mxu0 0.0
    %2694 = vmatpush1.msra.mxu0 0.0
    %2695 = vmatprep.mubr.f32.mxu0 0.0
    %2696 = vmatmul.mubr.f32.gmra.mrb[0].mxu0 %v2623
    %v2697 = vpop.f32.mrb[0].mxu0
    %v2698 = vadd.f32 0.0, %v2697
    %v2699 = vpop.f32.mrb[0].mxu0
    %v2700 = vadd.f32 0.0, %v2699
    %2701 = vmatprep.mubr.f32.mxu0 0.0
    %2702 = vmatmul.mubr.f32.gmra.mrb[0].mxu0 %v2625
    %v2703 = vpop.f32.mrb[0].mxu0
    %v2704 = vadd.f32 0.0, %v2703
    %v2705 = vpop.f32.mrb[0].mxu0
    %v2706 = vadd.f32 0.0, %v2705
    %2707 = vmatprep.mubr.f32.mxu0 0.0
    %2708 = vmatmul.mubr.f32.gmra.mrb[0].mxu0 %v2627
    %v2709 = vpop.f32.mrb[0].mxu0
    %v2710 = vadd.f32 0.0, %v2709
    %v2711 = vpop.f32.mrb[0].mxu0
    %v2712 = vadd.f32 0.0, %v2711
    %2713 = vmatprep.mubr.f32.mxu0 0.0
    %2714 = vmatmul.mubr.f32.gmra.mrb[0].mxu0 %v2629
    %v2715 = vpop.f32.mrb[0].mxu0
    %v2716 = vadd.f32 0.0, %v2715
    %v2717 = vpop.f32.mrb[0].mxu0
    %v2718 = vadd.f32 0.0, %v2717
    %2719 = vdwg.mxu0
    %v2720 = vadd.f32 %v2608, %v2698
    %v2721 = vadd.f32 %v2609, %v2700
    %v2722 = vadd.f32 %v2610, %v2704
    %v2723 = vadd.f32 %v2611, %v2706
    %v2724 = vadd.f32 %v2612, %v2710
    %v2725 = vadd.f32 %v2613, %v2712
    %v2726 = vadd.f32 %v2614, %v2716
    %v2727 = vadd.f32 %v2615, %v2718
    %v2728 = vrot.slane %v2295, 4
    %v2729 = vrot.slane %v2296, 4
    %v2730 = vsel %vm791, %v2728, %v2729
    %v2731 = vrot.slane %v2297, 4
    %v2732 = vsel %vm791, %v2729, %v2731
    %v2733 = vrot.slane %v2298, 4
    %v2734 = vsel %vm791, %v2731, %v2733
    %v2735 = vsel %vm370, %v2730, 0
    %v2737 = vsel %vm370, %v2732, 0
    %v2739 = vsel %vm370, %v2734, 0
    %v2741 = vsel %vm370, %v2733, 0
    %2743 = vmatprep.subr.mxu0 %v100
    %2744 = vmatpush1.msra.mxu0 %v99
    %2745 = vmatprep.subr.mxu0 %v102
    %2746 = vmatpush1.msra.mxu0 %v101
    %2747 = vmatprep.subr.mxu0 %v104
    %2748 = vmatpush1.msra.mxu0 %v103
    %2749 = vmatprep.subr.mxu0 %v106
    %2750 = vmatpush1.msra.mxu0 %v105
    %2751 = vmatprep.subr.mxu0 0.0
    %2752 = vmatpush1.msra.mxu0 0.0
    %2753 = vmatprep.subr.mxu0 0.0
    %2754 = vmatpush1.msra.mxu0 0.0
    %2755 = vmatprep.subr.mxu0 0.0
    %2756 = vmatpush1.msra.mxu0 0.0
    %2757 = vmatprep.subr.mxu0 0.0
    %2758 = vmatpush1.msra.mxu0 0.0
    %2759 = vmatprep.subr.mxu0 0.0
    %2760 = vmatpush1.msra.mxu0 0.0
    %2761 = vmatprep.subr.mxu0 0.0
    %2762 = vmatpush1.msra.mxu0 0.0
    %2763 = vmatprep.subr.mxu0 0.0
    %2764 = vmatpush1.msra.mxu0 0.0
    %2765 = vmatprep.subr.mxu0 0.0
    %2766 = vmatpush1.msra.mxu0 0.0
    %2767 = vmatprep.subr.mxu0 0.0
    %2768 = vmatpush1.msra.mxu0 0.0
    %2769 = vmatprep.subr.mxu0 0.0
    %2770 = vmatpush1.msra.mxu0 0.0
    %2771 = vmatprep.subr.mxu0 0.0
    %2772 = vmatpush1.msra.mxu0 0.0
    %2773 = vmatprep.subr.mxu0 0.0
    %2774 = vmatpush1.msra.mxu0 0.0
    %2775 = vmatprep.subr.mxu0 0.0
    %2776 = vmatpush1.msra.mxu0 0.0
    %2777 = vmatprep.subr.mxu0 0.0
    %2778 = vmatpush1.msra.mxu0 0.0
    %2779 = vmatprep.subr.mxu0 0.0
    %2780 = vmatpush1.msra.mxu0 0.0
    %2781 = vmatprep.subr.mxu0 0.0
    %2782 = vmatpush1.msra.mxu0 0.0
    %2783 = vmatprep.subr.mxu0 0.0
    %2784 = vmatpush1.msra.mxu0 0.0
    %2785 = vmatprep.subr.mxu0 0.0
    %2786 = vmatpush1.msra.mxu0 0.0
    %2787 = vmatprep.subr.mxu0 0.0
    %2788 = vmatpush1.msra.mxu0 0.0
    %2789 = vmatprep.subr.mxu0 0.0
    %2790 = vmatpush1.msra.mxu0 0.0
    %2791 = vmatprep.subr.mxu0 0.0
    %2792 = vmatpush1.msra.mxu0 0.0
    %2793 = vmatprep.subr.mxu0 0.0
    %2794 = vmatpush1.msra.mxu0 0.0
    %2795 = vmatprep.subr.mxu0 0.0
    %2796 = vmatpush1.msra.mxu0 0.0
    %2797 = vmatprep.subr.mxu0 0.0
    %2798 = vmatpush1.msra.mxu0 0.0
    %2799 = vmatprep.subr.mxu0 0.0
    %2800 = vmatpush1.msra.mxu0 0.0
    %2801 = vmatprep.subr.mxu0 0.0
    %2802 = vmatpush1.msra.mxu0 0.0
    %2803 = vmatprep.subr.mxu0 0.0
    %2804 = vmatpush1.msra.mxu0 0.0
    %2805 = vmatprep.subr.mxu0 0.0
    %2806 = vmatpush1.msra.mxu0 0.0
    %2807 = vmatprep.mubr.f32.mxu0 0.0
    %2808 = vmatmul.mubr.f32.gmra.mrb[0].mxu0 %v2735
    %v2809 = vpop.f32.mrb[0].mxu0
    %v2810 = vadd.f32 0.0, %v2809
    %v2811 = vpop.f32.mrb[0].mxu0
    %v2812 = vadd.f32 0.0, %v2811
    %2813 = vmatprep.mubr.f32.mxu0 0.0
    %2814 = vmatmul.mubr.f32.gmra.mrb[0].mxu0 %v2737
    %v2815 = vpop.f32.mrb[0].mxu0
    %v2816 = vadd.f32 0.0, %v2815
    %v2817 = vpop.f32.mrb[0].mxu0
    %v2818 = vadd.f32 0.0, %v2817
    %2819 = vmatprep.mubr.f32.mxu0 0.0
    %2820 = vmatmul.mubr.f32.gmra.mrb[0].mxu0 %v2739
    %v2821 = vpop.f32.mrb[0].mxu0
    %v2822 = vadd.f32 0.0, %v2821
    %v2823 = vpop.f32.mrb[0].mxu0
    %v2824 = vadd.f32 0.0, %v2823
    %2825 = vmatprep.mubr.f32.mxu0 0.0
    %2826 = vmatmul.mubr.f32.gmra.mrb[0].mxu0 %v2741
    %v2827 = vpop.f32.mrb[0].mxu0
    %v2828 = vadd.f32 0.0, %v2827
    %v2829 = vpop.f32.mrb[0].mxu0
    %v2830 = vadd.f32 0.0, %v2829
    %2831 = vdwg.mxu0
    %v2832 = vadd.f32 %v2720, %v2810
    %v2833 = vadd.f32 %v2721, %v2812
    %v2834 = vadd.f32 %v2722, %v2816
    %v2835 = vadd.f32 %v2723, %v2818
    %v2836 = vadd.f32 %v2724, %v2822
    %v2837 = vadd.f32 %v2725, %v2824
    %v2838 = vadd.f32 %v2726, %v2828
    %v2839 = vadd.f32 %v2727, %v2830
    %v2840 = vadd.f32 %v2832, %v908
    %v2841 = vadd.f32 %v2833, %v912
    %v2842 = vadd.f32 %v2834, %v908
    %v2843 = vadd.f32 %v2835, %v912
    %v2844 = vadd.f32 %v2836, %v908
    %v2845 = vadd.f32 %v2837, %v912
    %v2846 = vadd.f32 %v2838, %v908
    %v2847 = vadd.f32 %v2839, %v912
    %v2849 = vsel %vm791, %v2846, 0
    %v2852 = vsel %vm791, %v2847, 0
    %2854 = vmatprep.subr.mxu0 %v2841
    %2855 = vmatpush1.msra.mxu0 %v2840
    %2856 = vmatprep.subr.mxu0 %v2843
    %2857 = vmatpush1.msra.mxu0 %v2842
    %2858 = vmatprep.subr.mxu0 %v2845
    %2859 = vmatpush1.msra.mxu0 %v2844
    %2860 = vmatprep.subr.mxu0 %v2852
    %2861 = vmatpush1.msra.mxu0 %v2849
    %2862 = vmatprep.subr.mxu0 0.0
    %2863 = vmatpush1.msra.mxu0 0.0
    %2864 = vmatprep.subr.mxu0 0.0
    %2865 = vmatpush1.msra.mxu0 0.0
    %2866 = vmatprep.subr.mxu0 0.0
    %2867 = vmatpush1.msra.mxu0 0.0
    %2868 = vmatprep.subr.mxu0 0.0
    %2869 = vmatpush1.msra.mxu0 0.0
    %2870 = vmatprep.subr.mxu0 0.0
    %2871 = vmatpush1.msra.mxu0 0.0
    %2872 = vmatprep.subr.mxu0 0.0
    %2873 = vmatpush1.msra.mxu0 0.0
    %2874 = vmatprep.subr.mxu0 0.0
    %2875 = vmatpush1.msra.mxu0 0.0
    %2876 = vmatprep.subr.mxu0 0.0
    %2877 = vmatpush1.msra.mxu0 0.0
    %2878 = vmatprep.subr.mxu0 0.0
    %2879 = vmatpush1.msra.mxu0 0.0
    %2880 = vmatprep.subr.mxu0 0.0
    %2881 = vmatpush1.msra.mxu0 0.0
    %2882 = vmatprep.subr.mxu0 0.0
    %2883 = vmatpush1.msra.mxu0 0.0
    %2884 = vmatprep.subr.mxu0 0.0
    %2885 = vmatpush1.msra.mxu0 0.0
    %2886 = vmatprep.subr.mxu0 0.0
    %2887 = vmatpush1.msra.mxu0 0.0
    %2888 = vmatprep.subr.mxu0 0.0
    %2889 = vmatpush1.msra.mxu0 0.0
    %2890 = vmatprep.subr.mxu0 0.0
    %2891 = vmatpush1.msra.mxu0 0.0
    %2892 = vmatprep.subr.mxu0 0.0
    %2893 = vmatpush1.msra.mxu0 0.0
    %2894 = vmatprep.subr.mxu0 0.0
    %2895 = vmatpush1.msra.mxu0 0.0
    %2896 = vmatprep.subr.mxu0 0.0
    %2897 = vmatpush1.msra.mxu0 0.0
    %2898 = vmatprep.subr.mxu0 0.0
    %2899 = vmatpush1.msra.mxu0 0.0
    %2900 = vmatprep.subr.mxu0 0.0
    %2901 = vmatpush1.msra.mxu0 0.0
    %2902 = vmatprep.subr.mxu0 0.0
    %2903 = vmatpush1.msra.mxu0 0.0
    %2904 = vmatprep.subr.mxu0 0.0
    %2905 = vmatpush1.msra.mxu0 0.0
    %2906 = vmatprep.subr.mxu0 0.0
    %2907 = vmatpush1.msra.mxu0 0.0
    %2908 = vmatprep.subr.mxu0 0.0
    %2909 = vmatpush1.msra.mxu0 0.0
    %2910 = vmatprep.subr.mxu0 0.0
    %2911 = vmatpush1.msra.mxu0 0.0
    %2912 = vmatprep.subr.mxu0 0.0
    %2913 = vmatpush1.msra.mxu0 0.0
    %2914 = vmatprep.subr.mxu0 0.0
    %2915 = vmatpush1.msra.mxu0 0.0
    %2916 = vmatprep.subr.mxu0 0.0
    %2917 = vmatpush1.msra.mxu0 0.0
    %2918 = vmatprep.mubr.f32.mxu0 0.0
    %2919 = vmatmul.mubr.f32.gmra.mrb[0].mxu0 %v925
    %v2920 = vpop.f32.mrb[0].mxu0
    %v2921 = vadd.f32 0.0, %v2920
    %v2922 = vpop.f32.mrb[0].mxu0
    %v2923 = vadd.f32 0.0, %v2922
    %2924 = vmatprep.mubr.f32.mxu0 0.0
    %2925 = vmatmul.mubr.f32.gmra.mrb[0].mxu0 %v928
    %v2926 = vpop.f32.mrb[0].mxu0
    %v2927 = vadd.f32 0.0, %v2926
    %v2928 = vpop.f32.mrb[0].mxu0
    %v2929 = vadd.f32 0.0, %v2928
    %2930 = vdwg.mxu0
    %v2932 = vsel %vm1013, %v2923, 0
    %v2935 = vsel %vm1013, %v2929, 0
    %2937 = vmatprep.subr.mxu0 0.0
    %2938 = vmatpush1.msra.mxu0 %v280
    %2939 = vmatprep.subr.mxu0 0.0
    %2940 = vmatpush1.msra.mxu0 %v281
    %2941 = vmatprep.subr.mxu0 0.0
    %2942 = vmatpush1.msra.mxu0 %v282
    %2943 = vmatprep.subr.mxu0 0.0
    %2944 = vmatpush1.msra.mxu0 %v283
    %2945 = vmatprep.subr.mxu0 0.0
    %2946 = vmatpush1.msra.mxu0 %v284
    %2947 = vmatprep.subr.mxu0 0.0
    %2948 = vmatpush1.msra.mxu0 %v285
    %2949 = vmatprep.subr.mxu0 0.0
    %2950 = vmatpush1.msra.mxu0 %v286
    %2951 = vmatprep.subr.mxu0 0.0
    %2952 = vmatpush1.msra.mxu0 %v287
    %2953 = vmatprep.subr.mxu0 0.0
    %2954 = vmatpush1.msra.mxu0 %v288
    %2955 = vmatprep.subr.mxu0 0.0
    %2956 = vmatpush1.msra.mxu0 %v289
    %2957 = vmatprep.subr.mxu0 0.0
    %2958 = vmatpush1.msra.mxu0 %v290
    %2959 = vmatprep.subr.mxu0 0.0
    %2960 = vmatpush1.msra.mxu0 %v291
    %2961 = vmatprep.subr.mxu0 0.0
    %2962 = vmatpush1.msra.mxu0 %v292
    %2963 = vmatprep.subr.mxu0 0.0
    %2964 = vmatpush1.msra.mxu0 %v293
    %2965 = vmatprep.subr.mxu0 0.0
    %2966 = vmatpush1.msra.mxu0 %v294
    %2967 = vmatprep.subr.mxu0 0.0
    %2968 = vmatpush1.msra.mxu0 %v295
    %2969 = vmatprep.subr.mxu0 0.0
    %2970 = vmatpush1.msra.mxu0 %v296
    %2971 = vmatprep.subr.mxu0 0.0
    %2972 = vmatpush1.msra.mxu0 %v297
    %2973 = vmatprep.subr.mxu0 0.0
    %2974 = vmatpush1.msra.mxu0 %v298
    %2975 = vmatprep.subr.mxu0 0.0
    %2976 = vmatpush1.msra.mxu0 %v299
    %2977 = vmatprep.subr.mxu0 0.0
    %2978 = vmatpush1.msra.mxu0 %v300
    %2979 = vmatprep.subr.mxu0 0.0
    %2980 = vmatpush1.msra.mxu0 0.0
    %2981 = vmatprep.subr.mxu0 0.0
    %2982 = vmatpush1.msra.mxu0 0.0
    %2983 = vmatprep.subr.mxu0 0.0
    %2984 = vmatpush1.msra.mxu0 0.0
    %2985 = vmatprep.subr.mxu0 0.0
    %2986 = vmatpush1.msra.mxu0 0.0
    %2987 = vmatprep.subr.mxu0 0.0
    %2988 = vmatpush1.msra.mxu0 0.0
    %2989 = vmatprep.subr.mxu0 0.0
    %2990 = vmatpush1.msra.mxu0 0.0
    %2991 = vmatprep.subr.mxu0 0.0
    %2992 = vmatpush1.msra.mxu0 0.0
    %2993 = vmatprep.subr.mxu0 0.0
    %2994 = vmatpush1.msra.mxu0 0.0
    %2995 = vmatprep.subr.mxu0 0.0
    %2996 = vmatpush1.msra.mxu0 0.0
    %2997 = vmatprep.subr.mxu0 0.0
    %2998 = vmatpush1.msra.mxu0 0.0
    %2999 = vmatprep.subr.mxu0 0.0
    %3000 = vmatpush1.msra.mxu0 0.0
    %3001 = vmatprep.mubr.f32.mxu0 %v2932
    %3002 = vmatmul.mubr.f32.gmra.mrb[0].mxu0 %v2921
    %v3003 = vpop.f32.mrb[0].mxu0
    %v3004 = vadd.f32 0.0, %v3003
    %v3005 = vpop.f32.mrb[0].mxu0
    %3006 = vmatprep.mubr.f32.mxu0 %v2935
    %3007 = vmatmul.mubr.f32.gmra.mrb[0].mxu0 %v2927
    %v3008 = vpop.f32.mrb[0].mxu0
    %v3009 = vadd.f32 0.0, %v3008
    %v3010 = vpop.f32.mrb[0].mxu0
    %3011 = vdwg.mxu0
    %v3012 = vmul.f32 %v3004, %v1099
    %v3013 = vmul.f32 %v3009, %v1099
    %v3014 = vadd.f32 %v3012, %v1107
    %v3015 = vadd.f32 %v3013, %v1107
    %v3016 = vmul.f32 %v3014, 0.6666667
    %v3017 = vmul.f32 %v3015, 0.6666667
    %v3018 = vtanh.pop %v3016
    %v3019 = vtanh.pop %v3017
    %v3020 = vmul.f32 %v3018, 1.7159
    %v3021 = vmul.f32 %v3019, 1.7159
    %v3024 = vrot.slane %v3020, 1
    %v3025 = vrot.slane %v3021, 1
    %v3026 = vsel %vm362, %v3024, %v3025
    %v3027 = vsel %vm1122, %v3026, 0
    %v3029 = vsel %vm1122, %v3025, 0
    %3031 = vmatprep.subr.mxu0 %v131
    %3032 = vmatpush1.msra.mxu0 %v130
    %3033 = vmatprep.subr.mxu0 %v133
    %3034 = vmatpush1.msra.mxu0 %v132
    %3035 = vmatprep.subr.mxu0 %v135
    %3036 = vmatpush1.msra.mxu0 %v134
    %3037 = vmatprep.subr.mxu0 %v137
    %3038 = vmatpush1.msra.mxu0 %v136
    %3039 = vmatprep.subr.mxu0 %v139
    %3040 = vmatpush1.msra.mxu0 %v138
    %3041 = vmatprep.subr.mxu0 %v141
    %3042 = vmatpush1.msra.mxu0 %v140
    %3043 = vmatprep.subr.mxu0 %v143
    %3044 = vmatpush1.msra.mxu0 %v142
    %3045 = vmatprep.subr.mxu0 %v145
    %3046 = vmatpush1.msra.mxu0 %v144
    %3047 = vmatprep.subr.mxu0 %v147
    %3048 = vmatpush1.msra.mxu0 %v146
    %3049 = vmatprep.subr.mxu0 %v149
    %3050 = vmatpush1.msra.mxu0 %v148
    %3051 = vmatprep.subr.mxu0 %v1131
    %3052 = vmatpush1.msra.mxu0 %v1128
    %3053 = vmatprep.subr.mxu0 0.0
    %3054 = vmatpush1.msra.mxu0 0.0
    %3055 = vmatprep.subr.mxu0 0.0
    %3056 = vmatpush1.msra.mxu0 0.0
    %3057 = vmatprep.subr.mxu0 0.0
    %3058 = vmatpush1.msra.mxu0 0.0
    %3059 = vmatprep.subr.mxu0 0.0
    %3060 = vmatpush1.msra.mxu0 0.0
    %3061 = vmatprep.subr.mxu0 0.0
    %3062 = vmatpush1.msra.mxu0 0.0
    %3063 = vmatprep.subr.mxu0 0.0
    %3064 = vmatpush1.msra.mxu0 0.0
    %3065 = vmatprep.subr.mxu0 0.0
    %3066 = vmatpush1.msra.mxu0 0.0
    %3067 = vmatprep.subr.mxu0 0.0
    %3068 = vmatpush1.msra.mxu0 0.0
    %3069 = vmatprep.subr.mxu0 0.0
    %3070 = vmatpush1.msra.mxu0 0.0
    %3071 = vmatprep.subr.mxu0 0.0
    %3072 = vmatpush1.msra.mxu0 0.0
    %3073 = vmatprep.subr.mxu0 0.0
    %3074 = vmatpush1.msra.mxu0 0.0
    %3075 = vmatprep.subr.mxu0 0.0
    %3076 = vmatpush1.msra.mxu0 0.0
    %3077 = vmatprep.subr.mxu0 0.0
    %3078 = vmatpush1.msra.mxu0 0.0
    %3079 = vmatprep.subr.mxu0 0.0
    %3080 = vmatpush1.msra.mxu0 0.0
    %3081 = vmatprep.subr.mxu0 0.0
    %3082 = vmatpush1.msra.mxu0 0.0
    %3083 = vmatprep.subr.mxu0 0.0
    %3084 = vmatpush1.msra.mxu0 0.0
    %3085 = vmatprep.subr.mxu0 0.0
    %3086 = vmatpush1.msra.mxu0 0.0
    %3087 = vmatprep.subr.mxu0 0.0
    %3088 = vmatpush1.msra.mxu0 0.0
    %3089 = vmatprep.subr.mxu0 0.0
    %3090 = vmatpush1.msra.mxu0 0.0
    %3091 = vmatprep.subr.mxu0 0.0
    %3092 = vmatpush1.msra.mxu0 0.0
    %3093 = vmatprep.subr.mxu0 0.0
    %3094 = vmatpush1.msra.mxu0 0.0
    %3095 = vmatprep.mubr.f32.mxu0 0.0
    %3096 = vmatmul.mubr.f32.gmra.mrb[0].mxu0 %v3027
    %v3097 = vpop.f32.mrb[0].mxu0
    %v3098 = vadd.f32 0.0, %v3097
    %v3099 = vpop.f32.mrb[0].mxu0
    %v3100 = vadd.f32 0.0, %v3099
    %3101 = vmatprep.mubr.f32.mxu0 0.0
    %3102 = vmatmul.mubr.f32.gmra.mrb[0].mxu0 %v3029
    %v3103 = vpop.f32.mrb[0].mxu0
    %v3104 = vadd.f32 0.0, %v3103
    %v3105 = vpop.f32.mrb[0].mxu0
    %v3106 = vadd.f32 0.0, %v3105
    %3107 = vdwg.mxu0
    %v3108 = vsel %vm1122, %v3020, 0
    %v3110 = vsel %vm1122, %v3021, 0
    %3112 = vmatprep.subr.mxu0 %v108
    %3113 = vmatpush1.msra.mxu0 %v107
    %3114 = vmatprep.subr.mxu0 %v110
    %3115 = vmatpush1.msra.mxu0 %v109
    %3116 = vmatprep.subr.mxu0 %v112
    %3117 = vmatpush1.msra.mxu0 %v111
    %3118 = vmatprep.subr.mxu0 %v114
    %3119 = vmatpush1.msra.mxu0 %v113
    %3120 = vmatprep.subr.mxu0 %v116
    %3121 = vmatpush1.msra.mxu0 %v115
    %3122 = vmatprep.subr.mxu0 %v118
    %3123 = vmatpush1.msra.mxu0 %v117
    %3124 = vmatprep.subr.mxu0 %v120
    %3125 = vmatpush1.msra.mxu0 %v119
    %3126 = vmatprep.subr.mxu0 %v122
    %3127 = vmatpush1.msra.mxu0 %v121
    %3128 = vmatprep.subr.mxu0 %v124
    %3129 = vmatpush1.msra.mxu0 %v123
    %3130 = vmatprep.subr.mxu0 %v126
    %3131 = vmatpush1.msra.mxu0 %v125
    %3132 = vmatprep.subr.mxu0 %v1218
    %3133 = vmatpush1.msra.mxu0 %v1215
    %3134 = vmatprep.subr.mxu0 0.0
    %3135 = vmatpush1.msra.mxu0 0.0
    %3136 = vmatprep.subr.mxu0 0.0
    %3137 = vmatpush1.msra.mxu0 0.0
    %3138 = vmatprep.subr.mxu0 0.0
    %3139 = vmatpush1.msra.mxu0 0.0
    %3140 = vmatprep.subr.mxu0 0.0
    %3141 = vmatpush1.msra.mxu0 0.0
    %3142 = vmatprep.subr.mxu0 0.0
    %3143 = vmatpush1.msra.mxu0 0.0
    %3144 = vmatprep.subr.mxu0 0.0
    %3145 = vmatpush1.msra.mxu0 0.0
    %3146 = vmatprep.subr.mxu0 0.0
    %3147 = vmatpush1.msra.mxu0 0.0
    %3148 = vmatprep.subr.mxu0 0.0
    %3149 = vmatpush1.msra.mxu0 0.0
    %3150 = vmatprep.subr.mxu0 0.0
    %3151 = vmatpush1.msra.mxu0 0.0
    %3152 = vmatprep.subr.mxu0 0.0
    %3153 = vmatpush1.msra.mxu0 0.0
    %3154 = vmatprep.subr.mxu0 0.0
    %3155 = vmatpush1.msra.mxu0 0.0
    %3156 = vmatprep.subr.mxu0 0.0
    %3157 = vmatpush1.msra.mxu0 0.0
    %3158 = vmatprep.subr.mxu0 0.0
    %3159 = vmatpush1.msra.mxu0 0.0
    %3160 = vmatprep.subr.mxu0 0.0
    %3161 = vmatpush1.msra.mxu0 0.0
    %3162 = vmatprep.subr.mxu0 0.0
    %3163 = vmatpush1.msra.mxu0 0.0
    %3164 = vmatprep.subr.mxu0 0.0
    %3165 = vmatpush1.msra.mxu0 0.0
    %3166 = vmatprep.subr.mxu0 0.0
    %3167 = vmatpush1.msra.mxu0 0.0
    %3168 = vmatprep.subr.mxu0 0.0
    %3169 = vmatpush1.msra.mxu0 0.0
    %3170 = vmatprep.subr.mxu0 0.0
    %3171 = vmatpush1.msra.mxu0 0.0
    %3172 = vmatprep.subr.mxu0 0.0
    %3173 = vmatpush1.msra.mxu0 0.0
    %3174 = vmatprep.subr.mxu0 0.0
    %3175 = vmatpush1.msra.mxu0 0.0
    %3176 = vmatprep.mubr.f32.mxu0 0.0
    %3177 = vmatmul.mubr.f32.gmra.mrb[0].mxu0 %v3108
    %v3178 = vpop.f32.mrb[0].mxu0
    %v3179 = vadd.f32 %v3098, %v3178
    %v3180 = vpop.f32.mrb[0].mxu0
    %v3181 = vadd.f32 %v3100, %v3180
    %3182 = vmatprep.mubr.f32.mxu0 0.0
    %3183 = vmatmul.mubr.f32.gmra.mrb[0].mxu0 %v3110
    %v3184 = vpop.f32.mrb[0].mxu0
    %v3185 = vadd.f32 %v3104, %v3184
    %v3186 = vpop.f32.mrb[0].mxu0
    %v3187 = vadd.f32 %v3106, %v3186
    %3188 = vdwg.mxu0
    %v3189 = vrot.slane %v3020, 2
    %v3190 = vrot.slane %v3021, 2
    %v3191 = vsel %vm565, %v3189, %v3190
    %v3192 = vsel %vm1122, %v3191, 0
    %v3194 = vsel %vm1122, %v3190, 0
    %3196 = vmatprep.subr.mxu0 %v154
    %3197 = vmatpush1.msra.mxu0 %v153
    %3198 = vmatprep.subr.mxu0 %v156
    %3199 = vmatpush1.msra.mxu0 %v155
    %3200 = vmatprep.subr.mxu0 %v158
    %3201 = vmatpush1.msra.mxu0 %v157
    %3202 = vmatprep.subr.mxu0 %v160
    %3203 = vmatpush1.msra.mxu0 %v159
    %3204 = vmatprep.subr.mxu0 %v162
    %3205 = vmatpush1.msra.mxu0 %v161
    %3206 = vmatprep.subr.mxu0 %v164
    %3207 = vmatpush1.msra.mxu0 %v163
    %3208 = vmatprep.subr.mxu0 %v166
    %3209 = vmatpush1.msra.mxu0 %v165
    %3210 = vmatprep.subr.mxu0 %v168
    %3211 = vmatpush1.msra.mxu0 %v167
    %3212 = vmatprep.subr.mxu0 %v170
    %3213 = vmatpush1.msra.mxu0 %v169
    %3214 = vmatprep.subr.mxu0 %v172
    %3215 = vmatpush1.msra.mxu0 %v171
    %3216 = vmatprep.subr.mxu0 %v1308
    %3217 = vmatpush1.msra.mxu0 %v1305
    %3218 = vmatprep.subr.mxu0 0.0
    %3219 = vmatpush1.msra.mxu0 0.0
    %3220 = vmatprep.subr.mxu0 0.0
    %3221 = vmatpush1.msra.mxu0 0.0
    %3222 = vmatprep.subr.mxu0 0.0
    %3223 = vmatpush1.msra.mxu0 0.0
    %3224 = vmatprep.subr.mxu0 0.0
    %3225 = vmatpush1.msra.mxu0 0.0
    %3226 = vmatprep.subr.mxu0 0.0
    %3227 = vmatpush1.msra.mxu0 0.0
    %3228 = vmatprep.subr.mxu0 0.0
    %3229 = vmatpush1.msra.mxu0 0.0
    %3230 = vmatprep.subr.mxu0 0.0
    %3231 = vmatpush1.msra.mxu0 0.0
    %3232 = vmatprep.subr.mxu0 0.0
    %3233 = vmatpush1.msra.mxu0 0.0
    %3234 = vmatprep.subr.mxu0 0.0
    %3235 = vmatpush1.msra.mxu0 0.0
    %3236 = vmatprep.subr.mxu0 0.0
    %3237 = vmatpush1.msra.mxu0 0.0
    %3238 = vmatprep.subr.mxu0 0.0
    %3239 = vmatpush1.msra.mxu0 0.0
    %3240 = vmatprep.subr.mxu0 0.0
    %3241 = vmatpush1.msra.mxu0 0.0
    %3242 = vmatprep.subr.mxu0 0.0
    %3243 = vmatpush1.msra.mxu0 0.0
    %3244 = vmatprep.subr.mxu0 0.0
    %3245 = vmatpush1.msra.mxu0 0.0
    %3246 = vmatprep.subr.mxu0 0.0
    %3247 = vmatpush1.msra.mxu0 0.0
    %3248 = vmatprep.subr.mxu0 0.0
    %3249 = vmatpush1.msra.mxu0 0.0
    %3250 = vmatprep.subr.mxu0 0.0
    %3251 = vmatpush1.msra.mxu0 0.0
    %3252 = vmatprep.subr.mxu0 0.0
    %3253 = vmatpush1.msra.mxu0 0.0
    %3254 = vmatprep.subr.mxu0 0.0
    %3255 = vmatpush1.msra.mxu0 0.0
    %3256 = vmatprep.subr.mxu0 0.0
    %3257 = vmatpush1.msra.mxu0 0.0
    %3258 = vmatprep.subr.mxu0 0.0
    %3259 = vmatpush1.msra.mxu0 0.0
    %3260 = vmatprep.mubr.f32.mxu0 0.0
    %3261 = vmatmul.mubr.f32.gmra.mrb[0].mxu0 %v3192
    %v3262 = vpop.f32.mrb[0].mxu0
    %v3263 = vadd.f32 0.0, %v3262
    %v3264 = vpop.f32.mrb[0].mxu0
    %v3265 = vadd.f32 0.0, %v3264
    %3266 = vmatprep.mubr.f32.mxu0 0.0
    %3267 = vmatmul.mubr.f32.gmra.mrb[0].mxu0 %v3194
    %v3268 = vpop.f32.mrb[0].mxu0
    %v3269 = vadd.f32 0.0, %v3268
    %v3270 = vpop.f32.mrb[0].mxu0
    %v3271 = vadd.f32 0.0, %v3270
    %3272 = vdwg.mxu0
    %v3273 = vadd.f32 %v3179, %v3263
    %v3274 = vadd.f32 %v3181, %v3265
    %v3275 = vadd.f32 %v3185, %v3269
    %v3276 = vadd.f32 %v3187, %v3271
    %v3277 = vrot.slane %v3020, 3
    %v3278 = vrot.slane %v3021, 3
    %v3279 = vsel %vm678, %v3277, %v3278
    %v3280 = vsel %vm1122, %v3279, 0
    %v3282 = vsel %vm1122, %v3278, 0
    %3284 = vmatprep.subr.mxu0 %v177
    %3285 = vmatpush1.msra.mxu0 %v176
    %3286 = vmatprep.subr.mxu0 %v179
    %3287 = vmatpush1.msra.mxu0 %v178
    %3288 = vmatprep.subr.mxu0 %v181
    %3289 = vmatpush1.msra.mxu0 %v180
    %3290 = vmatprep.subr.mxu0 %v183
    %3291 = vmatpush1.msra.mxu0 %v182
    %3292 = vmatprep.subr.mxu0 %v185
    %3293 = vmatpush1.msra.mxu0 %v184
    %3294 = vmatprep.subr.mxu0 %v187
    %3295 = vmatpush1.msra.mxu0 %v186
    %3296 = vmatprep.subr.mxu0 %v189
    %3297 = vmatpush1.msra.mxu0 %v188
    %3298 = vmatprep.subr.mxu0 %v191
    %3299 = vmatpush1.msra.mxu0 %v190
    %3300 = vmatprep.subr.mxu0 %v193
    %3301 = vmatpush1.msra.mxu0 %v192
    %3302 = vmatprep.subr.mxu0 %v195
    %3303 = vmatpush1.msra.mxu0 %v194
    %3304 = vmatprep.subr.mxu0 %v1402
    %3305 = vmatpush1.msra.mxu0 %v1399
    %3306 = vmatprep.subr.mxu0 0.0
    %3307 = vmatpush1.msra.mxu0 0.0
    %3308 = vmatprep.subr.mxu0 0.0
    %3309 = vmatpush1.msra.mxu0 0.0
    %3310 = vmatprep.subr.mxu0 0.0
    %3311 = vmatpush1.msra.mxu0 0.0
    %3312 = vmatprep.subr.mxu0 0.0
    %3313 = vmatpush1.msra.mxu0 0.0
    %3314 = vmatprep.subr.mxu0 0.0
    %3315 = vmatpush1.msra.mxu0 0.0
    %3316 = vmatprep.subr.mxu0 0.0
    %3317 = vmatpush1.msra.mxu0 0.0
    %3318 = vmatprep.subr.mxu0 0.0
    %3319 = vmatpush1.msra.mxu0 0.0
    %3320 = vmatprep.subr.mxu0 0.0
    %3321 = vmatpush1.msra.mxu0 0.0
    %3322 = vmatprep.subr.mxu0 0.0
    %3323 = vmatpush1.msra.mxu0 0.0
    %3324 = vmatprep.subr.mxu0 0.0
    %3325 = vmatpush1.msra.mxu0 0.0
    %3326 = vmatprep.subr.mxu0 0.0
    %3327 = vmatpush1.msra.mxu0 0.0
    %3328 = vmatprep.subr.mxu0 0.0
    %3329 = vmatpush1.msra.mxu0 0.0
    %3330 = vmatprep.subr.mxu0 0.0
    %3331 = vmatpush1.msra.mxu0 0.0
    %3332 = vmatprep.subr.mxu0 0.0
    %3333 = vmatpush1.msra.mxu0 0.0
    %3334 = vmatprep.subr.mxu0 0.0
    %3335 = vmatpush1.msra.mxu0 0.0
    %3336 = vmatprep.subr.mxu0 0.0
    %3337 = vmatpush1.msra.mxu0 0.0
    %3338 = vmatprep.subr.mxu0 0.0
    %3339 = vmatpush1.msra.mxu0 0.0
    %3340 = vmatprep.subr.mxu0 0.0
    %3341 = vmatpush1.msra.mxu0 0.0
    %3342 = vmatprep.subr.mxu0 0.0
    %3343 = vmatpush1.msra.mxu0 0.0
    %3344 = vmatprep.subr.mxu0 0.0
    %3345 = vmatpush1.msra.mxu0 0.0
    %3346 = vmatprep.subr.mxu0 0.0
    %3347 = vmatpush1.msra.mxu0 0.0
    %3348 = vmatprep.mubr.f32.mxu0 0.0
    %3349 = vmatmul.mubr.f32.gmra.mrb[0].mxu0 %v3280
    %v3350 = vpop.f32.mrb[0].mxu0
    %v3351 = vadd.f32 0.0, %v3350
    %v3352 = vpop.f32.mrb[0].mxu0
    %v3353 = vadd.f32 0.0, %v3352
    %3354 = vmatprep.mubr.f32.mxu0 0.0
    %3355 = vmatmul.mubr.f32.gmra.mrb[0].mxu0 %v3282
    %v3356 = vpop.f32.mrb[0].mxu0
    %v3357 = vadd.f32 0.0, %v3356
    %v3358 = vpop.f32.mrb[0].mxu0
    %v3359 = vadd.f32 0.0, %v3358
    %3360 = vdwg.mxu0
    %v3361 = vadd.f32 %v3273, %v3351
    %v3362 = vadd.f32 %v3274, %v3353
    %v3363 = vadd.f32 %v3275, %v3357
    %v3364 = vadd.f32 %v3276, %v3359
    %v3365 = vrot.slane %v3020, 4
    %v3366 = vrot.slane %v3021, 4
    %v3367 = vsel %vm791, %v3365, %v3366
    %v3368 = vsel %vm1122, %v3367, 0
    %v3370 = vsel %vm1122, %v3366, 0
    %3372 = vmatprep.subr.mxu0 %v200
    %3373 = vmatpush1.msra.mxu0 %v199
    %3374 = vmatprep.subr.mxu0 %v202
    %3375 = vmatpush1.msra.mxu0 %v201
    %3376 = vmatprep.subr.mxu0 %v204
    %3377 = vmatpush1.msra.mxu0 %v203
    %3378 = vmatprep.subr.mxu0 %v206
    %3379 = vmatpush1.msra.mxu0 %v205
    %3380 = vmatprep.subr.mxu0 %v208
    %3381 = vmatpush1.msra.mxu0 %v207
    %3382 = vmatprep.subr.mxu0 %v210
    %3383 = vmatpush1.msra.mxu0 %v209
    %3384 = vmatprep.subr.mxu0 %v212
    %3385 = vmatpush1.msra.mxu0 %v211
    %3386 = vmatprep.subr.mxu0 %v214
    %3387 = vmatpush1.msra.mxu0 %v213
    %3388 = vmatprep.subr.mxu0 %v216
    %3389 = vmatpush1.msra.mxu0 %v215
    %3390 = vmatprep.subr.mxu0 %v218
    %3391 = vmatpush1.msra.mxu0 %v217
    %3392 = vmatprep.subr.mxu0 %v1496
    %3393 = vmatpush1.msra.mxu0 %v1493
    %3394 = vmatprep.subr.mxu0 0.0
    %3395 = vmatpush1.msra.mxu0 0.0
    %3396 = vmatprep.subr.mxu0 0.0
    %3397 = vmatpush1.msra.mxu0 0.0
    %3398 = vmatprep.subr.mxu0 0.0
    %3399 = vmatpush1.msra.mxu0 0.0
    %3400 = vmatprep.subr.mxu0 0.0
    %3401 = vmatpush1.msra.mxu0 0.0
    %3402 = vmatprep.subr.mxu0 0.0
    %3403 = vmatpush1.msra.mxu0 0.0
    %3404 = vmatprep.subr.mxu0 0.0
    %3405 = vmatpush1.msra.mxu0 0.0
    %3406 = vmatprep.subr.mxu0 0.0
    %3407 = vmatpush1.msra.mxu0 0.0
    %3408 = vmatprep.subr.mxu0 0.0
    %3409 = vmatpush1.msra.mxu0 0.0
    %3410 = vmatprep.subr.mxu0 0.0
    %3411 = vmatpush1.msra.mxu0 0.0
    %3412 = vmatprep.subr.mxu0 0.0
    %3413 = vmatpush1.msra.mxu0 0.0
    %3414 = vmatprep.subr.mxu0 0.0
    %3415 = vmatpush1.msra.mxu0 0.0
    %3416 = vmatprep.subr.mxu0 0.0
    %3417 = vmatpush1.msra.mxu0 0.0
    %3418 = vmatprep.subr.mxu0 0.0
    %3419 = vmatpush1.msra.mxu0 0.0
    %3420 = vmatprep.subr.mxu0 0.0
    %3421 = vmatpush1.msra.mxu0 0.0
    %3422 = vmatprep.subr.mxu0 0.0
    %3423 = vmatpush1.msra.mxu0 0.0
    %3424 = vmatprep.subr.mxu0 0.0
    %3425 = vmatpush1.msra.mxu0 0.0
    %3426 = vmatprep.subr.mxu0 0.0
    %3427 = vmatpush1.msra.mxu0 0.0
    %3428 = vmatprep.subr.mxu0 0.0
    %3429 = vmatpush1.msra.mxu0 0.0
    %3430 = vmatprep.subr.mxu0 0.0
    %3431 = vmatpush1.msra.mxu0 0.0
    %3432 = vmatprep.subr.mxu0 0.0
    %3433 = vmatpush1.msra.mxu0 0.0
    %3434 = vmatprep.subr.mxu0 0.0
    %3435 = vmatpush1.msra.mxu0 0.0
    %3436 = vmatprep.mubr.f32.mxu0 0.0
    %3437 = vmatmul.mubr.f32.gmra.mrb[0].mxu0 %v3368
    %v3438 = vpop.f32.mrb[0].mxu0
    %v3439 = vadd.f32 0.0, %v3438
    %v3440 = vpop.f32.mrb[0].mxu0
    %v3441 = vadd.f32 0.0, %v3440
    %3442 = vmatprep.mubr.f32.mxu0 0.0
    %3443 = vmatmul.mubr.f32.gmra.mrb[0].mxu0 %v3370
    %v3444 = vpop.f32.mrb[0].mxu0
    %v3445 = vadd.f32 0.0, %v3444
    %v3446 = vpop.f32.mrb[0].mxu0
    %v3447 = vadd.f32 0.0, %v3446
    %3448 = vdwg.mxu0
    %v3449 = vadd.f32 %v3361, %v3439
    %v3450 = vadd.f32 %v3362, %v3441
    %v3451 = vadd.f32 %v3363, %v3445
    %v3452 = vadd.f32 %v3364, %v3447
    %v3453 = vadd.f32 %v3449, %v1583
    %v3454 = vadd.f32 %v3450, %v1587
    %v3455 = vadd.f32 %v3451, %v1583
    %v3456 = vadd.f32 %v3452, %v1587
    %v3458 = vsel %vm1598, %v3455, 0
    %v3461 = vsel %vm1598, %v3456, 0
    %3463 = vmatprep.subr.mxu0 %v3454
    %3464 = vmatpush1.msra.mxu0 %v3453
    %3465 = vmatprep.subr.mxu0 %v3461
    %3466 = vmatpush1.msra.mxu0 %v3458
    %3467 = vmatprep.subr.mxu0 0.0
    %3468 = vmatpush1.msra.mxu0 0.0
    %3469 = vmatprep.subr.mxu0 0.0
    %3470 = vmatpush1.msra.mxu0 0.0
    %3471 = vmatprep.subr.mxu0 0.0
    %3472 = vmatpush1.msra.mxu0 0.0
    %3473 = vmatprep.subr.mxu0 0.0
    %3474 = vmatpush1.msra.mxu0 0.0
    %3475 = vmatprep.subr.mxu0 0.0
    %3476 = vmatpush1.msra.mxu0 0.0
    %3477 = vmatprep.subr.mxu0 0.0
    %3478 = vmatpush1.msra.mxu0 0.0
    %3479 = vmatprep.subr.mxu0 0.0
    %3480 = vmatpush1.msra.mxu0 0.0
    %3481 = vmatprep.subr.mxu0 0.0
    %3482 = vmatpush1.msra.mxu0 0.0
    %3483 = vmatprep.subr.mxu0 0.0
    %3484 = vmatpush1.msra.mxu0 0.0
    %3485 = vmatprep.subr.mxu0 0.0
    %3486 = vmatpush1.msra.mxu0 0.0
    %3487 = vmatprep.subr.mxu0 0.0
    %3488 = vmatpush1.msra.mxu0 0.0
    %3489 = vmatprep.subr.mxu0 0.0
    %3490 = vmatpush1.msra.mxu0 0.0
    %3491 = vmatprep.subr.mxu0 0.0
    %3492 = vmatpush1.msra.mxu0 0.0
    %3493 = vmatprep.subr.mxu0 0.0
    %3494 = vmatpush1.msra.mxu0 0.0
    %3495 = vmatprep.subr.mxu0 0.0
    %3496 = vmatpush1.msra.mxu0 0.0
    %3497 = vmatprep.subr.mxu0 0.0
    %3498 = vmatpush1.msra.mxu0 0.0
    %3499 = vmatprep.subr.mxu0 0.0
    %3500 = vmatpush1.msra.mxu0 0.0
    %3501 = vmatprep.subr.mxu0 0.0
    %3502 = vmatpush1.msra.mxu0 0.0
    %3503 = vmatprep.subr.mxu0 0.0
    %3504 = vmatpush1.msra.mxu0 0.0
    %3505 = vmatprep.subr.mxu0 0.0
    %3506 = vmatpush1.msra.mxu0 0.0
    %3507 = vmatprep.subr.mxu0 0.0
    %3508 = vmatpush1.msra.mxu0 0.0
    %3509 = vmatprep.subr.mxu0 0.0
    %3510 = vmatpush1.msra.mxu0 0.0
    %3511 = vmatprep.subr.mxu0 0.0
    %3512 = vmatpush1.msra.mxu0 0.0
    %3513 = vmatprep.subr.mxu0 0.0
    %3514 = vmatpush1.msra.mxu0 0.0
    %3515 = vmatprep.subr.mxu0 0.0
    %3516 = vmatpush1.msra.mxu0 0.0
    %3517 = vmatprep.subr.mxu0 0.0
    %3518 = vmatpush1.msra.mxu0 0.0
    %3519 = vmatprep.subr.mxu0 0.0
    %3520 = vmatpush1.msra.mxu0 0.0
    %3521 = vmatprep.subr.mxu0 0.0
    %3522 = vmatpush1.msra.mxu0 0.0
    %3523 = vmatprep.subr.mxu0 0.0
    %3524 = vmatpush1.msra.mxu0 0.0
    %3525 = vmatprep.subr.mxu0 0.0
    %3526 = vmatpush1.msra.mxu0 0.0
    %3527 = vmatprep.mubr.f32.mxu0 0.0
    %3528 = vmatmul.mubr.f32.gmra.mrb[0].mxu0 %v1596
    %v3529 = vpop.f32.mrb[0].mxu0
    %v3530 = vadd.f32 0.0, %v3529
    %v3531 = vpop.f32.mrb[0].mxu0
    %v3532 = vadd.f32 0.0, %v3531
    %3533 = vdwg.mxu0
    %v3535 = vsel %vm370, %v3532, 0
    %3537 = vmatprep.subr.mxu0 0.0
    %3538 = vmatpush1.msra.mxu0 %v302
    %3539 = vmatprep.subr.mxu0 0.0
    %3540 = vmatpush1.msra.mxu0 %v303
    %3541 = vmatprep.subr.mxu0 0.0
    %3542 = vmatpush1.msra.mxu0 %v304
    %3543 = vmatprep.subr.mxu0 0.0
    %3544 = vmatpush1.msra.mxu0 %v305
    %3545 = vmatprep.subr.mxu0 0.0
    %3546 = vmatpush1.msra.mxu0 %v306
    %3547 = vmatprep.subr.mxu0 0.0
    %3548 = vmatpush1.msra.mxu0 %v307
    %3549 = vmatprep.subr.mxu0 0.0
    %3550 = vmatpush1.msra.mxu0 %v308
    %3551 = vmatprep.subr.mxu0 0.0
    %3552 = vmatpush1.msra.mxu0 %v309
    %3553 = vmatprep.subr.mxu0 0.0
    %3554 = vmatpush1.msra.mxu0 %v310
    %3555 = vmatprep.subr.mxu0 0.0
    %3556 = vmatpush1.msra.mxu0 %v311
    %3557 = vmatprep.subr.mxu0 0.0
    %3558 = vmatpush1.msra.mxu0 %v312
    %3559 = vmatprep.subr.mxu0 0.0
    %3560 = vmatpush1.msra.mxu0 %v313
    %3561 = vmatprep.subr.mxu0 0.0
    %3562 = vmatpush1.msra.mxu0 %v314
    %3563 = vmatprep.subr.mxu0 0.0
    %3564 = vmatpush1.msra.mxu0 %v315
    %3565 = vmatprep.subr.mxu0 0.0
    %3566 = vmatpush1.msra.mxu0 %v316
    %3567 = vmatprep.subr.mxu0 0.0
    %3568 = vmatpush1.msra.mxu0 %v317
    %3569 = vmatprep.subr.mxu0 0.0
    %3570 = vmatpush1.msra.mxu0 %v318
    %3571 = vmatprep.subr.mxu0 0.0
    %3572 = vmatpush1.msra.mxu0 %v319
    %3573 = vmatprep.subr.mxu0 0.0
    %3574 = vmatpush1.msra.mxu0 %v320
    %3575 = vmatprep.subr.mxu0 0.0
    %3576 = vmatpush1.msra.mxu0 %v321
    %3577 = vmatprep.subr.mxu0 0.0
    %3578 = vmatpush1.msra.mxu0 0.0
    %3579 = vmatprep.subr.mxu0 0.0
    %3580 = vmatpush1.msra.mxu0 0.0
    %3581 = vmatprep.subr.mxu0 0.0
    %3582 = vmatpush1.msra.mxu0 0.0
    %3583 = vmatprep.subr.mxu0 0.0
    %3584 = vmatpush1.msra.mxu0 0.0
    %3585 = vmatprep.subr.mxu0 0.0
    %3586 = vmatpush1.msra.mxu0 0.0
    %3587 = vmatprep.subr.mxu0 0.0
    %3588 = vmatpush1.msra.mxu0 0.0
    %3589 = vmatprep.subr.mxu0 0.0
    %3590 = vmatpush1.msra.mxu0 0.0
    %3591 = vmatprep.subr.mxu0 0.0
    %3592 = vmatpush1.msra.mxu0 0.0
    %3593 = vmatprep.subr.mxu0 0.0
    %3594 = vmatpush1.msra.mxu0 0.0
    %3595 = vmatprep.subr.mxu0 0.0
    %3596 = vmatpush1.msra.mxu0 0.0
    %3597 = vmatprep.subr.mxu0 0.0
    %3598 = vmatpush1.msra.mxu0 0.0
    %3599 = vmatprep.subr.mxu0 0.0
    %3600 = vmatpush1.msra.mxu0 0.0
    %3601 = vmatprep.mubr.f32.mxu0 %v3535
    %3602 = vmatmul.mubr.f32.gmra.mrb[0].mxu0 %v3530
    %v3603 = vpop.f32.mrb[0].mxu0
    %v3604 = vadd.f32 0.0, %v3603
    %v3605 = vpop.f32.mrb[0].mxu0
    %3606 = vdwg.mxu0
    %v3607 = vmul.f32 %v3604, %v1753
    %v3608 = vadd.f32 %v3607, %v1760
    %v3609 = vmul.f32 %v3608, 0.6666667
    %v3610 = vtanh.pop %v3609
    %v3611 = vmul.f32 %v3610, 1.7159
    %v3613 = vrot.slane %v3611, 1
    %v3614 = vsel %vm1768, %v3613, 0
    %3616 = vmatprep.subr.mxu0 0.0
    %3617 = vmatpush1.msra.mxu0 %v232
    %3618 = vmatprep.subr.mxu0 0.0
    %3619 = vmatpush1.msra.mxu0 %v233
    %3620 = vmatprep.subr.mxu0 0.0
    %3621 = vmatpush1.msra.mxu0 %v234
    %3622 = vmatprep.subr.mxu0 0.0
    %3623 = vmatpush1.msra.mxu0 %v235
    %3624 = vmatprep.subr.mxu0 0.0
    %3625 = vmatpush1.msra.mxu0 %v236
    %3626 = vmatprep.subr.mxu0 0.0
    %3627 = vmatpush1.msra.mxu0 %v237
    %3628 = vmatprep.subr.mxu0 0.0
    %3629 = vmatpush1.msra.mxu0 %v238
    %3630 = vmatprep.subr.mxu0 0.0
    %3631 = vmatpush1.msra.mxu0 %v239
    %3632 = vmatprep.subr.mxu0 0.0
    %3633 = vmatpush1.msra.mxu0 %v240
    %3634 = vmatprep.subr.mxu0 0.0
    %3635 = vmatpush1.msra.mxu0 %v241
    %3636 = vmatprep.subr.mxu0 0.0
    %3637 = vmatpush1.msra.mxu0 0.0
    %3638 = vmatprep.subr.mxu0 0.0
    %3639 = vmatpush1.msra.mxu0 0.0
    %3640 = vmatprep.subr.mxu0 0.0
    %3641 = vmatpush1.msra.mxu0 0.0
    %3642 = vmatprep.subr.mxu0 0.0
    %3643 = vmatpush1.msra.mxu0 0.0
    %3644 = vmatprep.subr.mxu0 0.0
    %3645 = vmatpush1.msra.mxu0 0.0
    %3646 = vmatprep.subr.mxu0 0.0
    %3647 = vmatpush1.msra.mxu0 0.0
    %3648 = vmatprep.subr.mxu0 0.0
    %3649 = vmatpush1.msra.mxu0 0.0
    %3650 = vmatprep.subr.mxu0 0.0
    %3651 = vmatpush1.msra.mxu0 0.0
    %3652 = vmatprep.subr.mxu0 0.0
    %3653 = vmatpush1.msra.mxu0 0.0
    %3654 = vmatprep.subr.mxu0 0.0
    %3655 = vmatpush1.msra.mxu0 0.0
    %3656 = vmatprep.subr.mxu0 0.0
    %3657 = vmatpush1.msra.mxu0 0.0
    %3658 = vmatprep.subr.mxu0 0.0
    %3659 = vmatpush1.msra.mxu0 0.0
    %3660 = vmatprep.subr.mxu0 0.0
    %3661 = vmatpush1.msra.mxu0 0.0
    %3662 = vmatprep.subr.mxu0 0.0
    %3663 = vmatpush1.msra.mxu0 0.0
    %3664 = vmatprep.subr.mxu0 0.0
    %3665 = vmatpush1.msra.mxu0 0.0
    %3666 = vmatprep.subr.mxu0 0.0
    %3667 = vmatpush1.msra.mxu0 0.0
    %3668 = vmatprep.subr.mxu0 0.0
    %3669 = vmatpush1.msra.mxu0 0.0
    %3670 = vmatprep.subr.mxu0 0.0
    %3671 = vmatpush1.msra.mxu0 0.0
    %3672 = vmatprep.subr.mxu0 0.0
    %3673 = vmatpush1.msra.mxu0 0.0
    %3674 = vmatprep.subr.mxu0 0.0
    %3675 = vmatpush1.msra.mxu0 0.0
    %3676 = vmatprep.subr.mxu0 0.0
    %3677 = vmatpush1.msra.mxu0 0.0
    %3678 = vmatprep.subr.mxu0 0.0
    %3679 = vmatpush1.msra.mxu0 0.0
    %3680 = vmatprep.mubr.f32.mxu0 0.0
    %3681 = vmatmul.mubr.f32.gmra.mrb[0].mxu0 %v3614
    %v3682 = vpop.f32.mrb[0].mxu0
    %v3683 = vadd.f32 0.0, %v3682
    %v3684 = vpop.f32.mrb[0].mxu0
    %3685 = vdwg.mxu0
    %v3686 = vsel %vm1768, %v3611, 0
    %3688 = vmatprep.subr.mxu0 0.0
    %3689 = vmatpush1.msra.mxu0 %v221
    %3690 = vmatprep.subr.mxu0 0.0
    %3691 = vmatpush1.msra.mxu0 %v222
    %3692 = vmatprep.subr.mxu0 0.0
    %3693 = vmatpush1.msra.mxu0 %v223
    %3694 = vmatprep.subr.mxu0 0.0
    %3695 = vmatpush1.msra.mxu0 %v224
    %3696 = vmatprep.subr.mxu0 0.0
    %3697 = vmatpush1.msra.mxu0 %v225
    %3698 = vmatprep.subr.mxu0 0.0
    %3699 = vmatpush1.msra.mxu0 %v226
    %3700 = vmatprep.subr.mxu0 0.0
    %3701 = vmatpush1.msra.mxu0 %v227
    %3702 = vmatprep.subr.mxu0 0.0
    %3703 = vmatpush1.msra.mxu0 %v228
    %3704 = vmatprep.subr.mxu0 0.0
    %3705 = vmatpush1.msra.mxu0 %v229
    %3706 = vmatprep.subr.mxu0 0.0
    %3707 = vmatpush1.msra.mxu0 %v230
    %3708 = vmatprep.subr.mxu0 0.0
    %3709 = vmatpush1.msra.mxu0 0.0
    %3710 = vmatprep.subr.mxu0 0.0
    %3711 = vmatpush1.msra.mxu0 0.0
    %3712 = vmatprep.subr.mxu0 0.0
    %3713 = vmatpush1.msra.mxu0 0.0
    %3714 = vmatprep.subr.mxu0 0.0
    %3715 = vmatpush1.msra.mxu0 0.0
    %3716 = vmatprep.subr.mxu0 0.0
    %3717 = vmatpush1.msra.mxu0 0.0
    %3718 = vmatprep.subr.mxu0 0.0
    %3719 = vmatpush1.msra.mxu0 0.0
    %3720 = vmatprep.subr.mxu0 0.0
    %3721 = vmatpush1.msra.mxu0 0.0
    %3722 = vmatprep.subr.mxu0 0.0
    %3723 = vmatpush1.msra.mxu0 0.0
    %3724 = vmatprep.subr.mxu0 0.0
    %3725 = vmatpush1.msra.mxu0 0.0
    %3726 = vmatprep.subr.mxu0 0.0
    %3727 = vmatpush1.msra.mxu0 0.0
    %3728 = vmatprep.subr.mxu0 0.0
    %3729 = vmatpush1.msra.mxu0 0.0
    %3730 = vmatprep.subr.mxu0 0.0
    %3731 = vmatpush1.msra.mxu0 0.0
    %3732 = vmatprep.subr.mxu0 0.0
    %3733 = vmatpush1.msra.mxu0 0.0
    %3734 = vmatprep.subr.mxu0 0.0
    %3735 = vmatpush1.msra.mxu0 0.0
    %3736 = vmatprep.subr.mxu0 0.0
    %3737 = vmatpush1.msra.mxu0 0.0
    %3738 = vmatprep.subr.mxu0 0.0
    %3739 = vmatpush1.msra.mxu0 0.0
    %3740 = vmatprep.subr.mxu0 0.0
    %3741 = vmatpush1.msra.mxu0 0.0
    %3742 = vmatprep.subr.mxu0 0.0
    %3743 = vmatpush1.msra.mxu0 0.0
    %3744 = vmatprep.subr.mxu0 0.0
    %3745 = vmatpush1.msra.mxu0 0.0
    %3746 = vmatprep.subr.mxu0 0.0
    %3747 = vmatpush1.msra.mxu0 0.0
    %3748 = vmatprep.subr.mxu0 0.0
    %3749 = vmatpush1.msra.mxu0 0.0
    %3750 = vmatprep.subr.mxu0 0.0
    %3751 = vmatpush1.msra.mxu0 0.0
    %3752 = vmatprep.mubr.f32.mxu0 0.0
    %3753 = vmatmul.mubr.f32.gmra.mrb[0].mxu0 %v3686
    %v3754 = vpop.f32.mrb[0].mxu0
    %v3755 = vadd.f32 %v3683, %v3754
    %v3756 = vpop.f32.mrb[0].mxu0
    %3757 = vdwg.mxu0
    %v3758 = vrot.slane %v3611, 2
    %v3759 = vsel %vm1768, %v3758, 0
    %3761 = vmatprep.subr.mxu0 0.0
    %3762 = vmatpush1.msra.mxu0 %v243
    %3763 = vmatprep.subr.mxu0 0.0
    %3764 = vmatpush1.msra.mxu0 %v244
    %3765 = vmatprep.subr.mxu0 0.0
    %3766 = vmatpush1.msra.mxu0 %v245
    %3767 = vmatprep.subr.mxu0 0.0
    %3768 = vmatpush1.msra.mxu0 %v246
    %3769 = vmatprep.subr.mxu0 0.0
    %3770 = vmatpush1.msra.mxu0 %v247
    %3771 = vmatprep.subr.mxu0 0.0
    %3772 = vmatpush1.msra.mxu0 %v248
    %3773 = vmatprep.subr.mxu0 0.0
    %3774 = vmatpush1.msra.mxu0 %v249
    %3775 = vmatprep.subr.mxu0 0.0
    %3776 = vmatpush1.msra.mxu0 %v250
    %3777 = vmatprep.subr.mxu0 0.0
    %3778 = vmatpush1.msra.mxu0 %v251
    %3779 = vmatprep.subr.mxu0 0.0
    %3780 = vmatpush1.msra.mxu0 %v252
    %3781 = vmatprep.subr.mxu0 0.0
    %3782 = vmatpush1.msra.mxu0 0.0
    %3783 = vmatprep.subr.mxu0 0.0
    %3784 = vmatpush1.msra.mxu0 0.0
    %3785 = vmatprep.subr.mxu0 0.0
    %3786 = vmatpush1.msra.mxu0 0.0
    %3787 = vmatprep.subr.mxu0 0.0
    %3788 = vmatpush1.msra.mxu0 0.0
    %3789 = vmatprep.subr.mxu0 0.0
    %3790 = vmatpush1.msra.mxu0 0.0
    %3791 = vmatprep.subr.mxu0 0.0
    %3792 = vmatpush1.msra.mxu0 0.0
    %3793 = vmatprep.subr.mxu0 0.0
    %3794 = vmatpush1.msra.mxu0 0.0
    %3795 = vmatprep.subr.mxu0 0.0
    %3796 = vmatpush1.msra.mxu0 0.0
    %3797 = vmatprep.subr.mxu0 0.0
    %3798 = vmatpush1.msra.mxu0 0.0
    %3799 = vmatprep.subr.mxu0 0.0
    %3800 = vmatpush1.msra.mxu0 0.0
    %3801 = vmatprep.subr.mxu0 0.0
    %3802 = vmatpush1.msra.mxu0 0.0
    %3803 = vmatprep.subr.mxu0 0.0
    %3804 = vmatpush1.msra.mxu0 0.0
    %3805 = vmatprep.subr.mxu0 0.0
    %3806 = vmatpush1.msra.mxu0 0.0
    %3807 = vmatprep.subr.mxu0 0.0
    %3808 = vmatpush1.msra.mxu0 0.0
    %3809 = vmatprep.subr.mxu0 0.0
    %3810 = vmatpush1.msra.mxu0 0.0
    %3811 = vmatprep.subr.mxu0 0.0
    %3812 = vmatpush1.msra.mxu0 0.0
    %3813 = vmatprep.subr.mxu0 0.0
    %3814 = vmatpush1.msra.mxu0 0.0
    %3815 = vmatprep.subr.mxu0 0.0
    %3816 = vmatpush1.msra.mxu0 0.0
    %3817 = vmatprep.subr.mxu0 0.0
    %3818 = vmatpush1.msra.mxu0 0.0
    %3819 = vmatprep.subr.mxu0 0.0
    %3820 = vmatpush1.msra.mxu0 0.0
    %3821 = vmatprep.subr.mxu0 0.0
    %3822 = vmatpush1.msra.mxu0 0.0
    %3823 = vmatprep.subr.mxu0 0.0
    %3824 = vmatpush1.msra.mxu0 0.0
    %3825 = vmatprep.mubr.f32.mxu0 0.0
    %3826 = vmatmul.mubr.f32.gmra.mrb[0].mxu0 %v3759
    %v3827 = vpop.f32.mrb[0].mxu0
    %v3828 = vadd.f32 0.0, %v3827
    %v3829 = vpop.f32.mrb[0].mxu0
    %3830 = vdwg.mxu0
    %v3831 = vadd.f32 %v3755, %v3828
    %v3832 = vrot.slane %v3611, 3
    %v3833 = vsel %vm1768, %v3832, 0
    %3835 = vmatprep.subr.mxu0 0.0
    %3836 = vmatpush1.msra.mxu0 %v254
    %3837 = vmatprep.subr.mxu0 0.0
    %3838 = vmatpush1.msra.mxu0 %v255
    %3839 = vmatprep.subr.mxu0 0.0
    %3840 = vmatpush1.msra.mxu0 %v256
    %3841 = vmatprep.subr.mxu0 0.0
    %3842 = vmatpush1.msra.mxu0 %v257
    %3843 = vmatprep.subr.mxu0 0.0
    %3844 = vmatpush1.msra.mxu0 %v258
    %3845 = vmatprep.subr.mxu0 0.0
    %3846 = vmatpush1.msra.mxu0 %v259
    %3847 = vmatprep.subr.mxu0 0.0
    %3848 = vmatpush1.msra.mxu0 %v260
    %3849 = vmatprep.subr.mxu0 0.0
    %3850 = vmatpush1.msra.mxu0 %v261
    %3851 = vmatprep.subr.mxu0 0.0
    %3852 = vmatpush1.msra.mxu0 %v262
    %3853 = vmatprep.subr.mxu0 0.0
    %3854 = vmatpush1.msra.mxu0 %v263
    %3855 = vmatprep.subr.mxu0 0.0
    %3856 = vmatpush1.msra.mxu0 0.0
    %3857 = vmatprep.subr.mxu0 0.0
    %3858 = vmatpush1.msra.mxu0 0.0
    %3859 = vmatprep.subr.mxu0 0.0
    %3860 = vmatpush1.msra.mxu0 0.0
    %3861 = vmatprep.subr.mxu0 0.0
    %3862 = vmatpush1.msra.mxu0 0.0
    %3863 = vmatprep.subr.mxu0 0.0
    %3864 = vmatpush1.msra.mxu0 0.0
    %3865 = vmatprep.subr.mxu0 0.0
    %3866 = vmatpush1.msra.mxu0 0.0
    %3867 = vmatprep.subr.mxu0 0.0
    %3868 = vmatpush1.msra.mxu0 0.0
    %3869 = vmatprep.subr.mxu0 0.0
    %3870 = vmatpush1.msra.mxu0 0.0
    %3871 = vmatprep.subr.mxu0 0.0
    %3872 = vmatpush1.msra.mxu0 0.0
    %3873 = vmatprep.subr.mxu0 0.0
    %3874 = vmatpush1.msra.mxu0 0.0
    %3875 = vmatprep.subr.mxu0 0.0
    %3876 = vmatpush1.msra.mxu0 0.0
    %3877 = vmatprep.subr.mxu0 0.0
    %3878 = vmatpush1.msra.mxu0 0.0
    %3879 = vmatprep.subr.mxu0 0.0
    %3880 = vmatpush1.msra.mxu0 0.0
    %3881 = vmatprep.subr.mxu0 0.0
    %3882 = vmatpush1.msra.mxu0 0.0
    %3883 = vmatprep.subr.mxu0 0.0
    %3884 = vmatpush1.msra.mxu0 0.0
    %3885 = vmatprep.subr.mxu0 0.0
    %3886 = vmatpush1.msra.mxu0 0.0
    %3887 = vmatprep.subr.mxu0 0.0
    %3888 = vmatpush1.msra.mxu0 0.0
    %3889 = vmatprep.subr.mxu0 0.0
    %3890 = vmatpush1.msra.mxu0 0.0
    %3891 = vmatprep.subr.mxu0 0.0
    %3892 = vmatpush1.msra.mxu0 0.0
    %3893 = vmatprep.subr.mxu0 0.0
    %3894 = vmatpush1.msra.mxu0 0.0
    %3895 = vmatprep.subr.mxu0 0.0
    %3896 = vmatpush1.msra.mxu0 0.0
    %3897 = vmatprep.subr.mxu0 0.0
    %3898 = vmatpush1.msra.mxu0 0.0
    %3899 = vmatprep.mubr.f32.mxu0 0.0
    %3900 = vmatmul.mubr.f32.gmra.mrb[0].mxu0 %v3833
    %v3901 = vpop.f32.mrb[0].mxu0
    %v3902 = vadd.f32 0.0, %v3901
    %v3903 = vpop.f32.mrb[0].mxu0
    %3904 = vdwg.mxu0
    %v3905 = vadd.f32 %v3831, %v3902
    %v3906 = vrot.slane %v3611, 4
    %v3907 = vsel %vm1768, %v3906, 0
    %3909 = vmatprep.subr.mxu0 0.0
    %3910 = vmatpush1.msra.mxu0 %v265
    %3911 = vmatprep.subr.mxu0 0.0
    %3912 = vmatpush1.msra.mxu0 %v266
    %3913 = vmatprep.subr.mxu0 0.0
    %3914 = vmatpush1.msra.mxu0 %v267
    %3915 = vmatprep.subr.mxu0 0.0
    %3916 = vmatpush1.msra.mxu0 %v268
    %3917 = vmatprep.subr.mxu0 0.0
    %3918 = vmatpush1.msra.mxu0 %v269
    %3919 = vmatprep.subr.mxu0 0.0
    %3920 = vmatpush1.msra.mxu0 %v270
    %3921 = vmatprep.subr.mxu0 0.0
    %3922 = vmatpush1.msra.mxu0 %v271
    %3923 = vmatprep.subr.mxu0 0.0
    %3924 = vmatpush1.msra.mxu0 %v272
    %3925 = vmatprep.subr.mxu0 0.0
    %3926 = vmatpush1.msra.mxu0 %v273
    %3927 = vmatprep.subr.mxu0 0.0
    %3928 = vmatpush1.msra.mxu0 %v274
    %3929 = vmatprep.subr.mxu0 0.0
    %3930 = vmatpush1.msra.mxu0 0.0
    %3931 = vmatprep.subr.mxu0 0.0
    %3932 = vmatpush1.msra.mxu0 0.0
    %3933 = vmatprep.subr.mxu0 0.0
    %3934 = vmatpush1.msra.mxu0 0.0
    %3935 = vmatprep.subr.mxu0 0.0
    %3936 = vmatpush1.msra.mxu0 0.0
    %3937 = vmatprep.subr.mxu0 0.0
    %3938 = vmatpush1.msra.mxu0 0.0
    %3939 = vmatprep.subr.mxu0 0.0
    %3940 = vmatpush1.msra.mxu0 0.0
    %3941 = vmatprep.subr.mxu0 0.0
    %3942 = vmatpush1.msra.mxu0 0.0
    %3943 = vmatprep.subr.mxu0 0.0
    %3944 = vmatpush1.msra.mxu0 0.0
    %3945 = vmatprep.subr.mxu0 0.0
    %3946 = vmatpush1.msra.mxu0 0.0
    %3947 = vmatprep.subr.mxu0 0.0
    %3948 = vmatpush1.msra.mxu0 0.0
    %3949 = vmatprep.subr.mxu0 0.0
    %3950 = vmatpush1.msra.mxu0 0.0
    %3951 = vmatprep.subr.mxu0 0.0
    %3952 = vmatpush1.msra.mxu0 0.0
    %3953 = vmatprep.subr.mxu0 0.0
    %3954 = vmatpush1.msra.mxu0 0.0
    %3955 = vmatprep.subr.mxu0 0.0
    %3956 = vmatpush1.msra.mxu0 0.0
    %3957 = vmatprep.subr.mxu0 0.0
    %3958 = vmatpush1.msra.mxu0 0.0
    %3959 = vmatprep.subr.mxu0 0.0
    %3960 = vmatpush1.msra.mxu0 0.0
    %3961 = vmatprep.subr.mxu0 0.0
    %3962 = vmatpush1.msra.mxu0 0.0
    %3963 = vmatprep.subr.mxu0 0.0
    %3964 = vmatpush1.msra.mxu0 0.0
    %3965 = vmatprep.subr.mxu0 0.0
    %3966 = vmatpush1.msra.mxu0 0.0
    %3967 = vmatprep.subr.mxu0 0.0
    %3968 = vmatpush1.msra.mxu0 0.0
    %3969 = vmatprep.subr.mxu0 0.0
    %3970 = vmatpush1.msra.mxu0 0.0
    %3971 = vmatprep.subr.mxu0 0.0
    %3972 = vmatpush1.msra.mxu0 0.0
    %3973 = vmatprep.mubr.f32.mxu0 0.0
    %3974 = vmatmul.mubr.f32.gmra.mrb[0].mxu0 %v3907
    %v3975 = vpop.f32.mrb[0].mxu0
    %v3976 = vadd.f32 0.0, %v3975
    %v3977 = vpop.f32.mrb[0].mxu0
    %3978 = vdwg.mxu0
    %v3979 = vadd.f32 %v3905, %v3976
    %v3980 = vadd.f32 %v3979, %v277
    %v3982 = vsel %vm2136, %v3980, 0
    %3984 = vmatprep.subr.mxu0 0.0
    %3985 = vmatpush1.msra.mxu0 %v326
    %3986 = vmatprep.subr.mxu0 0.0
    %3987 = vmatpush1.msra.mxu0 %v327
    %3988 = vmatprep.subr.mxu0 0.0
    %3989 = vmatpush1.msra.mxu0 %v328
    %3990 = vmatprep.subr.mxu0 0.0
    %3991 = vmatpush1.msra.mxu0 %v329
    %3992 = vmatprep.subr.mxu0 0.0
    %3993 = vmatpush1.msra.mxu0 %v330
    %3994 = vmatprep.subr.mxu0 0.0
    %3995 = vmatpush1.msra.mxu0 %v331
    %3996 = vmatprep.subr.mxu0 0.0
    %3997 = vmatpush1.msra.mxu0 %v332
    %3998 = vmatprep.subr.mxu0 0.0
    %3999 = vmatpush1.msra.mxu0 %v333
    %4000 = vmatprep.subr.mxu0 0.0
    %4001 = vmatpush1.msra.mxu0 %v334
    %4002 = vmatprep.subr.mxu0 0.0
    %4003 = vmatpush1.msra.mxu0 %v335
    %4004 = vmatprep.subr.mxu0 0.0
    %4005 = vmatpush1.msra.mxu0 %v336
    %4006 = vmatprep.subr.mxu0 0.0
    %4007 = vmatpush1.msra.mxu0 %v337
    %4008 = vmatprep.subr.mxu0 0.0
    %4009 = vmatpush1.msra.mxu0 %v338
    %4010 = vmatprep.subr.mxu0 0.0
    %4011 = vmatpush1.msra.mxu0 %v339
    %4012 = vmatprep.subr.mxu0 0.0
    %4013 = vmatpush1.msra.mxu0 %v340
    %4014 = vmatprep.subr.mxu0 0.0
    %4015 = vmatpush1.msra.mxu0 0.0
    %4016 = vmatprep.subr.mxu0 0.0
    %4017 = vmatpush1.msra.mxu0 0.0
    %4018 = vmatprep.subr.mxu0 0.0
    %4019 = vmatpush1.msra.mxu0 0.0
    %4020 = vmatprep.subr.mxu0 0.0
    %4021 = vmatpush1.msra.mxu0 0.0
    %4022 = vmatprep.subr.mxu0 0.0
    %4023 = vmatpush1.msra.mxu0 0.0
    %4024 = vmatprep.subr.mxu0 0.0
    %4025 = vmatpush1.msra.mxu0 0.0
    %4026 = vmatprep.subr.mxu0 0.0
    %4027 = vmatpush1.msra.mxu0 0.0
    %4028 = vmatprep.subr.mxu0 0.0
    %4029 = vmatpush1.msra.mxu0 0.0
    %4030 = vmatprep.subr.mxu0 0.0
    %4031 = vmatpush1.msra.mxu0 0.0
    %4032 = vmatprep.subr.mxu0 0.0
    %4033 = vmatpush1.msra.mxu0 0.0
    %4034 = vmatprep.subr.mxu0 0.0
    %4035 = vmatpush1.msra.mxu0 0.0
    %4036 = vmatprep.subr.mxu0 0.0
    %4037 = vmatpush1.msra.mxu0 0.0
    %4038 = vmatprep.subr.mxu0 0.0
    %4039 = vmatpush1.msra.mxu0 0.0
    %4040 = vmatprep.subr.mxu0 0.0
    %4041 = vmatpush1.msra.mxu0 0.0
    %4042 = vmatprep.subr.mxu0 0.0
    %4043 = vmatpush1.msra.mxu0 0.0
    %4044 = vmatprep.subr.mxu0 0.0
    %4045 = vmatpush1.msra.mxu0 0.0
    %4046 = vmatprep.subr.mxu0 0.0
    %4047 = vmatpush1.msra.mxu0 0.0
    %4048 = vmatprep.mubr.f32.mxu0 0.0
    %4049 = vmatmul.mubr.f32.gmra.mrb[0].mxu0 %v3982
    %v4050 = vpop.f32.mrb[0].mxu0
    %v4051 = vadd.f32 %v341, %v4050
    %v4052 = vpop.f32.mrb[0].mxu0
    %4053 = vdwg.mxu0
    %v4054 = vmul.f32 %v4051, %v4051
    %v4055 = vsel %vm2211, %v4054, 0.0
    %4056 = vadd.xlane.f32.xlu0 %v4055
    %v4057 = vpop.xlane.xlu0 %4056
    %v4058 = vadd.f32 %v4057, %v353
    %v4060 = vsel %vm1122, %v4051, 0
    %4062 = vmatprep.subr.mxu0 0.0
    %4063 = vmatpush1.msra.mxu0 %v342
    %4064 = vmatprep.subr.mxu0 0.0
    %4065 = vmatpush1.msra.mxu0 %v343
    %4066 = vmatprep.subr.mxu0 0.0
    %4067 = vmatpush1.msra.mxu0 %v344
    %4068 = vmatprep.subr.mxu0 0.0
    %4069 = vmatpush1.msra.mxu0 %v345
    %4070 = vmatprep.subr.mxu0 0.0
    %4071 = vmatpush1.msra.mxu0 %v346
    %4072 = vmatprep.subr.mxu0 0.0
    %4073 = vmatpush1.msra.mxu0 %v347
    %4074 = vmatprep.subr.mxu0 0.0
    %4075 = vmatpush1.msra.mxu0 %v348
    %4076 = vmatprep.subr.mxu0 0.0
    %4077 = vmatpush1.msra.mxu0 %v349
    %4078 = vmatprep.subr.mxu0 0.0
    %4079 = vmatpush1.msra.mxu0 %v350
    %4080 = vmatprep.subr.mxu0 0.0
    %4081 = vmatpush1.msra.mxu0 %v351
    %4082 = vmatprep.subr.mxu0 0.0
    %4083 = vmatpush1.msra.mxu0 %v2220
    %4084 = vmatprep.subr.mxu0 0.0
    %4085 = vmatpush1.msra.mxu0 0.0
    %4086 = vmatprep.subr.mxu0 0.0
    %4087 = vmatpush1.msra.mxu0 0.0
    %4088 = vmatprep.subr.mxu0 0.0
    %4089 = vmatpush1.msra.mxu0 0.0
    %4090 = vmatprep.subr.mxu0 0.0
    %4091 = vmatpush1.msra.mxu0 0.0
    %4092 = vmatprep.subr.mxu0 0.0
    %4093 = vmatpush1.msra.mxu0 0.0
    %4094 = vmatprep.subr.mxu0 0.0
    %4095 = vmatpush1.msra.mxu0 0.0
    %4096 = vmatprep.subr.mxu0 0.0
    %4097 = vmatpush1.msra.mxu0 0.0
    %4098 = vmatprep.subr.mxu0 0.0
    %4099 = vmatpush1.msra.mxu0 0.0
    %4100 = vmatprep.subr.mxu0 0.0
    %4101 = vmatpush1.msra.mxu0 0.0
    %4102 = vmatprep.subr.mxu0 0.0
    %4103 = vmatpush1.msra.mxu0 0.0
    %4104 = vmatprep.subr.mxu0 0.0
    %4105 = vmatpush1.msra.mxu0 0.0
    %4106 = vmatprep.subr.mxu0 0.0
    %4107 = vmatpush1.msra.mxu0 0.0
    %4108 = vmatprep.subr.mxu0 0.0
    %4109 = vmatpush1.msra.mxu0 0.0
    %4110 = vmatprep.subr.mxu0 0.0
    %4111 = vmatpush1.msra.mxu0 0.0
    %4112 = vmatprep.subr.mxu0 0.0
    %4113 = vmatpush1.msra.mxu0 0.0
    %4114 = vmatprep.subr.mxu0 0.0
    %4115 = vmatpush1.msra.mxu0 0.0
    %4116 = vmatprep.subr.mxu0 0.0
    %4117 = vmatpush1.msra.mxu0 0.0
    %4118 = vmatprep.subr.mxu0 0.0
    %4119 = vmatpush1.msra.mxu0 0.0
    %4120 = vmatprep.subr.mxu0 0.0
    %4121 = vmatpush1.msra.mxu0 0.0
    %4122 = vmatprep.subr.mxu0 0.0
    %4123 = vmatpush1.msra.mxu0 0.0
    %4124 = vmatprep.subr.mxu0 0.0
    %4125 = vmatpush1.msra.mxu0 0.0
    %4126 = vmatprep.mubr.f32.mxu0 0.0
    %4127 = vmatmul.mubr.f32.gmra.mrb[0].mxu0 %v4060
    %v4128 = vpop.f32.mrb[0].mxu0
    %v4129 = vadd.f32 0.0, %v4128
    %v4130 = vpop.f32.mrb[0].mxu0
    %4131 = vdwg.mxu0
    %v4132 = vmul.f32 %v4129, 2.0
    %v4133 = vsub.f32 %v4058, %v4132
    %v4135 = vrot.slane %v4133, 7
    %vm4137 = vcmask 1040384
    %v4138 = vsel %vm4137, %v2293, %v4135
    %vm4139 = vcmask 74752
    %4140 = vst.msk [vmem:[#allocation2] sm:$0x3] %vm4139, %v4138
    // Predicated region
    $region78: #{lenet_forward.1} parent=1 // pred_check
      _
    $region79: #{lenet_forward.1} parent=1 // pred_check_branch
      %4142 = sbr.rel (0) target = $region81
    $region80: #{lenet_forward.1} parent=1 // pred_region
      %s4144 = ssub.s32 32, 32
      %4145 = vsyncadd [#allocation3], %s4144
      %s4147 = sshll.u32 [#allocation2], 4
      %s4148 = int_to_ptr.vmem [resolvable:$true] %s4147
      %4150 = dma.vmem_to_hbm [thread:$0]  %s4148, 32, %s19, [#allocation3]
    $region81: #{lenet_forward.1} parent=1 // pred_fallthru
      _
    // Predicated region
    $region82: #{lenet_forward.1} parent=1 // pred_check
      _
    $region83: #{lenet_forward.1} parent=1 // pred_check_branch
      %4152 = sbr.rel (0) target = $region85
    $region84: #{lenet_forward.1} parent=1 // pred_region
      %4153 = dma.done [#allocation3], 32
    $region85: #{lenet_forward.1} parent=1 // pred_fallthru
      _
    %4154 = vsyncpa [#allocation3], 1

</llo_original>
